<compile_context>
chip_gen: v7x
topology: tpu7x:2x2x1
jax: 0.10.0
libtpu: 0.0.40
codegen_flags: <defaults>
</compile_context>

<pallas_src>
import functools

import jax
import jax.numpy as jnp
from jax import lax
from jax.experimental import pallas as pl
from jax.experimental.pallas import tpu as pltpu

EPS = 1e-5


# ------------------------------ layout helpers ------------------------------ #

def _align8(c):
    return -(-c // 8) * 8


def _is_pow2(n):
    return n > 0 and (n & (n - 1)) == 0


def _band_layout(ip):
    """8-row-aligned, non-overlapping row bands in the VMEM staging scratch."""
    a8 = _align8
    e0 = 0                       # entry out, branch0   (ip rows used)
    e1 = a8(ip)                  # entry out, branch1   (ip)
    e2 = 2 * a8(ip)              # entry out, branch2   (ip)
    e3 = 3 * a8(ip)              # entry out, branch3   (ip//2)
    entry_rows = 3 * a8(ip) + a8(ip // 2)   # padded entry-matmul output height
    t12 = entry_rows             # t1 rows [t12, t12+ip), t2 adjacent (merged dil=3)
    t3a = t12 + a8(2 * ip)       # branch3 first (1,3) conv out (3*ip//4)
    t3b = t3a + a8(3 * ip // 4)  # branch3 second (3,1) conv out (ip)
    total = t3b + a8(ip)
    return dict(e0=e0, e1=e1, e2=e2, e3=e3, entry_rows=entry_rows,
                t12=t12, t3a=t3a, t3b=t3b, total=total)


def _bias_offsets(ip, cout):
    """Row offsets of every folded-BN bias inside the single packed bias slab."""
    entry_rows = 3 * _align8(ip) + _align8(ip // 2)
    sizes = [("be", entry_rows), ("b11", ip), ("b21", ip), ("b31", 3 * ip // 4),
             ("b32", ip), ("bd1", ip), ("bd3", 2 * ip), ("bd5", ip), ("bl", cout)]
    offs, o = {}, 0
    for name, k in sizes:
        offs[name] = (o, k)
        o += k
    return offs, o


# ------------------------------- Pallas kernel ------------------------------ #

def _rfb_kernel(x_ref, we_ref, w3_ref, wd_ref, wl_ref, bias_ref,
                o_ref, buf_ref, *, H, W, B, pad, scale, ip, cout):
    f32 = jnp.float32
    HW = H * W
    M = B * HW                                     # lane width of the working slab
    band = _band_layout(ip)
    boffs, _ = _bias_offsets(ip, cout)

    def bias(name):
        o, k = boffs[name]
        return bias_ref[o:o + k, :]                # (k, 1) -> lane broadcast

    # Per-lane in-image coordinates, hoisted once (shift/div-free formulation).
    lane = lax.broadcasted_iota(jnp.int32, (1, M), 1)
    ww = (lane & (W - 1)) if _is_pow2(W) else (lane % W)            # w coordinate
    pin = (lane & (HW - 1)) if _is_pow2(HW) else (lane % HW)        # h*W + w
    hw = pin - ww                                                   # h*W

    masks = {}                                     # memoized per spatial offset

    def mask(oy, ox):
        key = (oy, ox)
        if key not in masks:
            m = None
            if ox != 0:
                m = (ww + ox >= 0) & (ww + ox < W)
            if oy != 0:
                hv = (hw + oy * W >= 0) & (hw + oy * W < HW)
                m = hv if m is None else (m & hv)
            masks[key] = m
        return masks[key]

    def tap(r0, C, oy, ox):
        # Staged activation shifted by (oy, ox); out-of-image lanes forced to 0.
        # The +-pad lane halo only keeps reads in-bounds; its (stale) contents are
        # never used because every out-of-image lane is masked -> no scratch zeroing.
        s = oy * W + ox
        v = buf_ref[r0:r0 + C, pad + s:pad + s + M]
        m = mask(oy, ox)
        return v if m is None else jnp.where(m, v, 0.0)

    def stage(r0, a):
        buf_ref[r0:r0 + a.shape[0], pad:pad + M] = a

    def conv3(r0, cin, w_r0, cout_c, bname, along_h):
        # BasicConv (3,1)/(1,3) + folded BN + ReLU: 3 shifted matmuls.
        acc = None
        for k in range(3):
            oy, ox = (k - 1, 0) if along_h else (0, k - 1)
            t = jnp.dot(w3_ref[k, w_r0:w_r0 + cout_c, 0:cin],
                        tap(r0, cin, oy, ox), preferred_element_type=f32)
            acc = t if acc is None else acc + t
        return jnp.maximum(acc + bias(bname), 0.0)

    def dwconv(r0, C, w_c0, bname, dil):
        # BasicSepConv: depthwise 3x3 (dilation=dil) + folded BN, no ReLU.
        acc = None
        for k in range(9):
            oy, ox = (k // 3 - 1) * dil, (k % 3 - 1) * dil
            t = wd_ref[w_c0:w_c0 + C, k:k + 1] * tap(r0, C, oy, ox)
            acc = t if acc is None else acc + t
        return acc + bias(bname)

    # 1) all four branch-entry 1x1 convs as one matmul per image (+BN +ReLU); the
    #    weight rows are pre-padded so each branch lands on its 8-aligned band and
    #    the whole result is stored with a single aligned store per image.
    be = bias("be")
    for b in range(B):
        entry = jnp.maximum(
            jnp.dot(we_ref[...], x_ref[b], preferred_element_type=f32) + be, 0.0)
        buf_ref[0:band["entry_rows"], pad + b * HW:pad + (b + 1) * HW] = entry

    # 2) branch0: depthwise 3x3, dil=1
    x0 = dwconv(band["e0"], ip, 0, "bd1", 1)
    # 3) branch1: (3,1) conv -> t1
    stage(band["t12"], conv3(band["e1"], ip, 0, ip, "b11", along_h=True))
    # 4) branch2: (1,3) conv -> t2 (adjacent to t1 for the merged dil=3 pass)
    stage(band["t12"] + ip, conv3(band["e2"], ip, ip, ip, "b21", along_h=False))
    # 5) merged dil=3 depthwise over [t1; t2] (branch1 + branch2 in one pass)
    x12 = dwconv(band["t12"], 2 * ip, ip, "bd3", 3)
    # 6) branch3: (1,3) conv (ip/2 -> 3ip/4), then (3,1) conv (3ip/4 -> ip)
    stage(band["t3a"],
          conv3(band["e3"], ip // 2, 2 * ip, 3 * ip // 4, "b31", along_h=False))
    stage(band["t3b"],
          conv3(band["t3a"], 3 * ip // 4, 2 * ip + 3 * ip // 4, ip, "b32",
                along_h=True))
    # 7) branch3 depthwise 3x3, dil=5
    x3 = dwconv(band["t3b"], ip, 3 * ip, "bd5", 5)

    # 8) ConvLinear 1x1 + BN (single weight slab, static K-slices over the concat)
    lin = (jnp.dot(wl_ref[:, 0:ip], x0, preferred_element_type=f32)
           + jnp.dot(wl_ref[:, ip:3 * ip], x12, preferred_element_type=f32)
           + jnp.dot(wl_ref[:, 3 * ip:4 * ip], x3, preferred_element_type=f32)
           + bias("bl"))

    # 9) residual + ReLU, written back per image (HW-aligned lane slices)
    for b in range(B):
        o_ref[b, :, :] = jnp.maximum(
            lin[:, b * HW:(b + 1) * HW] * scale + x_ref[b], 0.0)


# --------------------------- Parameter preparation -------------------------- #

def prepare_rfb_params(P):
    """Fold eval-mode BN into weights/biases and pack everything into 5 slabs:
       we   (Er, Cin)     entry 1x1 weights, rows pre-padded to the 8-aligned bands
       w3   (3, R, ip)    the four (3,1)/(1,3) conv tap matrices (Cin zero-padded)
       wd   (4*ip, 9)     the four depthwise 3x3 kernels, channels stacked
       wl   (Cout, 4*ip)  ConvLinear 1x1 weight
       bias (Rb, 1)       every folded-BN bias, concatenated
    Done once outside the forward path."""
    def fold(p):
        s = p["gamma"] / jnp.sqrt(p["rv"] + EPS)
        return s, p["beta"] - p["rm"] * s

    def pw(p):                                    # 1x1 conv -> (Cout, Cin), (Cout,)
        s, b = fold(p)
        return p["w"][:, :, 0, 0] * s[:, None], b

    def taps3(p, along_h):                        # (3,1)/(1,3) -> (3, Cout, Cin)
        s, b = fold(p)
        w = p["w"] * s[:, None, None, None]
        if along_h:
            w = jnp.stack([w[:, :, k, 0] for k in range(3)], axis=0)
        else:
            w = jnp.stack([w[:, :, 0, k] for k in range(3)], axis=0)
        return w, b

    def dwt(p):                                   # depthwise 3x3 -> (C, 9), (C,)
        s, b = fold(p)
        return (p["w"][:, 0] * s[:, None, None]).reshape(-1, 9), b

    ip = P["b0_0"]["w"].shape[0]                  # inter_planes
    cin = P["b0_0"]["w"].shape[1]
    cout = P["lin"]["w"].shape[0]
    band = _band_layout(ip)

    # entry 1x1 convs, rows padded to the buf band layout (pad rows stay zero)
    we = jnp.zeros((band["entry_rows"], cin), jnp.float32)
    be_full = jnp.zeros((band["entry_rows"],), jnp.float32)
    for r0, name, k in [(band["e0"], "b0_0", ip), (band["e1"], "b1_0", ip),
                        (band["e2"], "b2_0", ip), (band["e3"], "b3_0", ip // 2)]:
        w, b = pw(P[name])
        we = we.at[r0:r0 + k].set(w)
        be_full = be_full.at[r0:r0 + k].set(b)

    # (3,1)/(1,3) conv taps packed into one slab (Cin zero-padded to ip)
    w3_parts, b3 = [], {}
    for name, along_h in [("b1_1", True), ("b2_1", False),
                          ("b3_1", False), ("b3_2", True)]:
        w, b = taps3(P[name], along_h)
        w3_parts.append(jnp.pad(w, ((0, 0), (0, 0), (0, ip - w.shape[2]))))
        b3[name] = b
    w3 = jnp.concatenate(w3_parts, axis=1)        # rows: [w11 | w21 | w31 | w32]

    # depthwise 3x3 weights, channel-major with the 9 taps on the lane dim
    wd1, bd1 = dwt(P["b0_1"])
    wd3a, bd3a = dwt(P["b1_2"])
    wd3b, bd3b = dwt(P["b2_2"])
    wd5, bd5 = dwt(P["b3_3"])
    wd = jnp.concatenate([wd1, wd3a, wd3b, wd5], axis=0)

    wl, bl = pw(P["lin"])

    offs, total = _bias_offsets(ip, cout)
    bias = jnp.zeros((total, 1), jnp.float32)
    for name, v in [("be", be_full), ("b11", b3["b1_1"]), ("b21", b3["b2_1"]),
                    ("b31", b3["b3_1"]), ("b32", b3["b3_2"]),
                    ("bd1", bd1), ("bd3", jnp.concatenate([bd3a, bd3b])),
                    ("bd5", bd5), ("bl", bl)]:
        o, k = offs[name]
        bias = bias.at[o:o + k, 0].set(v)

    return {"we": we, "w3": w3, "wd": wd, "wl": wl, "bias": bias}


# --------------------------------- Forward ---------------------------------- #

def _const_index_map(nd):
    def im(n):
        return (0,) * nd
    return im


def _pick_images_per_block(N, HW, max_lanes=4096):
    """Images per grid step: widen the lane dim (amortize per-step overhead, fill
    vregs) while keeping >= 2 grid steps so the 'parallel' axis can still shard
    across TensorCores (v7x megacore)."""
    best = 1
    for b in range(1, N + 1):
        if N % b == 0 and b * HW <= max_lanes and (b == 1 or N // b >= 2):
            best = b
    return best


def rfb_forward(x_nchw, prep, scale=0.1):
    x = x_nchw.astype(jnp.float32)
    N, C, H, W = x.shape
    HW = H * W
    ip = prep["wd"].shape[0] // 4                            # inter_planes
    assert prep["wl"].shape[0] == C, "residual path requires out_planes == in_planes"
    assert HW % 128 == 0, "H*W must be a multiple of 128 for lane tiling"
    # TODO(synk): pad H*W to a multiple of 128 for arbitrary spatial sizes.

    B = _pick_images_per_block(N, HW)
    pad = -(-(5 * W + 5) // 128) * 128          # halo >= max spatial shift (dil=5)
    buf_rows = _band_layout(ip)["total"]
    buf_cols = B * HW + 2 * pad

    # NCHW -> (N, C, H*W) is a free view: no HBM relayout on either side.
    xv = x.reshape(N, C, HW)
    weights = [prep["we"], prep["w3"], prep["wd"], prep["wl"], prep["bias"]]

    # Rough padded-VMEM budget (double-buffered x/out blocks + weights + scratch);
    # only raise the scoped limit when the default would bind (production shapes,
    # especially v7x with 64 MiB physical VMEM).
    def padded_bytes(shape):
        lead = 1
        for d in shape[:-2]:
            lead *= d
        return lead * _align8(shape[-2]) * (-(-shape[-1] // 128) * 128) * 4
    est = (4 * padded_bytes((B, C, HW)) + buf_rows * buf_cols * 4
           + 2 * sum(padded_bytes(w.shape) for w in weights) + (1 << 20))
    vmem_limit = (min(int(est * 1.5), 100 * 1024 * 1024)
                  if est > 24 * 1024 * 1024 else None)

    kern = functools.partial(_rfb_kernel, H=H, W=W, B=B, pad=pad,
                             scale=float(scale), ip=ip, cout=C)

    out = pl.pallas_call(
        kern,
        out_shape=jax.ShapeDtypeStruct((N, C, HW), jnp.float32),
        grid=(N // B,),
        in_specs=[pl.BlockSpec((B, C, HW), lambda n: (n, 0, 0))]
                 + [pl.BlockSpec(a.shape, _const_index_map(a.ndim)) for a in weights],
        out_specs=pl.BlockSpec((B, C, HW), lambda n: (n, 0, 0)),
        scratch_shapes=[pltpu.VMEM((buf_rows, buf_cols), jnp.float32)],
        compiler_params=pltpu.CompilerParams(
            dimension_semantics=("parallel",), vmem_limit_bytes=vmem_limit),
    )(xv, *weights)

    return out.reshape(N, C, H, W)


# ------------------------------ Pure-JAX reference -------------------------- #

def ref_rfb(x_nchw, P, scale):
    def conv_bn(x, p, padding, dilation=(1, 1), relu=True, groups=1):
        w = jnp.transpose(p["w"], (2, 3, 1, 0))  # OIHW -> HWIO
        y = lax.conv_general_dilated(
            x, w, window_strides=(1, 1), padding=padding, rhs_dilation=dilation,
            dimension_numbers=("NHWC", "HWIO", "NHWC"),
            feature_group_count=groups, precision=lax.Precision.HIGHEST)
        y = (y - p["rm"]) * (p["gamma"] / jnp.sqrt(p["rv"] + EPS)) + p["beta"]
        return jnp.maximum(y, 0.0) if relu else y

    x = jnp.transpose(x_nchw, (0, 2, 3, 1))
    g = P["b0_1"]["w"].shape[0]  # inter_planes (depthwise group count)
    b0 = conv_bn(x, P["b0_0"], [(0, 0), (0, 0)])
    b0 = conv_bn(b0, P["b0_1"], [(1, 1), (1, 1)], relu=False, groups=g)
    b1 = conv_bn(x, P["b1_0"], [(0, 0), (0, 0)])
    b1 = conv_bn(b1, P["b1_1"], [(1, 1), (0, 0)])
    b1 = conv_bn(b1, P["b1_2"], [(3, 3), (3, 3)], dilation=(3, 3), relu=False, groups=g)
    b2 = conv_bn(x, P["b2_0"], [(0, 0), (0, 0)])
    b2 = conv_bn(b2, P["b2_1"], [(0, 0), (1, 1)])
    b2 = conv_bn(b2, P["b2_2"], [(3, 3), (3, 3)], dilation=(3, 3), relu=False, groups=g)
    b3 = conv_bn(x, P["b3_0"], [(0, 0), (0, 0)])
    b3 = conv_bn(b3, P["b3_1"], [(0, 0), (1, 1)])
    b3 = conv_bn(b3, P["b3_2"], [(1, 1), (0, 0)])
    b3 = conv_bn(b3, P["b3_3"], [(5, 5), (5, 5)], dilation=(5, 5), relu=False, groups=g)
    cat = jnp.concatenate([b0, b1, b2, b3], axis=-1)
    out = conv_bn(cat, P["lin"], [(0, 0), (0, 0)], relu=False)
    out = jnp.maximum(out * scale + x, 0.0)
    return jnp.transpose(out, (0, 3, 1, 2))


# ------------------------------- Parameter init ----------------------------- #

def make_conv_params(key, cout, cin_per_group, kh, kw):
    kw_, kg, kb, km, kv = jax.random.split(key, 5)
    fan_in = cin_per_group * kh * kw
    return {
        "w": jax.random.normal(kw_, (cout, cin_per_group, kh, kw), jnp.float32)
             / jnp.sqrt(float(fan_in)),
        "gamma": 1.0 + 0.1 * jax.random.normal(kg, (cout,), jnp.float32),
        "beta": 0.1 * jax.random.normal(kb, (cout,), jnp.float32),
        "rm": 0.1 * jax.random.normal(km, (cout,), jnp.float32),
        "rv": 1.0 + 0.5 * jax.random.uniform(kv, (cout,), jnp.float32),
    }


if __name__ == "__main__":
    in_planes, out_planes = 16, 16          # residual requires out_planes == in_planes
    H, W = 16, 16
    inter = in_planes // 4                  # 4
    scale = 0.1

    root = jax.random.PRNGKey(0)
    keys = jax.random.split(root, 16)
    P = {
        "b0_0": make_conv_params(keys[0], inter, in_planes, 1, 1),
        "b0_1": make_conv_params(keys[1], inter, 1, 3, 3),
        "b1_0": make_conv_params(keys[2], inter, in_planes, 1, 1),
        "b1_1": make_conv_params(keys[3], inter, inter, 3, 1),
        "b1_2": make_conv_params(keys[4], inter, 1, 3, 3),
        "b2_0": make_conv_params(keys[5], inter, in_planes, 1, 1),
        "b2_1": make_conv_params(keys[6], inter, inter, 1, 3),
        "b2_2": make_conv_params(keys[7], inter, 1, 3, 3),
        "b3_0": make_conv_params(keys[8], inter // 2, in_planes, 1, 1),
        "b3_1": make_conv_params(keys[9], inter // 4 * 3, inter // 2, 1, 3),
        "b3_2": make_conv_params(keys[10], inter, inter // 4 * 3, 3, 1),
        "b3_3": make_conv_params(keys[11], inter, 1, 3, 3),
        "lin":  make_conv_params(keys[12], out_planes, 4 * inter, 1, 1),
    }

    prep = prepare_rfb_params(P)                       # BN fold + slab packing, once
    fwd = jax.jit(functools.partial(rfb_forward, scale=scale))

    # N=2 -> 1 image/step (grid=2, megacore-friendly);
    # N=4 -> 2 images/step (exercises the wide-lane multi-image path).
    for N, kx in ((2, keys[13]), (4, keys[14])):
        x = jax.random.normal(kx, (N, in_planes, H, W), jnp.float32)  # NCHW input
        out = jax.block_until_ready(fwd(x, prep))
        ref = ref_rfb(x, P, scale)
        assert out.shape == ref.shape == (N, out_planes, H, W)
        err = float(jnp.max(jnp.abs(out - ref)))
        if not bool(jnp.allclose(out, ref, atol=2e-3, rtol=2e-3)):
            raise AssertionError(f"Pallas RFB mismatch vs reference (N={N}), "
                                 f"max abs err={err}")
    print("KERNEL_OK")
</pallas_src>

<mosaic_0001>
module attributes {stable_mosaic.version = 11 : i64} {
  func.func @_rfb_kernel(%arg0: i32, %arg1: memref<1x16x256xf32, #tpu.memory_space<vmem>>, %arg2: memref<32x16xf32, #tpu.memory_space<vmem>>, %arg3: memref<3x15x4xf32, #tpu.memory_space<vmem>>, %arg4: memref<16x9xf32, #tpu.memory_space<vmem>>, %arg5: memref<16x16xf32, #tpu.memory_space<vmem>>, %arg6: memref<79x1xf32, #tpu.memory_space<vmem>>, %arg7: memref<1x16x256xf32, #tpu.memory_space<vmem>>, %arg8: memref<56x512xf32, #tpu.memory_space<vmem>>) attributes {dimension_semantics = [#tpu.dimension_semantics<parallel>], iteration_bounds = array<i64: 2>, scalar_prefetch = 0 : i64, scratch_operands = 1 : i64, tpu.core_type = #tpu.core_type<tc>, window_params = [{transform_indices = @transform_0, window_bounds = array<i64: 1, 16, 256>}, {pipeline_mode = #tpu.pipeline_mode<synchronous>, transform_indices = @transform_1, window_bounds = array<i64: 32, 16>}, {pipeline_mode = #tpu.pipeline_mode<synchronous>, transform_indices = @transform_2, window_bounds = array<i64: 3, 15, 4>}, {pipeline_mode = #tpu.pipeline_mode<synchronous>, transform_indices = @transform_3, window_bounds = array<i64: 16, 9>}, {pipeline_mode = #tpu.pipeline_mode<synchronous>, transform_indices = @transform_4, window_bounds = array<i64: 16, 16>}, {pipeline_mode = #tpu.pipeline_mode<synchronous>, transform_indices = @transform_5, window_bounds = array<i64: 79, 1>}, {transform_indices = @transform_6, window_bounds = array<i64: 1, 16, 256>}]} {
    %0 = tpu.iota {dimensions = array<i32: 1>} : vector<1x256xi32>
    %c15_i32 = arith.constant 15 : i32
    %1 = vector.broadcast %c15_i32 : i32 to vector<1x256xi32>
    %2 = arith.andi %0, %1 : vector<1x256xi32>
    %c255_i32 = arith.constant 255 : i32
    %3 = vector.broadcast %c255_i32 : i32 to vector<1x256xi32>
    %4 = arith.andi %0, %3 : vector<1x256xi32>
    %5 = arith.subi %4, %2 : vector<1x256xi32>
    %c0 = arith.constant 0 : index
    %c0_0 = arith.constant 0 : index
    %6 = vector.load %arg6[%c0, %c0_0] : memref<79x1xf32, #tpu.memory_space<vmem>>, vector<32x1xf32>
    %c0_1 = arith.constant 0 : index
    %c0_2 = arith.constant 0 : index
    %7 = vector.load %arg2[%c0_1, %c0_2] : memref<32x16xf32, #tpu.memory_space<vmem>>, vector<32x16xf32>
    %c0_3 = arith.constant 0 : index
    %c0_4 = arith.constant 0 : index
    %c0_5 = arith.constant 0 : index
    %8 = vector.load %arg1[%c0_3, %c0_4, %c0_5] : memref<1x16x256xf32, #tpu.memory_space<vmem>>, vector<1x16x256xf32>
    %9 = vector.shape_cast %8 : vector<1x16x256xf32> to vector<16x256xf32>
    %cst = arith.constant dense<0.000000e+00> : vector<32x256xf32>
    %10 = tpu.matmul %7, %9, %cst {dimension_numbers = #tpu.dot_dimension_numbers<[1], [0], [0], [1], [0, 0, 1, 1], [], []>} : vector<32x16xf32>, vector<16x256xf32>, vector<32x256xf32> -> vector<32x256xf32>
    %11 = vector.broadcast %6 : vector<32x1xf32> to vector<32x256xf32>
    %12 = arith.addf %10, %11 : vector<32x256xf32>
    %cst_6 = arith.constant 0.000000e+00 : f32
    %13 = vector.broadcast %cst_6 : f32 to vector<32x256xf32>
    %14 = arith.maximumf %12, %13 : vector<32x256xf32>
    %c0_7 = arith.constant 0 : index
    %c128 = arith.constant 128 : index
    %15 = vector.load %arg8[%c0_7, %c128] : memref<56x512xf32, #tpu.memory_space<vmem>>, vector<32x256xf32>
    tpu.vector_store %arg8[%c0_7, %c128], %14 {strides = array<i32>} : memref<56x512xf32, #tpu.memory_space<vmem>>, vector<32x256xf32>,
    %c0_8 = arith.constant 0 : index
    %c0_9 = arith.constant 0 : index
    %16 = vector.load %arg4[%c0_8, %c0_9] : memref<16x9xf32, #tpu.memory_space<vmem>>, vector<4x1xf32>
    %c0_10 = arith.constant 0 : index
    %c111 = arith.constant 111 : index
    %17 = vector.load %arg8[%c0_10, %c111] : memref<56x512xf32, #tpu.memory_space<vmem>>, vector<4x256xf32>
    %c-1_i32 = arith.constant -1 : i32
    %18 = vector.broadcast %c-1_i32 : i32 to vector<1x256xi32>
    %19 = arith.addi %2, %18 : vector<1x256xi32>
    %c0_i32 = arith.constant 0 : i32
    %20 = vector.broadcast %c0_i32 : i32 to vector<1x256xi32>
    %21 = arith.cmpi sge, %19, %20 : vector<1x256xi32>
    %c-1_i32_11 = arith.constant -1 : i32
    %22 = vector.broadcast %c-1_i32_11 : i32 to vector<1x256xi32>
    %23 = arith.addi %2, %22 : vector<1x256xi32>
    %c16_i32 = arith.constant 16 : i32
    %24 = vector.broadcast %c16_i32 : i32 to vector<1x256xi32>
    %25 = arith.cmpi slt, %23, %24 : vector<1x256xi32>
    %26 = arith.andi %21, %25 : vector<1x256xi1>
    %c-16_i32 = arith.constant -16 : i32
    %27 = vector.broadcast %c-16_i32 : i32 to vector<1x256xi32>
    %28 = arith.addi %5, %27 : vector<1x256xi32>
    %c0_i32_12 = arith.constant 0 : i32
    %29 = vector.broadcast %c0_i32_12 : i32 to vector<1x256xi32>
    %30 = arith.cmpi sge, %28, %29 : vector<1x256xi32>
    %c-16_i32_13 = arith.constant -16 : i32
    %31 = vector.broadcast %c-16_i32_13 : i32 to vector<1x256xi32>
    %32 = arith.addi %5, %31 : vector<1x256xi32>
    %c256_i32 = arith.constant 256 : i32
    %33 = vector.broadcast %c256_i32 : i32 to vector<1x256xi32>
    %34 = arith.cmpi slt, %32, %33 : vector<1x256xi32>
    %35 = arith.andi %30, %34 : vector<1x256xi1>
    %36 = arith.andi %26, %35 : vector<1x256xi1>
    %cst_14 = arith.constant 0.000000e+00 : f32
    %37 = vector.shape_cast %36 : vector<1x256xi1> to vector<1x256xi1>
    %38 = vector.broadcast %37 : vector<1x256xi1> to vector<4x256xi1>
    %39 = vector.broadcast %cst_14 : f32 to vector<4x256xf32>
    %40 = arith.select %38, %17, %39 : vector<4x256xi1>, vector<4x256xf32>
    %41 = vector.broadcast %16 : vector<4x1xf32> to vector<4x256xf32>
    %42 = arith.mulf %41, %40 : vector<4x256xf32>
    %c0_15 = arith.constant 0 : index
    %c1 = arith.constant 1 : index
    %43 = vector.load %arg4[%c0_15, %c1] : memref<16x9xf32, #tpu.memory_space<vmem>>, vector<4x1xf32>
    %c0_16 = arith.constant 0 : index
    %c112 = arith.constant 112 : index
    %44 = vector.load %arg8[%c0_16, %c112] : memref<56x512xf32, #tpu.memory_space<vmem>>, vector<4x256xf32>
    %c-16_i32_17 = arith.constant -16 : i32
    %45 = vector.broadcast %c-16_i32_17 : i32 to vector<1x256xi32>
    %46 = arith.addi %5, %45 : vector<1x256xi32>
    %c0_i32_18 = arith.constant 0 : i32
    %47 = vector.broadcast %c0_i32_18 : i32 to vector<1x256xi32>
    %48 = arith.cmpi sge, %46, %47 : vector<1x256xi32>
    %c-16_i32_19 = arith.constant -16 : i32
    %49 = vector.broadcast %c-16_i32_19 : i32 to vector<1x256xi32>
    %50 = arith.addi %5, %49 : vector<1x256xi32>
    %c256_i32_20 = arith.constant 256 : i32
    %51 = vector.broadcast %c256_i32_20 : i32 to vector<1x256xi32>
    %52 = arith.cmpi slt, %50, %51 : vector<1x256xi32>
    %53 = arith.andi %48, %52 : vector<1x256xi1>
    %cst_21 = arith.constant 0.000000e+00 : f32
    %54 = vector.shape_cast %53 : vector<1x256xi1> to vector<1x256xi1>
    %55 = vector.broadcast %54 : vector<1x256xi1> to vector<4x256xi1>
    %56 = vector.broadcast %cst_21 : f32 to vector<4x256xf32>
    %57 = arith.select %55, %44, %56 : vector<4x256xi1>, vector<4x256xf32>
    %58 = vector.broadcast %43 : vector<4x1xf32> to vector<4x256xf32>
    %59 = arith.mulf %58, %57 : vector<4x256xf32>
    %60 = arith.addf %42, %59 : vector<4x256xf32>
    %c0_22 = arith.constant 0 : index
    %c2 = arith.constant 2 : index
    %61 = vector.load %arg4[%c0_22, %c2] : memref<16x9xf32, #tpu.memory_space<vmem>>, vector<4x1xf32>
    %c0_23 = arith.constant 0 : index
    %c113 = arith.constant 113 : index
    %62 = vector.load %arg8[%c0_23, %c113] : memref<56x512xf32, #tpu.memory_space<vmem>>, vector<4x256xf32>
    %c1_i32 = arith.constant 1 : i32
    %63 = vector.broadcast %c1_i32 : i32 to vector<1x256xi32>
    %64 = arith.addi %2, %63 : vector<1x256xi32>
    %c0_i32_24 = arith.constant 0 : i32
    %65 = vector.broadcast %c0_i32_24 : i32 to vector<1x256xi32>
    %66 = arith.cmpi sge, %64, %65 : vector<1x256xi32>
    %c1_i32_25 = arith.constant 1 : i32
    %67 = vector.broadcast %c1_i32_25 : i32 to vector<1x256xi32>
    %68 = arith.addi %2, %67 : vector<1x256xi32>
    %c16_i32_26 = arith.constant 16 : i32
    %69 = vector.broadcast %c16_i32_26 : i32 to vector<1x256xi32>
    %70 = arith.cmpi slt, %68, %69 : vector<1x256xi32>
    %71 = arith.andi %66, %70 : vector<1x256xi1>
    %c-16_i32_27 = arith.constant -16 : i32
    %72 = vector.broadcast %c-16_i32_27 : i32 to vector<1x256xi32>
    %73 = arith.addi %5, %72 : vector<1x256xi32>
    %c0_i32_28 = arith.constant 0 : i32
    %74 = vector.broadcast %c0_i32_28 : i32 to vector<1x256xi32>
    %75 = arith.cmpi sge, %73, %74 : vector<1x256xi32>
    %c-16_i32_29 = arith.constant -16 : i32
    %76 = vector.broadcast %c-16_i32_29 : i32 to vector<1x256xi32>
    %77 = arith.addi %5, %76 : vector<1x256xi32>
    %c256_i32_30 = arith.constant 256 : i32
    %78 = vector.broadcast %c256_i32_30 : i32 to vector<1x256xi32>
    %79 = arith.cmpi slt, %77, %78 : vector<1x256xi32>
    %80 = arith.andi %75, %79 : vector<1x256xi1>
    %81 = arith.andi %71, %80 : vector<1x256xi1>
    %cst_31 = arith.constant 0.000000e+00 : f32
    %82 = vector.shape_cast %81 : vector<1x256xi1> to vector<1x256xi1>
    %83 = vector.broadcast %82 : vector<1x256xi1> to vector<4x256xi1>
    %84 = vector.broadcast %cst_31 : f32 to vector<4x256xf32>
    %85 = arith.select %83, %62, %84 : vector<4x256xi1>, vector<4x256xf32>
    %86 = vector.broadcast %61 : vector<4x1xf32> to vector<4x256xf32>
    %87 = arith.mulf %86, %85 : vector<4x256xf32>
    %88 = arith.addf %60, %87 : vector<4x256xf32>
    %c0_32 = arith.constant 0 : index
    %c3 = arith.constant 3 : index
    %89 = vector.load %arg4[%c0_32, %c3] : memref<16x9xf32, #tpu.memory_space<vmem>>, vector<4x1xf32>
    %c0_33 = arith.constant 0 : index
    %c127 = arith.constant 127 : index
    %90 = vector.load %arg8[%c0_33, %c127] : memref<56x512xf32, #tpu.memory_space<vmem>>, vector<4x256xf32>
    %c-1_i32_34 = arith.constant -1 : i32
    %91 = vector.broadcast %c-1_i32_34 : i32 to vector<1x256xi32>
    %92 = arith.addi %2, %91 : vector<1x256xi32>
    %c0_i32_35 = arith.constant 0 : i32
    %93 = vector.broadcast %c0_i32_35 : i32 to vector<1x256xi32>
    %94 = arith.cmpi sge, %92, %93 : vector<1x256xi32>
    %c-1_i32_36 = arith.constant -1 : i32
    %95 = vector.broadcast %c-1_i32_36 : i32 to vector<1x256xi32>
    %96 = arith.addi %2, %95 : vector<1x256xi32>
    %c16_i32_37 = arith.constant 16 : i32
    %97 = vector.broadcast %c16_i32_37 : i32 to vector<1x256xi32>
    %98 = arith.cmpi slt, %96, %97 : vector<1x256xi32>
    %99 = arith.andi %94, %98 : vector<1x256xi1>
    %cst_38 = arith.constant 0.000000e+00 : f32
    %100 = vector.shape_cast %99 : vector<1x256xi1> to vector<1x256xi1>
    %101 = vector.broadcast %100 : vector<1x256xi1> to vector<4x256xi1>
    %102 = vector.broadcast %cst_38 : f32 to vector<4x256xf32>
    %103 = arith.select %101, %90, %102 : vector<4x256xi1>, vector<4x256xf32>
    %104 = vector.broadcast %89 : vector<4x1xf32> to vector<4x256xf32>
    %105 = arith.mulf %104, %103 : vector<4x256xf32>
    %106 = arith.addf %88, %105 : vector<4x256xf32>
    %c0_39 = arith.constant 0 : index
    %c4 = arith.constant 4 : index
    %107 = vector.load %arg4[%c0_39, %c4] : memref<16x9xf32, #tpu.memory_space<vmem>>, vector<4x1xf32>
    %c0_40 = arith.constant 0 : index
    %c128_41 = arith.constant 128 : index
    %108 = vector.load %arg8[%c0_40, %c128_41] : memref<56x512xf32, #tpu.memory_space<vmem>>, vector<4x256xf32>
    %109 = vector.broadcast %107 : vector<4x1xf32> to vector<4x256xf32>
    %110 = arith.mulf %109, %108 : vector<4x256xf32>
    %111 = arith.addf %106, %110 : vector<4x256xf32>
    %c0_42 = arith.constant 0 : index
    %c5 = arith.constant 5 : index
    %112 = vector.load %arg4[%c0_42, %c5] : memref<16x9xf32, #tpu.memory_space<vmem>>, vector<4x1xf32>
    %c0_43 = arith.constant 0 : index
    %c129 = arith.constant 129 : index
    %113 = vector.load %arg8[%c0_43, %c129] : memref<56x512xf32, #tpu.memory_space<vmem>>, vector<4x256xf32>
    %c1_i32_44 = arith.constant 1 : i32
    %114 = vector.broadcast %c1_i32_44 : i32 to vector<1x256xi32>
    %115 = arith.addi %2, %114 : vector<1x256xi32>
    %c0_i32_45 = arith.constant 0 : i32
    %116 = vector.broadcast %c0_i32_45 : i32 to vector<1x256xi32>
    %117 = arith.cmpi sge, %115, %116 : vector<1x256xi32>
    %c1_i32_46 = arith.constant 1 : i32
    %118 = vector.broadcast %c1_i32_46 : i32 to vector<1x256xi32>
    %119 = arith.addi %2, %118 : vector<1x256xi32>
    %c16_i32_47 = arith.constant 16 : i32
    %120 = vector.broadcast %c16_i32_47 : i32 to vector<1x256xi32>
    %121 = arith.cmpi slt, %119, %120 : vector<1x256xi32>
    %122 = arith.andi %117, %121 : vector<1x256xi1>
    %cst_48 = arith.constant 0.000000e+00 : f32
    %123 = vector.shape_cast %122 : vector<1x256xi1> to vector<1x256xi1>
    %124 = vector.broadcast %123 : vector<1x256xi1> to vector<4x256xi1>
    %125 = vector.broadcast %cst_48 : f32 to vector<4x256xf32>
    %126 = arith.select %124, %113, %125 : vector<4x256xi1>, vector<4x256xf32>
    %127 = vector.broadcast %112 : vector<4x1xf32> to vector<4x256xf32>
    %128 = arith.mulf %127, %126 : vector<4x256xf32>
    %129 = arith.addf %111, %128 : vector<4x256xf32>
    %c0_49 = arith.constant 0 : index
    %c6 = arith.constant 6 : index
    %130 = vector.load %arg4[%c0_49, %c6] : memref<16x9xf32, #tpu.memory_space<vmem>>, vector<4x1xf32>
    %c0_50 = arith.constant 0 : index
    %c143 = arith.constant 143 : index
    %131 = vector.load %arg8[%c0_50, %c143] : memref<56x512xf32, #tpu.memory_space<vmem>>, vector<4x256xf32>
    %c-1_i32_51 = arith.constant -1 : i32
    %132 = vector.broadcast %c-1_i32_51 : i32 to vector<1x256xi32>
    %133 = arith.addi %2, %132 : vector<1x256xi32>
    %c0_i32_52 = arith.constant 0 : i32
    %134 = vector.broadcast %c0_i32_52 : i32 to vector<1x256xi32>
    %135 = arith.cmpi sge, %133, %134 : vector<1x256xi32>
    %c-1_i32_53 = arith.constant -1 : i32
    %136 = vector.broadcast %c-1_i32_53 : i32 to vector<1x256xi32>
    %137 = arith.addi %2, %136 : vector<1x256xi32>
    %c16_i32_54 = arith.constant 16 : i32
    %138 = vector.broadcast %c16_i32_54 : i32 to vector<1x256xi32>
    %139 = arith.cmpi slt, %137, %138 : vector<1x256xi32>
    %140 = arith.andi %135, %139 : vector<1x256xi1>
    %c16_i32_55 = arith.constant 16 : i32
    %141 = vector.broadcast %c16_i32_55 : i32 to vector<1x256xi32>
    %142 = arith.addi %5, %141 : vector<1x256xi32>
    %c0_i32_56 = arith.constant 0 : i32
    %143 = vector.broadcast %c0_i32_56 : i32 to vector<1x256xi32>
    %144 = arith.cmpi sge, %142, %143 : vector<1x256xi32>
    %c16_i32_57 = arith.constant 16 : i32
    %145 = vector.broadcast %c16_i32_57 : i32 to vector<1x256xi32>
    %146 = arith.addi %5, %145 : vector<1x256xi32>
    %c256_i32_58 = arith.constant 256 : i32
    %147 = vector.broadcast %c256_i32_58 : i32 to vector<1x256xi32>
    %148 = arith.cmpi slt, %146, %147 : vector<1x256xi32>
    %149 = arith.andi %144, %148 : vector<1x256xi1>
    %150 = arith.andi %140, %149 : vector<1x256xi1>
    %cst_59 = arith.constant 0.000000e+00 : f32
    %151 = vector.shape_cast %150 : vector<1x256xi1> to vector<1x256xi1>
    %152 = vector.broadcast %151 : vector<1x256xi1> to vector<4x256xi1>
    %153 = vector.broadcast %cst_59 : f32 to vector<4x256xf32>
    %154 = arith.select %152, %131, %153 : vector<4x256xi1>, vector<4x256xf32>
    %155 = vector.broadcast %130 : vector<4x1xf32> to vector<4x256xf32>
    %156 = arith.mulf %155, %154 : vector<4x256xf32>
    %157 = arith.addf %129, %156 : vector<4x256xf32>
    %c0_60 = arith.constant 0 : index
    %c7 = arith.constant 7 : index
    %158 = vector.load %arg4[%c0_60, %c7] : memref<16x9xf32, #tpu.memory_space<vmem>>, vector<4x1xf32>
    %c0_61 = arith.constant 0 : index
    %c144 = arith.constant 144 : index
    %159 = vector.load %arg8[%c0_61, %c144] : memref<56x512xf32, #tpu.memory_space<vmem>>, vector<4x256xf32>
    %c16_i32_62 = arith.constant 16 : i32
    %160 = vector.broadcast %c16_i32_62 : i32 to vector<1x256xi32>
    %161 = arith.addi %5, %160 : vector<1x256xi32>
    %c0_i32_63 = arith.constant 0 : i32
    %162 = vector.broadcast %c0_i32_63 : i32 to vector<1x256xi32>
    %163 = arith.cmpi sge, %161, %162 : vector<1x256xi32>
    %c16_i32_64 = arith.constant 16 : i32
    %164 = vector.broadcast %c16_i32_64 : i32 to vector<1x256xi32>
    %165 = arith.addi %5, %164 : vector<1x256xi32>
    %c256_i32_65 = arith.constant 256 : i32
    %166 = vector.broadcast %c256_i32_65 : i32 to vector<1x256xi32>
    %167 = arith.cmpi slt, %165, %166 : vector<1x256xi32>
    %168 = arith.andi %163, %167 : vector<1x256xi1>
    %cst_66 = arith.constant 0.000000e+00 : f32
    %169 = vector.shape_cast %168 : vector<1x256xi1> to vector<1x256xi1>
    %170 = vector.broadcast %169 : vector<1x256xi1> to vector<4x256xi1>
    %171 = vector.broadcast %cst_66 : f32 to vector<4x256xf32>
    %172 = arith.select %170, %159, %171 : vector<4x256xi1>, vector<4x256xf32>
    %173 = vector.broadcast %158 : vector<4x1xf32> to vector<4x256xf32>
    %174 = arith.mulf %173, %172 : vector<4x256xf32>
    %175 = arith.addf %157, %174 : vector<4x256xf32>
    %c0_67 = arith.constant 0 : index
    %c8 = arith.constant 8 : index
    %176 = vector.load %arg4[%c0_67, %c8] : memref<16x9xf32, #tpu.memory_space<vmem>>, vector<4x1xf32>
    %c0_68 = arith.constant 0 : index
    %c145 = arith.constant 145 : index
    %177 = vector.load %arg8[%c0_68, %c145] : memref<56x512xf32, #tpu.memory_space<vmem>>, vector<4x256xf32>
    %c1_i32_69 = arith.constant 1 : i32
    %178 = vector.broadcast %c1_i32_69 : i32 to vector<1x256xi32>
    %179 = arith.addi %2, %178 : vector<1x256xi32>
    %c0_i32_70 = arith.constant 0 : i32
    %180 = vector.broadcast %c0_i32_70 : i32 to vector<1x256xi32>
    %181 = arith.cmpi sge, %179, %180 : vector<1x256xi32>
    %c1_i32_71 = arith.constant 1 : i32
    %182 = vector.broadcast %c1_i32_71 : i32 to vector<1x256xi32>
    %183 = arith.addi %2, %182 : vector<1x256xi32>
    %c16_i32_72 = arith.constant 16 : i32
    %184 = vector.broadcast %c16_i32_72 : i32 to vector<1x256xi32>
    %185 = arith.cmpi slt, %183, %184 : vector<1x256xi32>
    %186 = arith.andi %181, %185 : vector<1x256xi1>
    %c16_i32_73 = arith.constant 16 : i32
    %187 = vector.broadcast %c16_i32_73 : i32 to vector<1x256xi32>
    %188 = arith.addi %5, %187 : vector<1x256xi32>
    %c0_i32_74 = arith.constant 0 : i32
    %189 = vector.broadcast %c0_i32_74 : i32 to vector<1x256xi32>
    %190 = arith.cmpi sge, %188, %189 : vector<1x256xi32>
    %c16_i32_75 = arith.constant 16 : i32
    %191 = vector.broadcast %c16_i32_75 : i32 to vector<1x256xi32>
    %192 = arith.addi %5, %191 : vector<1x256xi32>
    %c256_i32_76 = arith.constant 256 : i32
    %193 = vector.broadcast %c256_i32_76 : i32 to vector<1x256xi32>
    %194 = arith.cmpi slt, %192, %193 : vector<1x256xi32>
    %195 = arith.andi %190, %194 : vector<1x256xi1>
    %196 = arith.andi %186, %195 : vector<1x256xi1>
    %cst_77 = arith.constant 0.000000e+00 : f32
    %197 = vector.shape_cast %196 : vector<1x256xi1> to vector<1x256xi1>
    %198 = vector.broadcast %197 : vector<1x256xi1> to vector<4x256xi1>
    %199 = vector.broadcast %cst_77 : f32 to vector<4x256xf32>
    %200 = arith.select %198, %177, %199 : vector<4x256xi1>, vector<4x256xf32>
    %201 = vector.broadcast %176 : vector<4x1xf32> to vector<4x256xf32>
    %202 = arith.mulf %201, %200 : vector<4x256xf32>
    %203 = arith.addf %175, %202 : vector<4x256xf32>
    %c47 = arith.constant 47 : index
    %c0_78 = arith.constant 0 : index
    %204 = vector.load %arg6[%c47, %c0_78] : memref<79x1xf32, #tpu.memory_space<vmem>>, vector<4x1xf32>
    %205 = vector.broadcast %204 : vector<4x1xf32> to vector<4x256xf32>
    %206 = arith.addf %203, %205 : vector<4x256xf32>
    %c0_79 = arith.constant 0 : index
    %c0_80 = arith.constant 0 : index
    %c0_81 = arith.constant 0 : index
    %207 = vector.load %arg3[%c0_79, %c0_80, %c0_81] : memref<3x15x4xf32, #tpu.memory_space<vmem>>, vector<1x4x4xf32>
    %208 = vector.shape_cast %207 : vector<1x4x4xf32> to vector<4x4xf32>
    %c8_82 = arith.constant 8 : index
    %c112_83 = arith.constant 112 : index
    %209 = vector.load %arg8[%c8_82, %c112_83] : memref<56x512xf32, #tpu.memory_space<vmem>>, vector<4x256xf32>
    %cst_84 = arith.constant 0.000000e+00 : f32
    %210 = vector.shape_cast %53 : vector<1x256xi1> to vector<1x256xi1>
    %211 = vector.broadcast %210 : vector<1x256xi1> to vector<4x256xi1>
    %212 = vector.broadcast %cst_84 : f32 to vector<4x256xf32>
    %213 = arith.select %211, %209, %212 : vector<4x256xi1>, vector<4x256xf32>
    %cst_85 = arith.constant dense<0.000000e+00> : vector<4x256xf32>
    %214 = tpu.matmul %208, %213, %cst_85 {dimension_numbers = #tpu.dot_dimension_numbers<[1], [0], [0], [1], [0, 0, 1, 1], [], []>} : vector<4x4xf32>, vector<4x256xf32>, vector<4x256xf32> -> vector<4x256xf32>
    %c1_86 = arith.constant 1 : index
    %c0_87 = arith.constant 0 : index
    %c0_88 = arith.constant 0 : index
    %215 = vector.load %arg3[%c1_86, %c0_87, %c0_88] : memref<3x15x4xf32, #tpu.memory_space<vmem>>, vector<1x4x4xf32>
    %216 = vector.shape_cast %215 : vector<1x4x4xf32> to vector<4x4xf32>
    %c8_89 = arith.constant 8 : index
    %c128_90 = arith.constant 128 : index
    %217 = vector.load %arg8[%c8_89, %c128_90] : memref<56x512xf32, #tpu.memory_space<vmem>>, vector<4x256xf32>
    %cst_91 = arith.constant dense<0.000000e+00> : vector<4x256xf32>
    %218 = tpu.matmul %216, %217, %cst_91 {dimension_numbers = #tpu.dot_dimension_numbers<[1], [0], [0], [1], [0, 0, 1, 1], [], []>} : vector<4x4xf32>, vector<4x256xf32>, vector<4x256xf32> -> vector<4x256xf32>
    %219 = arith.addf %214, %218 : vector<4x256xf32>
    %c2_92 = arith.constant 2 : index
    %c0_93 = arith.constant 0 : index
    %c0_94 = arith.constant 0 : index
    %220 = vector.load %arg3[%c2_92, %c0_93, %c0_94] : memref<3x15x4xf32, #tpu.memory_space<vmem>>, vector<1x4x4xf32>
    %221 = vector.shape_cast %220 : vector<1x4x4xf32> to vector<4x4xf32>
    %c8_95 = arith.constant 8 : index
    %c144_96 = arith.constant 144 : index
    %222 = vector.load %arg8[%c8_95, %c144_96] : memref<56x512xf32, #tpu.memory_space<vmem>>, vector<4x256xf32>
    %cst_97 = arith.constant 0.000000e+00 : f32
    %223 = vector.shape_cast %168 : vector<1x256xi1> to vector<1x256xi1>
    %224 = vector.broadcast %223 : vector<1x256xi1> to vector<4x256xi1>
    %225 = vector.broadcast %cst_97 : f32 to vector<4x256xf32>
    %226 = arith.select %224, %222, %225 : vector<4x256xi1>, vector<4x256xf32>
    %cst_98 = arith.constant dense<0.000000e+00> : vector<4x256xf32>
    %227 = tpu.matmul %221, %226, %cst_98 {dimension_numbers = #tpu.dot_dimension_numbers<[1], [0], [0], [1], [0, 0, 1, 1], [], []>} : vector<4x4xf32>, vector<4x256xf32>, vector<4x256xf32> -> vector<4x256xf32>
    %228 = arith.addf %219, %227 : vector<4x256xf32>
    %c32 = arith.constant 32 : index
    %c0_99 = arith.constant 0 : index
    %229 = vector.load %arg6[%c32, %c0_99] : memref<79x1xf32, #tpu.memory_space<vmem>>, vector<4x1xf32>
    %230 = vector.broadcast %229 : vector<4x1xf32> to vector<4x256xf32>
    %231 = arith.addf %228, %230 : vector<4x256xf32>
    %cst_100 = arith.constant 0.000000e+00 : f32
    %232 = vector.broadcast %cst_100 : f32 to vector<4x256xf32>
    %233 = arith.maximumf %231, %232 : vector<4x256xf32>
    %c32_101 = arith.constant 32 : index
    %c128_102 = arith.constant 128 : index
    %234 = vector.load %arg8[%c32_101, %c128_102] : memref<56x512xf32, #tpu.memory_space<vmem>>, vector<4x256xf32>
    tpu.vector_store %arg8[%c32_101, %c128_102], %233 {strides = array<i32>} : memref<56x512xf32, #tpu.memory_space<vmem>>, vector<4x256xf32>,
    %c0_103 = arith.constant 0 : index
    %c4_104 = arith.constant 4 : index
    %c0_105 = arith.constant 0 : index
    %235 = vector.load %arg3[%c0_103, %c4_104, %c0_105] : memref<3x15x4xf32, #tpu.memory_space<vmem>>, vector<1x4x4xf32>
    %236 = vector.shape_cast %235 : vector<1x4x4xf32> to vector<4x4xf32>
    %c16 = arith.constant 16 : index
    %c127_106 = arith.constant 127 : index
    %237 = vector.load %arg8[%c16, %c127_106] : memref<56x512xf32, #tpu.memory_space<vmem>>, vector<4x256xf32>
    %cst_107 = arith.constant 0.000000e+00 : f32
    %238 = vector.shape_cast %99 : vector<1x256xi1> to vector<1x256xi1>
    %239 = vector.broadcast %238 : vector<1x256xi1> to vector<4x256xi1>
    %240 = vector.broadcast %cst_107 : f32 to vector<4x256xf32>
    %241 = arith.select %239, %237, %240 : vector<4x256xi1>, vector<4x256xf32>
    %cst_108 = arith.constant dense<0.000000e+00> : vector<4x256xf32>
    %242 = tpu.matmul %236, %241, %cst_108 {dimension_numbers = #tpu.dot_dimension_numbers<[1], [0], [0], [1], [0, 0, 1, 1], [], []>} : vector<4x4xf32>, vector<4x256xf32>, vector<4x256xf32> -> vector<4x256xf32>
    %c1_109 = arith.constant 1 : index
    %c4_110 = arith.constant 4 : index
    %c0_111 = arith.constant 0 : index
    %243 = vector.load %arg3[%c1_109, %c4_110, %c0_111] : memref<3x15x4xf32, #tpu.memory_space<vmem>>, vector<1x4x4xf32>
    %244 = vector.shape_cast %243 : vector<1x4x4xf32> to vector<4x4xf32>
    %c16_112 = arith.constant 16 : index
    %c128_113 = arith.constant 128 : index
    %245 = vector.load %arg8[%c16_112, %c128_113] : memref<56x512xf32, #tpu.memory_space<vmem>>, vector<4x256xf32>
    %cst_114 = arith.constant dense<0.000000e+00> : vector<4x256xf32>
    %246 = tpu.matmul %244, %245, %cst_114 {dimension_numbers = #tpu.dot_dimension_numbers<[1], [0], [0], [1], [0, 0, 1, 1], [], []>} : vector<4x4xf32>, vector<4x256xf32>, vector<4x256xf32> -> vector<4x256xf32>
    %247 = arith.addf %242, %246 : vector<4x256xf32>
    %c2_115 = arith.constant 2 : index
    %c4_116 = arith.constant 4 : index
    %c0_117 = arith.constant 0 : index
    %248 = vector.load %arg3[%c2_115, %c4_116, %c0_117] : memref<3x15x4xf32, #tpu.memory_space<vmem>>, vector<1x4x4xf32>
    %249 = vector.shape_cast %248 : vector<1x4x4xf32> to vector<4x4xf32>
    %c16_118 = arith.constant 16 : index
    %c129_119 = arith.constant 129 : index
    %250 = vector.load %arg8[%c16_118, %c129_119] : memref<56x512xf32, #tpu.memory_space<vmem>>, vector<4x256xf32>
    %cst_120 = arith.constant 0.000000e+00 : f32
    %251 = vector.shape_cast %122 : vector<1x256xi1> to vector<1x256xi1>
    %252 = vector.broadcast %251 : vector<1x256xi1> to vector<4x256xi1>
    %253 = vector.broadcast %cst_120 : f32 to vector<4x256xf32>
    %254 = arith.select %252, %250, %253 : vector<4x256xi1>, vector<4x256xf32>
    %cst_121 = arith.constant dense<0.000000e+00> : vector<4x256xf32>
    %255 = tpu.matmul %249, %254, %cst_121 {dimension_numbers = #tpu.dot_dimension_numbers<[1], [0], [0], [1], [0, 0, 1, 1], [], []>} : vector<4x4xf32>, vector<4x256xf32>, vector<4x256xf32> -> vector<4x256xf32>
    %256 = arith.addf %247, %255 : vector<4x256xf32>
    %c36 = arith.constant 36 : index
    %c0_122 = arith.constant 0 : index
    %257 = vector.load %arg6[%c36, %c0_122] : memref<79x1xf32, #tpu.memory_space<vmem>>, vector<4x1xf32>
    %258 = vector.broadcast %257 : vector<4x1xf32> to vector<4x256xf32>
    %259 = arith.addf %256, %258 : vector<4x256xf32>
    %cst_123 = arith.constant 0.000000e+00 : f32
    %260 = vector.broadcast %cst_123 : f32 to vector<4x256xf32>
    %261 = arith.maximumf %259, %260 : vector<4x256xf32>
    %c36_124 = arith.constant 36 : index
    %c128_125 = arith.constant 128 : index
    %262 = vector.load %arg8[%c36_124, %c128_125] : memref<56x512xf32, #tpu.memory_space<vmem>>, vector<4x256xf32>
    tpu.vector_store %arg8[%c36_124, %c128_125], %261 {strides = array<i32>} : memref<56x512xf32, #tpu.memory_space<vmem>>, vector<4x256xf32>,
    %c4_126 = arith.constant 4 : index
    %c0_127 = arith.constant 0 : index
    %263 = vector.load %arg4[%c4_126, %c0_127] : memref<16x9xf32, #tpu.memory_space<vmem>>, vector<8x1xf32>
    %c32_128 = arith.constant 32 : index
    %c77 = arith.constant 77 : index
    %264 = vector.load %arg8[%c32_128, %c77] : memref<56x512xf32, #tpu.memory_space<vmem>>, vector<8x256xf32>
    %c-3_i32 = arith.constant -3 : i32
    %265 = vector.broadcast %c-3_i32 : i32 to vector<1x256xi32>
    %266 = arith.addi %2, %265 : vector<1x256xi32>
    %c0_i32_129 = arith.constant 0 : i32
    %267 = vector.broadcast %c0_i32_129 : i32 to vector<1x256xi32>
    %268 = arith.cmpi sge, %266, %267 : vector<1x256xi32>
    %c-3_i32_130 = arith.constant -3 : i32
    %269 = vector.broadcast %c-3_i32_130 : i32 to vector<1x256xi32>
    %270 = arith.addi %2, %269 : vector<1x256xi32>
    %c16_i32_131 = arith.constant 16 : i32
    %271 = vector.broadcast %c16_i32_131 : i32 to vector<1x256xi32>
    %272 = arith.cmpi slt, %270, %271 : vector<1x256xi32>
    %273 = arith.andi %268, %272 : vector<1x256xi1>
    %c-48_i32 = arith.constant -48 : i32
    %274 = vector.broadcast %c-48_i32 : i32 to vector<1x256xi32>
    %275 = arith.addi %5, %274 : vector<1x256xi32>
    %c0_i32_132 = arith.constant 0 : i32
    %276 = vector.broadcast %c0_i32_132 : i32 to vector<1x256xi32>
    %277 = arith.cmpi sge, %275, %276 : vector<1x256xi32>
    %c-48_i32_133 = arith.constant -48 : i32
    %278 = vector.broadcast %c-48_i32_133 : i32 to vector<1x256xi32>
    %279 = arith.addi %5, %278 : vector<1x256xi32>
    %c256_i32_134 = arith.constant 256 : i32
    %280 = vector.broadcast %c256_i32_134 : i32 to vector<1x256xi32>
    %281 = arith.cmpi slt, %279, %280 : vector<1x256xi32>
    %282 = arith.andi %277, %281 : vector<1x256xi1>
    %283 = arith.andi %273, %282 : vector<1x256xi1>
    %cst_135 = arith.constant 0.000000e+00 : f32
    %284 = vector.shape_cast %283 : vector<1x256xi1> to vector<1x256xi1>
    %285 = vector.broadcast %284 : vector<1x256xi1> to vector<8x256xi1>
    %286 = vector.broadcast %cst_135 : f32 to vector<8x256xf32>
    %287 = arith.select %285, %264, %286 : vector<8x256xi1>, vector<8x256xf32>
    %288 = vector.broadcast %263 : vector<8x1xf32> to vector<8x256xf32>
    %289 = arith.mulf %288, %287 : vector<8x256xf32>
    %c4_136 = arith.constant 4 : index
    %c1_137 = arith.constant 1 : index
    %290 = vector.load %arg4[%c4_136, %c1_137] : memref<16x9xf32, #tpu.memory_space<vmem>>, vector<8x1xf32>
    %c32_138 = arith.constant 32 : index
    %c80 = arith.constant 80 : index
    %291 = vector.load %arg8[%c32_138, %c80] : memref<56x512xf32, #tpu.memory_space<vmem>>, vector<8x256xf32>
    %c-48_i32_139 = arith.constant -48 : i32
    %292 = vector.broadcast %c-48_i32_139 : i32 to vector<1x256xi32>
    %293 = arith.addi %5, %292 : vector<1x256xi32>
    %c0_i32_140 = arith.constant 0 : i32
    %294 = vector.broadcast %c0_i32_140 : i32 to vector<1x256xi32>
    %295 = arith.cmpi sge, %293, %294 : vector<1x256xi32>
    %c-48_i32_141 = arith.constant -48 : i32
    %296 = vector.broadcast %c-48_i32_141 : i32 to vector<1x256xi32>
    %297 = arith.addi %5, %296 : vector<1x256xi32>
    %c256_i32_142 = arith.constant 256 : i32
    %298 = vector.broadcast %c256_i32_142 : i32 to vector<1x256xi32>
    %299 = arith.cmpi slt, %297, %298 : vector<1x256xi32>
    %300 = arith.andi %295, %299 : vector<1x256xi1>
    %cst_143 = arith.constant 0.000000e+00 : f32
    %301 = vector.shape_cast %300 : vector<1x256xi1> to vector<1x256xi1>
    %302 = vector.broadcast %301 : vector<1x256xi1> to vector<8x256xi1>
    %303 = vector.broadcast %cst_143 : f32 to vector<8x256xf32>
    %304 = arith.select %302, %291, %303 : vector<8x256xi1>, vector<8x256xf32>
    %305 = vector.broadcast %290 : vector<8x1xf32> to vector<8x256xf32>
    %306 = arith.mulf %305, %304 : vector<8x256xf32>
    %307 = arith.addf %289, %306 : vector<8x256xf32>
    %c4_144 = arith.constant 4 : index
    %c2_145 = arith.constant 2 : index
    %308 = vector.load %arg4[%c4_144, %c2_145] : memref<16x9xf32, #tpu.memory_space<vmem>>, vector<8x1xf32>
    %c32_146 = arith.constant 32 : index
    %c83 = arith.constant 83 : index
    %309 = vector.load %arg8[%c32_146, %c83] : memref<56x512xf32, #tpu.memory_space<vmem>>, vector<8x256xf32>
    %c3_i32 = arith.constant 3 : i32
    %310 = vector.broadcast %c3_i32 : i32 to vector<1x256xi32>
    %311 = arith.addi %2, %310 : vector<1x256xi32>
    %c0_i32_147 = arith.constant 0 : i32
    %312 = vector.broadcast %c0_i32_147 : i32 to vector<1x256xi32>
    %313 = arith.cmpi sge, %311, %312 : vector<1x256xi32>
    %c3_i32_148 = arith.constant 3 : i32
    %314 = vector.broadcast %c3_i32_148 : i32 to vector<1x256xi32>
    %315 = arith.addi %2, %314 : vector<1x256xi32>
    %c16_i32_149 = arith.constant 16 : i32
    %316 = vector.broadcast %c16_i32_149 : i32 to vector<1x256xi32>
    %317 = arith.cmpi slt, %315, %316 : vector<1x256xi32>
    %318 = arith.andi %313, %317 : vector<1x256xi1>
    %c-48_i32_150 = arith.constant -48 : i32
    %319 = vector.broadcast %c-48_i32_150 : i32 to vector<1x256xi32>
    %320 = arith.addi %5, %319 : vector<1x256xi32>
    %c0_i32_151 = arith.constant 0 : i32
    %321 = vector.broadcast %c0_i32_151 : i32 to vector<1x256xi32>
    %322 = arith.cmpi sge, %320, %321 : vector<1x256xi32>
    %c-48_i32_152 = arith.constant -48 : i32
    %323 = vector.broadcast %c-48_i32_152 : i32 to vector<1x256xi32>
    %324 = arith.addi %5, %323 : vector<1x256xi32>
    %c256_i32_153 = arith.constant 256 : i32
    %325 = vector.broadcast %c256_i32_153 : i32 to vector<1x256xi32>
    %326 = arith.cmpi slt, %324, %325 : vector<1x256xi32>
    %327 = arith.andi %322, %326 : vector<1x256xi1>
    %328 = arith.andi %318, %327 : vector<1x256xi1>
    %cst_154 = arith.constant 0.000000e+00 : f32
    %329 = vector.shape_cast %328 : vector<1x256xi1> to vector<1x256xi1>
    %330 = vector.broadcast %329 : vector<1x256xi1> to vector<8x256xi1>
    %331 = vector.broadcast %cst_154 : f32 to vector<8x256xf32>
    %332 = arith.select %330, %309, %331 : vector<8x256xi1>, vector<8x256xf32>
    %333 = vector.broadcast %308 : vector<8x1xf32> to vector<8x256xf32>
    %334 = arith.mulf %333, %332 : vector<8x256xf32>
    %335 = arith.addf %307, %334 : vector<8x256xf32>
    %c4_155 = arith.constant 4 : index
    %c3_156 = arith.constant 3 : index
    %336 = vector.load %arg4[%c4_155, %c3_156] : memref<16x9xf32, #tpu.memory_space<vmem>>, vector<8x1xf32>
    %c32_157 = arith.constant 32 : index
    %c125 = arith.constant 125 : index
    %337 = vector.load %arg8[%c32_157, %c125] : memref<56x512xf32, #tpu.memory_space<vmem>>, vector<8x256xf32>
    %c-3_i32_158 = arith.constant -3 : i32
    %338 = vector.broadcast %c-3_i32_158 : i32 to vector<1x256xi32>
    %339 = arith.addi %2, %338 : vector<1x256xi32>
    %c0_i32_159 = arith.constant 0 : i32
    %340 = vector.broadcast %c0_i32_159 : i32 to vector<1x256xi32>
    %341 = arith.cmpi sge, %339, %340 : vector<1x256xi32>
    %c-3_i32_160 = arith.constant -3 : i32
    %342 = vector.broadcast %c-3_i32_160 : i32 to vector<1x256xi32>
    %343 = arith.addi %2, %342 : vector<1x256xi32>
    %c16_i32_161 = arith.constant 16 : i32
    %344 = vector.broadcast %c16_i32_161 : i32 to vector<1x256xi32>
    %345 = arith.cmpi slt, %343, %344 : vector<1x256xi32>
    %346 = arith.andi %341, %345 : vector<1x256xi1>
    %cst_162 = arith.constant 0.000000e+00 : f32
    %347 = vector.shape_cast %346 : vector<1x256xi1> to vector<1x256xi1>
    %348 = vector.broadcast %347 : vector<1x256xi1> to vector<8x256xi1>
    %349 = vector.broadcast %cst_162 : f32 to vector<8x256xf32>
    %350 = arith.select %348, %337, %349 : vector<8x256xi1>, vector<8x256xf32>
    %351 = vector.broadcast %336 : vector<8x1xf32> to vector<8x256xf32>
    %352 = arith.mulf %351, %350 : vector<8x256xf32>
    %353 = arith.addf %335, %352 : vector<8x256xf32>
    %c4_163 = arith.constant 4 : index
    %c4_164 = arith.constant 4 : index
    %354 = vector.load %arg4[%c4_163, %c4_164] : memref<16x9xf32, #tpu.memory_space<vmem>>, vector<8x1xf32>
    %c32_165 = arith.constant 32 : index
    %c128_166 = arith.constant 128 : index
    %355 = vector.load %arg8[%c32_165, %c128_166] : memref<56x512xf32, #tpu.memory_space<vmem>>, vector<8x256xf32>
    %356 = vector.broadcast %354 : vector<8x1xf32> to vector<8x256xf32>
    %357 = arith.mulf %356, %355 : vector<8x256xf32>
    %358 = arith.addf %353, %357 : vector<8x256xf32>
    %c4_167 = arith.constant 4 : index
    %c5_168 = arith.constant 5 : index
    %359 = vector.load %arg4[%c4_167, %c5_168] : memref<16x9xf32, #tpu.memory_space<vmem>>, vector<8x1xf32>
    %c32_169 = arith.constant 32 : index
    %c131 = arith.constant 131 : index
    %360 = vector.load %arg8[%c32_169, %c131] : memref<56x512xf32, #tpu.memory_space<vmem>>, vector<8x256xf32>
    %c3_i32_170 = arith.constant 3 : i32
    %361 = vector.broadcast %c3_i32_170 : i32 to vector<1x256xi32>
    %362 = arith.addi %2, %361 : vector<1x256xi32>
    %c0_i32_171 = arith.constant 0 : i32
    %363 = vector.broadcast %c0_i32_171 : i32 to vector<1x256xi32>
    %364 = arith.cmpi sge, %362, %363 : vector<1x256xi32>
    %c3_i32_172 = arith.constant 3 : i32
    %365 = vector.broadcast %c3_i32_172 : i32 to vector<1x256xi32>
    %366 = arith.addi %2, %365 : vector<1x256xi32>
    %c16_i32_173 = arith.constant 16 : i32
    %367 = vector.broadcast %c16_i32_173 : i32 to vector<1x256xi32>
    %368 = arith.cmpi slt, %366, %367 : vector<1x256xi32>
    %369 = arith.andi %364, %368 : vector<1x256xi1>
    %cst_174 = arith.constant 0.000000e+00 : f32
    %370 = vector.shape_cast %369 : vector<1x256xi1> to vector<1x256xi1>
    %371 = vector.broadcast %370 : vector<1x256xi1> to vector<8x256xi1>
    %372 = vector.broadcast %cst_174 : f32 to vector<8x256xf32>
    %373 = arith.select %371, %360, %372 : vector<8x256xi1>, vector<8x256xf32>
    %374 = vector.broadcast %359 : vector<8x1xf32> to vector<8x256xf32>
    %375 = arith.mulf %374, %373 : vector<8x256xf32>
    %376 = arith.addf %358, %375 : vector<8x256xf32>
    %c4_175 = arith.constant 4 : index
    %c6_176 = arith.constant 6 : index
    %377 = vector.load %arg4[%c4_175, %c6_176] : memref<16x9xf32, #tpu.memory_space<vmem>>, vector<8x1xf32>
    %c32_177 = arith.constant 32 : index
    %c173 = arith.constant 173 : index
    %378 = vector.load %arg8[%c32_177, %c173] : memref<56x512xf32, #tpu.memory_space<vmem>>, vector<8x256xf32>
    %c-3_i32_178 = arith.constant -3 : i32
    %379 = vector.broadcast %c-3_i32_178 : i32 to vector<1x256xi32>
    %380 = arith.addi %2, %379 : vector<1x256xi32>
    %c0_i32_179 = arith.constant 0 : i32
    %381 = vector.broadcast %c0_i32_179 : i32 to vector<1x256xi32>
    %382 = arith.cmpi sge, %380, %381 : vector<1x256xi32>
    %c-3_i32_180 = arith.constant -3 : i32
    %383 = vector.broadcast %c-3_i32_180 : i32 to vector<1x256xi32>
    %384 = arith.addi %2, %383 : vector<1x256xi32>
    %c16_i32_181 = arith.constant 16 : i32
    %385 = vector.broadcast %c16_i32_181 : i32 to vector<1x256xi32>
    %386 = arith.cmpi slt, %384, %385 : vector<1x256xi32>
    %387 = arith.andi %382, %386 : vector<1x256xi1>
    %c48_i32 = arith.constant 48 : i32
    %388 = vector.broadcast %c48_i32 : i32 to vector<1x256xi32>
    %389 = arith.addi %5, %388 : vector<1x256xi32>
    %c0_i32_182 = arith.constant 0 : i32
    %390 = vector.broadcast %c0_i32_182 : i32 to vector<1x256xi32>
    %391 = arith.cmpi sge, %389, %390 : vector<1x256xi32>
    %c48_i32_183 = arith.constant 48 : i32
    %392 = vector.broadcast %c48_i32_183 : i32 to vector<1x256xi32>
    %393 = arith.addi %5, %392 : vector<1x256xi32>
    %c256_i32_184 = arith.constant 256 : i32
    %394 = vector.broadcast %c256_i32_184 : i32 to vector<1x256xi32>
    %395 = arith.cmpi slt, %393, %394 : vector<1x256xi32>
    %396 = arith.andi %391, %395 : vector<1x256xi1>
    %397 = arith.andi %387, %396 : vector<1x256xi1>
    %cst_185 = arith.constant 0.000000e+00 : f32
    %398 = vector.shape_cast %397 : vector<1x256xi1> to vector<1x256xi1>
    %399 = vector.broadcast %398 : vector<1x256xi1> to vector<8x256xi1>
    %400 = vector.broadcast %cst_185 : f32 to vector<8x256xf32>
    %401 = arith.select %399, %378, %400 : vector<8x256xi1>, vector<8x256xf32>
    %402 = vector.broadcast %377 : vector<8x1xf32> to vector<8x256xf32>
    %403 = arith.mulf %402, %401 : vector<8x256xf32>
    %404 = arith.addf %376, %403 : vector<8x256xf32>
    %c4_186 = arith.constant 4 : index
    %c7_187 = arith.constant 7 : index
    %405 = vector.load %arg4[%c4_186, %c7_187] : memref<16x9xf32, #tpu.memory_space<vmem>>, vector<8x1xf32>
    %c32_188 = arith.constant 32 : index
    %c176 = arith.constant 176 : index
    %406 = vector.load %arg8[%c32_188, %c176] : memref<56x512xf32, #tpu.memory_space<vmem>>, vector<8x256xf32>
    %c48_i32_189 = arith.constant 48 : i32
    %407 = vector.broadcast %c48_i32_189 : i32 to vector<1x256xi32>
    %408 = arith.addi %5, %407 : vector<1x256xi32>
    %c0_i32_190 = arith.constant 0 : i32
    %409 = vector.broadcast %c0_i32_190 : i32 to vector<1x256xi32>
    %410 = arith.cmpi sge, %408, %409 : vector<1x256xi32>
    %c48_i32_191 = arith.constant 48 : i32
    %411 = vector.broadcast %c48_i32_191 : i32 to vector<1x256xi32>
    %412 = arith.addi %5, %411 : vector<1x256xi32>
    %c256_i32_192 = arith.constant 256 : i32
    %413 = vector.broadcast %c256_i32_192 : i32 to vector<1x256xi32>
    %414 = arith.cmpi slt, %412, %413 : vector<1x256xi32>
    %415 = arith.andi %410, %414 : vector<1x256xi1>
    %cst_193 = arith.constant 0.000000e+00 : f32
    %416 = vector.shape_cast %415 : vector<1x256xi1> to vector<1x256xi1>
    %417 = vector.broadcast %416 : vector<1x256xi1> to vector<8x256xi1>
    %418 = vector.broadcast %cst_193 : f32 to vector<8x256xf32>
    %419 = arith.select %417, %406, %418 : vector<8x256xi1>, vector<8x256xf32>
    %420 = vector.broadcast %405 : vector<8x1xf32> to vector<8x256xf32>
    %421 = arith.mulf %420, %419 : vector<8x256xf32>
    %422 = arith.addf %404, %421 : vector<8x256xf32>
    %c4_194 = arith.constant 4 : index
    %c8_195 = arith.constant 8 : index
    %423 = vector.load %arg4[%c4_194, %c8_195] : memref<16x9xf32, #tpu.memory_space<vmem>>, vector<8x1xf32>
    %c32_196 = arith.constant 32 : index
    %c179 = arith.constant 179 : index
    %424 = vector.load %arg8[%c32_196, %c179] : memref<56x512xf32, #tpu.memory_space<vmem>>, vector<8x256xf32>
    %c3_i32_197 = arith.constant 3 : i32
    %425 = vector.broadcast %c3_i32_197 : i32 to vector<1x256xi32>
    %426 = arith.addi %2, %425 : vector<1x256xi32>
    %c0_i32_198 = arith.constant 0 : i32
    %427 = vector.broadcast %c0_i32_198 : i32 to vector<1x256xi32>
    %428 = arith.cmpi sge, %426, %427 : vector<1x256xi32>
    %c3_i32_199 = arith.constant 3 : i32
    %429 = vector.broadcast %c3_i32_199 : i32 to vector<1x256xi32>
    %430 = arith.addi %2, %429 : vector<1x256xi32>
    %c16_i32_200 = arith.constant 16 : i32
    %431 = vector.broadcast %c16_i32_200 : i32 to vector<1x256xi32>
    %432 = arith.cmpi slt, %430, %431 : vector<1x256xi32>
    %433 = arith.andi %428, %432 : vector<1x256xi1>
    %c48_i32_201 = arith.constant 48 : i32
    %434 = vector.broadcast %c48_i32_201 : i32 to vector<1x256xi32>
    %435 = arith.addi %5, %434 : vector<1x256xi32>
    %c0_i32_202 = arith.constant 0 : i32
    %436 = vector.broadcast %c0_i32_202 : i32 to vector<1x256xi32>
    %437 = arith.cmpi sge, %435, %436 : vector<1x256xi32>
    %c48_i32_203 = arith.constant 48 : i32
    %438 = vector.broadcast %c48_i32_203 : i32 to vector<1x256xi32>
    %439 = arith.addi %5, %438 : vector<1x256xi32>
    %c256_i32_204 = arith.constant 256 : i32
    %440 = vector.broadcast %c256_i32_204 : i32 to vector<1x256xi32>
    %441 = arith.cmpi slt, %439, %440 : vector<1x256xi32>
    %442 = arith.andi %437, %441 : vector<1x256xi1>
    %443 = arith.andi %433, %442 : vector<1x256xi1>
    %cst_205 = arith.constant 0.000000e+00 : f32
    %444 = vector.shape_cast %443 : vector<1x256xi1> to vector<1x256xi1>
    %445 = vector.broadcast %444 : vector<1x256xi1> to vector<8x256xi1>
    %446 = vector.broadcast %cst_205 : f32 to vector<8x256xf32>
    %447 = arith.select %445, %424, %446 : vector<8x256xi1>, vector<8x256xf32>
    %448 = vector.broadcast %423 : vector<8x1xf32> to vector<8x256xf32>
    %449 = arith.mulf %448, %447 : vector<8x256xf32>
    %450 = arith.addf %422, %449 : vector<8x256xf32>
    %c51 = arith.constant 51 : index
    %c0_206 = arith.constant 0 : index
    %451 = vector.load %arg6[%c51, %c0_206] : memref<79x1xf32, #tpu.memory_space<vmem>>, vector<8x1xf32>
    %452 = vector.broadcast %451 : vector<8x1xf32> to vector<8x256xf32>
    %453 = arith.addf %450, %452 : vector<8x256xf32>
    %c0_207 = arith.constant 0 : index
    %c8_208 = arith.constant 8 : index
    %c0_209 = arith.constant 0 : index
    %454 = vector.load %arg3[%c0_207, %c8_208, %c0_209] : memref<3x15x4xf32, #tpu.memory_space<vmem>>, vector<1x3x2xf32>
    %455 = vector.shape_cast %454 : vector<1x3x2xf32> to vector<3x2xf32>
    %c24 = arith.constant 24 : index
    %c127_210 = arith.constant 127 : index
    %456 = vector.load %arg8[%c24, %c127_210] : memref<56x512xf32, #tpu.memory_space<vmem>>, vector<2x256xf32>
    %cst_211 = arith.constant 0.000000e+00 : f32
    %457 = vector.shape_cast %99 : vector<1x256xi1> to vector<1x256xi1>
    %458 = vector.broadcast %457 : vector<1x256xi1> to vector<2x256xi1>
    %459 = vector.broadcast %cst_211 : f32 to vector<2x256xf32>
    %460 = arith.select %458, %456, %459 : vector<2x256xi1>, vector<2x256xf32>
    %cst_212 = arith.constant dense<0.000000e+00> : vector<3x256xf32>
    %461 = tpu.matmul %455, %460, %cst_212 {dimension_numbers = #tpu.dot_dimension_numbers<[1], [0], [0], [1], [0, 0, 1, 1], [], []>} : vector<3x2xf32>, vector<2x256xf32>, vector<3x256xf32> -> vector<3x256xf32>
    %c1_213 = arith.constant 1 : index
    %c8_214 = arith.constant 8 : index
    %c0_215 = arith.constant 0 : index
    %462 = vector.load %arg3[%c1_213, %c8_214, %c0_215] : memref<3x15x4xf32, #tpu.memory_space<vmem>>, vector<1x3x2xf32>
    %463 = vector.shape_cast %462 : vector<1x3x2xf32> to vector<3x2xf32>
    %c24_216 = arith.constant 24 : index
    %c128_217 = arith.constant 128 : index
    %464 = vector.load %arg8[%c24_216, %c128_217] : memref<56x512xf32, #tpu.memory_space<vmem>>, vector<2x256xf32>
    %cst_218 = arith.constant dense<0.000000e+00> : vector<3x256xf32>
    %465 = tpu.matmul %463, %464, %cst_218 {dimension_numbers = #tpu.dot_dimension_numbers<[1], [0], [0], [1], [0, 0, 1, 1], [], []>} : vector<3x2xf32>, vector<2x256xf32>, vector<3x256xf32> -> vector<3x256xf32>
    %466 = arith.addf %461, %465 : vector<3x256xf32>
    %c2_219 = arith.constant 2 : index
    %c8_220 = arith.constant 8 : index
    %c0_221 = arith.constant 0 : index
    %467 = vector.load %arg3[%c2_219, %c8_220, %c0_221] : memref<3x15x4xf32, #tpu.memory_space<vmem>>, vector<1x3x2xf32>
    %468 = vector.shape_cast %467 : vector<1x3x2xf32> to vector<3x2xf32>
    %c24_222 = arith.constant 24 : index
    %c129_223 = arith.constant 129 : index
    %469 = vector.load %arg8[%c24_222, %c129_223] : memref<56x512xf32, #tpu.memory_space<vmem>>, vector<2x256xf32>
    %cst_224 = arith.constant 0.000000e+00 : f32
    %470 = vector.shape_cast %122 : vector<1x256xi1> to vector<1x256xi1>
    %471 = vector.broadcast %470 : vector<1x256xi1> to vector<2x256xi1>
    %472 = vector.broadcast %cst_224 : f32 to vector<2x256xf32>
    %473 = arith.select %471, %469, %472 : vector<2x256xi1>, vector<2x256xf32>
    %cst_225 = arith.constant dense<0.000000e+00> : vector<3x256xf32>
    %474 = tpu.matmul %468, %473, %cst_225 {dimension_numbers = #tpu.dot_dimension_numbers<[1], [0], [0], [1], [0, 0, 1, 1], [], []>} : vector<3x2xf32>, vector<2x256xf32>, vector<3x256xf32> -> vector<3x256xf32>
    %475 = arith.addf %466, %474 : vector<3x256xf32>
    %c40 = arith.constant 40 : index
    %c0_226 = arith.constant 0 : index
    %476 = vector.load %arg6[%c40, %c0_226] : memref<79x1xf32, #tpu.memory_space<vmem>>, vector<3x1xf32>
    %477 = vector.broadcast %476 : vector<3x1xf32> to vector<3x256xf32>
    %478 = arith.addf %475, %477 : vector<3x256xf32>
    %cst_227 = arith.constant 0.000000e+00 : f32
    %479 = vector.broadcast %cst_227 : f32 to vector<3x256xf32>
    %480 = arith.maximumf %478, %479 : vector<3x256xf32>
    %c40_228 = arith.constant 40 : index
    %c128_229 = arith.constant 128 : index
    %481 = vector.load %arg8[%c40_228, %c128_229] : memref<56x512xf32, #tpu.memory_space<vmem>>, vector<3x256xf32>
    tpu.vector_store %arg8[%c40_228, %c128_229], %480 {strides = array<i32>} : memref<56x512xf32, #tpu.memory_space<vmem>>, vector<3x256xf32>,
    %c0_230 = arith.constant 0 : index
    %c11 = arith.constant 11 : index
    %c0_231 = arith.constant 0 : index
    %482 = vector.load %arg3[%c0_230, %c11, %c0_231] : memref<3x15x4xf32, #tpu.memory_space<vmem>>, vector<1x4x3xf32>
    %483 = vector.shape_cast %482 : vector<1x4x3xf32> to vector<4x3xf32>
    %c40_232 = arith.constant 40 : index
    %c112_233 = arith.constant 112 : index
    %484 = vector.load %arg8[%c40_232, %c112_233] : memref<56x512xf32, #tpu.memory_space<vmem>>, vector<3x256xf32>
    %cst_234 = arith.constant 0.000000e+00 : f32
    %485 = vector.shape_cast %53 : vector<1x256xi1> to vector<1x256xi1>
    %486 = vector.broadcast %485 : vector<1x256xi1> to vector<3x256xi1>
    %487 = vector.broadcast %cst_234 : f32 to vector<3x256xf32>
    %488 = arith.select %486, %484, %487 : vector<3x256xi1>, vector<3x256xf32>
    %cst_235 = arith.constant dense<0.000000e+00> : vector<4x256xf32>
    %489 = tpu.matmul %483, %488, %cst_235 {dimension_numbers = #tpu.dot_dimension_numbers<[1], [0], [0], [1], [0, 0, 1, 1], [], []>} : vector<4x3xf32>, vector<3x256xf32>, vector<4x256xf32> -> vector<4x256xf32>
    %c1_236 = arith.constant 1 : index
    %c11_237 = arith.constant 11 : index
    %c0_238 = arith.constant 0 : index
    %490 = vector.load %arg3[%c1_236, %c11_237, %c0_238] : memref<3x15x4xf32, #tpu.memory_space<vmem>>, vector<1x4x3xf32>
    %491 = vector.shape_cast %490 : vector<1x4x3xf32> to vector<4x3xf32>
    %c40_239 = arith.constant 40 : index
    %c128_240 = arith.constant 128 : index
    %492 = vector.load %arg8[%c40_239, %c128_240] : memref<56x512xf32, #tpu.memory_space<vmem>>, vector<3x256xf32>
    %cst_241 = arith.constant dense<0.000000e+00> : vector<4x256xf32>
    %493 = tpu.matmul %491, %492, %cst_241 {dimension_numbers = #tpu.dot_dimension_numbers<[1], [0], [0], [1], [0, 0, 1, 1], [], []>} : vector<4x3xf32>, vector<3x256xf32>, vector<4x256xf32> -> vector<4x256xf32>
    %494 = arith.addf %489, %493 : vector<4x256xf32>
    %c2_242 = arith.constant 2 : index
    %c11_243 = arith.constant 11 : index
    %c0_244 = arith.constant 0 : index
    %495 = vector.load %arg3[%c2_242, %c11_243, %c0_244] : memref<3x15x4xf32, #tpu.memory_space<vmem>>, vector<1x4x3xf32>
    %496 = vector.shape_cast %495 : vector<1x4x3xf32> to vector<4x3xf32>
    %c40_245 = arith.constant 40 : index
    %c144_246 = arith.constant 144 : index
    %497 = vector.load %arg8[%c40_245, %c144_246] : memref<56x512xf32, #tpu.memory_space<vmem>>, vector<3x256xf32>
    %cst_247 = arith.constant 0.000000e+00 : f32
    %498 = vector.shape_cast %168 : vector<1x256xi1> to vector<1x256xi1>
    %499 = vector.broadcast %498 : vector<1x256xi1> to vector<3x256xi1>
    %500 = vector.broadcast %cst_247 : f32 to vector<3x256xf32>
    %501 = arith.select %499, %497, %500 : vector<3x256xi1>, vector<3x256xf32>
    %cst_248 = arith.constant dense<0.000000e+00> : vector<4x256xf32>
    %502 = tpu.matmul %496, %501, %cst_248 {dimension_numbers = #tpu.dot_dimension_numbers<[1], [0], [0], [1], [0, 0, 1, 1], [], []>} : vector<4x3xf32>, vector<3x256xf32>, vector<4x256xf32> -> vector<4x256xf32>
    %503 = arith.addf %494, %502 : vector<4x256xf32>
    %c43 = arith.constant 43 : index
    %c0_249 = arith.constant 0 : index
    %504 = vector.load %arg6[%c43, %c0_249] : memref<79x1xf32, #tpu.memory_space<vmem>>, vector<4x1xf32>
    %505 = vector.broadcast %504 : vector<4x1xf32> to vector<4x256xf32>
    %506 = arith.addf %503, %505 : vector<4x256xf32>
    %cst_250 = arith.constant 0.000000e+00 : f32
    %507 = vector.broadcast %cst_250 : f32 to vector<4x256xf32>
    %508 = arith.maximumf %506, %507 : vector<4x256xf32>
    %c48 = arith.constant 48 : index
    %c128_251 = arith.constant 128 : index
    %509 = vector.load %arg8[%c48, %c128_251] : memref<56x512xf32, #tpu.memory_space<vmem>>, vector<4x256xf32>
    tpu.vector_store %arg8[%c48, %c128_251], %508 {strides = array<i32>} : memref<56x512xf32, #tpu.memory_space<vmem>>, vector<4x256xf32>,
    %c12 = arith.constant 12 : index
    %c0_252 = arith.constant 0 : index
    %510 = vector.load %arg4[%c12, %c0_252] : memref<16x9xf32, #tpu.memory_space<vmem>>, vector<4x1xf32>
    %c48_253 = arith.constant 48 : index
    %c43_254 = arith.constant 43 : index
    %511 = vector.load %arg8[%c48_253, %c43_254] : memref<56x512xf32, #tpu.memory_space<vmem>>, vector<4x256xf32>
    %c-5_i32 = arith.constant -5 : i32
    %512 = vector.broadcast %c-5_i32 : i32 to vector<1x256xi32>
    %513 = arith.addi %2, %512 : vector<1x256xi32>
    %c0_i32_255 = arith.constant 0 : i32
    %514 = vector.broadcast %c0_i32_255 : i32 to vector<1x256xi32>
    %515 = arith.cmpi sge, %513, %514 : vector<1x256xi32>
    %c-5_i32_256 = arith.constant -5 : i32
    %516 = vector.broadcast %c-5_i32_256 : i32 to vector<1x256xi32>
    %517 = arith.addi %2, %516 : vector<1x256xi32>
    %c16_i32_257 = arith.constant 16 : i32
    %518 = vector.broadcast %c16_i32_257 : i32 to vector<1x256xi32>
    %519 = arith.cmpi slt, %517, %518 : vector<1x256xi32>
    %520 = arith.andi %515, %519 : vector<1x256xi1>
    %c-80_i32 = arith.constant -80 : i32
    %521 = vector.broadcast %c-80_i32 : i32 to vector<1x256xi32>
    %522 = arith.addi %5, %521 : vector<1x256xi32>
    %c0_i32_258 = arith.constant 0 : i32
    %523 = vector.broadcast %c0_i32_258 : i32 to vector<1x256xi32>
    %524 = arith.cmpi sge, %522, %523 : vector<1x256xi32>
    %c-80_i32_259 = arith.constant -80 : i32
    %525 = vector.broadcast %c-80_i32_259 : i32 to vector<1x256xi32>
    %526 = arith.addi %5, %525 : vector<1x256xi32>
    %c256_i32_260 = arith.constant 256 : i32
    %527 = vector.broadcast %c256_i32_260 : i32 to vector<1x256xi32>
    %528 = arith.cmpi slt, %526, %527 : vector<1x256xi32>
    %529 = arith.andi %524, %528 : vector<1x256xi1>
    %530 = arith.andi %520, %529 : vector<1x256xi1>
    %cst_261 = arith.constant 0.000000e+00 : f32
    %531 = vector.shape_cast %530 : vector<1x256xi1> to vector<1x256xi1>
    %532 = vector.broadcast %531 : vector<1x256xi1> to vector<4x256xi1>
    %533 = vector.broadcast %cst_261 : f32 to vector<4x256xf32>
    %534 = arith.select %532, %511, %533 : vector<4x256xi1>, vector<4x256xf32>
    %535 = vector.broadcast %510 : vector<4x1xf32> to vector<4x256xf32>
    %536 = arith.mulf %535, %534 : vector<4x256xf32>
    %c12_262 = arith.constant 12 : index
    %c1_263 = arith.constant 1 : index
    %537 = vector.load %arg4[%c12_262, %c1_263] : memref<16x9xf32, #tpu.memory_space<vmem>>, vector<4x1xf32>
    %c48_264 = arith.constant 48 : index
    %c48_265 = arith.constant 48 : index
    %538 = vector.load %arg8[%c48_264, %c48_265] : memref<56x512xf32, #tpu.memory_space<vmem>>, vector<4x256xf32>
    %c-80_i32_266 = arith.constant -80 : i32
    %539 = vector.broadcast %c-80_i32_266 : i32 to vector<1x256xi32>
    %540 = arith.addi %5, %539 : vector<1x256xi32>
    %c0_i32_267 = arith.constant 0 : i32
    %541 = vector.broadcast %c0_i32_267 : i32 to vector<1x256xi32>
    %542 = arith.cmpi sge, %540, %541 : vector<1x256xi32>
    %c-80_i32_268 = arith.constant -80 : i32
    %543 = vector.broadcast %c-80_i32_268 : i32 to vector<1x256xi32>
    %544 = arith.addi %5, %543 : vector<1x256xi32>
    %c256_i32_269 = arith.constant 256 : i32
    %545 = vector.broadcast %c256_i32_269 : i32 to vector<1x256xi32>
    %546 = arith.cmpi slt, %544, %545 : vector<1x256xi32>
    %547 = arith.andi %542, %546 : vector<1x256xi1>
    %cst_270 = arith.constant 0.000000e+00 : f32
    %548 = vector.shape_cast %547 : vector<1x256xi1> to vector<1x256xi1>
    %549 = vector.broadcast %548 : vector<1x256xi1> to vector<4x256xi1>
    %550 = vector.broadcast %cst_270 : f32 to vector<4x256xf32>
    %551 = arith.select %549, %538, %550 : vector<4x256xi1>, vector<4x256xf32>
    %552 = vector.broadcast %537 : vector<4x1xf32> to vector<4x256xf32>
    %553 = arith.mulf %552, %551 : vector<4x256xf32>
    %554 = arith.addf %536, %553 : vector<4x256xf32>
    %c12_271 = arith.constant 12 : index
    %c2_272 = arith.constant 2 : index
    %555 = vector.load %arg4[%c12_271, %c2_272] : memref<16x9xf32, #tpu.memory_space<vmem>>, vector<4x1xf32>
    %c48_273 = arith.constant 48 : index
    %c53 = arith.constant 53 : index
    %556 = vector.load %arg8[%c48_273, %c53] : memref<56x512xf32, #tpu.memory_space<vmem>>, vector<4x256xf32>
    %c5_i32 = arith.constant 5 : i32
    %557 = vector.broadcast %c5_i32 : i32 to vector<1x256xi32>
    %558 = arith.addi %2, %557 : vector<1x256xi32>
    %c0_i32_274 = arith.constant 0 : i32
    %559 = vector.broadcast %c0_i32_274 : i32 to vector<1x256xi32>
    %560 = arith.cmpi sge, %558, %559 : vector<1x256xi32>
    %c5_i32_275 = arith.constant 5 : i32
    %561 = vector.broadcast %c5_i32_275 : i32 to vector<1x256xi32>
    %562 = arith.addi %2, %561 : vector<1x256xi32>
    %c16_i32_276 = arith.constant 16 : i32
    %563 = vector.broadcast %c16_i32_276 : i32 to vector<1x256xi32>
    %564 = arith.cmpi slt, %562, %563 : vector<1x256xi32>
    %565 = arith.andi %560, %564 : vector<1x256xi1>
    %c-80_i32_277 = arith.constant -80 : i32
    %566 = vector.broadcast %c-80_i32_277 : i32 to vector<1x256xi32>
    %567 = arith.addi %5, %566 : vector<1x256xi32>
    %c0_i32_278 = arith.constant 0 : i32
    %568 = vector.broadcast %c0_i32_278 : i32 to vector<1x256xi32>
    %569 = arith.cmpi sge, %567, %568 : vector<1x256xi32>
    %c-80_i32_279 = arith.constant -80 : i32
    %570 = vector.broadcast %c-80_i32_279 : i32 to vector<1x256xi32>
    %571 = arith.addi %5, %570 : vector<1x256xi32>
    %c256_i32_280 = arith.constant 256 : i32
    %572 = vector.broadcast %c256_i32_280 : i32 to vector<1x256xi32>
    %573 = arith.cmpi slt, %571, %572 : vector<1x256xi32>
    %574 = arith.andi %569, %573 : vector<1x256xi1>
    %575 = arith.andi %565, %574 : vector<1x256xi1>
    %cst_281 = arith.constant 0.000000e+00 : f32
    %576 = vector.shape_cast %575 : vector<1x256xi1> to vector<1x256xi1>
    %577 = vector.broadcast %576 : vector<1x256xi1> to vector<4x256xi1>
    %578 = vector.broadcast %cst_281 : f32 to vector<4x256xf32>
    %579 = arith.select %577, %556, %578 : vector<4x256xi1>, vector<4x256xf32>
    %580 = vector.broadcast %555 : vector<4x1xf32> to vector<4x256xf32>
    %581 = arith.mulf %580, %579 : vector<4x256xf32>
    %582 = arith.addf %554, %581 : vector<4x256xf32>
    %c12_282 = arith.constant 12 : index
    %c3_283 = arith.constant 3 : index
    %583 = vector.load %arg4[%c12_282, %c3_283] : memref<16x9xf32, #tpu.memory_space<vmem>>, vector<4x1xf32>
    %c48_284 = arith.constant 48 : index
    %c123 = arith.constant 123 : index
    %584 = vector.load %arg8[%c48_284, %c123] : memref<56x512xf32, #tpu.memory_space<vmem>>, vector<4x256xf32>
    %c-5_i32_285 = arith.constant -5 : i32
    %585 = vector.broadcast %c-5_i32_285 : i32 to vector<1x256xi32>
    %586 = arith.addi %2, %585 : vector<1x256xi32>
    %c0_i32_286 = arith.constant 0 : i32
    %587 = vector.broadcast %c0_i32_286 : i32 to vector<1x256xi32>
    %588 = arith.cmpi sge, %586, %587 : vector<1x256xi32>
    %c-5_i32_287 = arith.constant -5 : i32
    %589 = vector.broadcast %c-5_i32_287 : i32 to vector<1x256xi32>
    %590 = arith.addi %2, %589 : vector<1x256xi32>
    %c16_i32_288 = arith.constant 16 : i32
    %591 = vector.broadcast %c16_i32_288 : i32 to vector<1x256xi32>
    %592 = arith.cmpi slt, %590, %591 : vector<1x256xi32>
    %593 = arith.andi %588, %592 : vector<1x256xi1>
    %cst_289 = arith.constant 0.000000e+00 : f32
    %594 = vector.shape_cast %593 : vector<1x256xi1> to vector<1x256xi1>
    %595 = vector.broadcast %594 : vector<1x256xi1> to vector<4x256xi1>
    %596 = vector.broadcast %cst_289 : f32 to vector<4x256xf32>
    %597 = arith.select %595, %584, %596 : vector<4x256xi1>, vector<4x256xf32>
    %598 = vector.broadcast %583 : vector<4x1xf32> to vector<4x256xf32>
    %599 = arith.mulf %598, %597 : vector<4x256xf32>
    %600 = arith.addf %582, %599 : vector<4x256xf32>
    %c12_290 = arith.constant 12 : index
    %c4_291 = arith.constant 4 : index
    %601 = vector.load %arg4[%c12_290, %c4_291] : memref<16x9xf32, #tpu.memory_space<vmem>>, vector<4x1xf32>
    %c48_292 = arith.constant 48 : index
    %c128_293 = arith.constant 128 : index
    %602 = vector.load %arg8[%c48_292, %c128_293] : memref<56x512xf32, #tpu.memory_space<vmem>>, vector<4x256xf32>
    %603 = vector.broadcast %601 : vector<4x1xf32> to vector<4x256xf32>
    %604 = arith.mulf %603, %602 : vector<4x256xf32>
    %605 = arith.addf %600, %604 : vector<4x256xf32>
    %c12_294 = arith.constant 12 : index
    %c5_295 = arith.constant 5 : index
    %606 = vector.load %arg4[%c12_294, %c5_295] : memref<16x9xf32, #tpu.memory_space<vmem>>, vector<4x1xf32>
    %c48_296 = arith.constant 48 : index
    %c133 = arith.constant 133 : index
    %607 = vector.load %arg8[%c48_296, %c133] : memref<56x512xf32, #tpu.memory_space<vmem>>, vector<4x256xf32>
    %c5_i32_297 = arith.constant 5 : i32
    %608 = vector.broadcast %c5_i32_297 : i32 to vector<1x256xi32>
    %609 = arith.addi %2, %608 : vector<1x256xi32>
    %c0_i32_298 = arith.constant 0 : i32
    %610 = vector.broadcast %c0_i32_298 : i32 to vector<1x256xi32>
    %611 = arith.cmpi sge, %609, %610 : vector<1x256xi32>
    %c5_i32_299 = arith.constant 5 : i32
    %612 = vector.broadcast %c5_i32_299 : i32 to vector<1x256xi32>
    %613 = arith.addi %2, %612 : vector<1x256xi32>
    %c16_i32_300 = arith.constant 16 : i32
    %614 = vector.broadcast %c16_i32_300 : i32 to vector<1x256xi32>
    %615 = arith.cmpi slt, %613, %614 : vector<1x256xi32>
    %616 = arith.andi %611, %615 : vector<1x256xi1>
    %cst_301 = arith.constant 0.000000e+00 : f32
    %617 = vector.shape_cast %616 : vector<1x256xi1> to vector<1x256xi1>
    %618 = vector.broadcast %617 : vector<1x256xi1> to vector<4x256xi1>
    %619 = vector.broadcast %cst_301 : f32 to vector<4x256xf32>
    %620 = arith.select %618, %607, %619 : vector<4x256xi1>, vector<4x256xf32>
    %621 = vector.broadcast %606 : vector<4x1xf32> to vector<4x256xf32>
    %622 = arith.mulf %621, %620 : vector<4x256xf32>
    %623 = arith.addf %605, %622 : vector<4x256xf32>
    %c12_302 = arith.constant 12 : index
    %c6_303 = arith.constant 6 : index
    %624 = vector.load %arg4[%c12_302, %c6_303] : memref<16x9xf32, #tpu.memory_space<vmem>>, vector<4x1xf32>
    %c48_304 = arith.constant 48 : index
    %c203 = arith.constant 203 : index
    %625 = vector.load %arg8[%c48_304, %c203] : memref<56x512xf32, #tpu.memory_space<vmem>>, vector<4x256xf32>
    %c-5_i32_305 = arith.constant -5 : i32
    %626 = vector.broadcast %c-5_i32_305 : i32 to vector<1x256xi32>
    %627 = arith.addi %2, %626 : vector<1x256xi32>
    %c0_i32_306 = arith.constant 0 : i32
    %628 = vector.broadcast %c0_i32_306 : i32 to vector<1x256xi32>
    %629 = arith.cmpi sge, %627, %628 : vector<1x256xi32>
    %c-5_i32_307 = arith.constant -5 : i32
    %630 = vector.broadcast %c-5_i32_307 : i32 to vector<1x256xi32>
    %631 = arith.addi %2, %630 : vector<1x256xi32>
    %c16_i32_308 = arith.constant 16 : i32
    %632 = vector.broadcast %c16_i32_308 : i32 to vector<1x256xi32>
    %633 = arith.cmpi slt, %631, %632 : vector<1x256xi32>
    %634 = arith.andi %629, %633 : vector<1x256xi1>
    %c80_i32 = arith.constant 80 : i32
    %635 = vector.broadcast %c80_i32 : i32 to vector<1x256xi32>
    %636 = arith.addi %5, %635 : vector<1x256xi32>
    %c0_i32_309 = arith.constant 0 : i32
    %637 = vector.broadcast %c0_i32_309 : i32 to vector<1x256xi32>
    %638 = arith.cmpi sge, %636, %637 : vector<1x256xi32>
    %c80_i32_310 = arith.constant 80 : i32
    %639 = vector.broadcast %c80_i32_310 : i32 to vector<1x256xi32>
    %640 = arith.addi %5, %639 : vector<1x256xi32>
    %c256_i32_311 = arith.constant 256 : i32
    %641 = vector.broadcast %c256_i32_311 : i32 to vector<1x256xi32>
    %642 = arith.cmpi slt, %640, %641 : vector<1x256xi32>
    %643 = arith.andi %638, %642 : vector<1x256xi1>
    %644 = arith.andi %634, %643 : vector<1x256xi1>
    %cst_312 = arith.constant 0.000000e+00 : f32
    %645 = vector.shape_cast %644 : vector<1x256xi1> to vector<1x256xi1>
    %646 = vector.broadcast %645 : vector<1x256xi1> to vector<4x256xi1>
    %647 = vector.broadcast %cst_312 : f32 to vector<4x256xf32>
    %648 = arith.select %646, %625, %647 : vector<4x256xi1>, vector<4x256xf32>
    %649 = vector.broadcast %624 : vector<4x1xf32> to vector<4x256xf32>
    %650 = arith.mulf %649, %648 : vector<4x256xf32>
    %651 = arith.addf %623, %650 : vector<4x256xf32>
    %c12_313 = arith.constant 12 : index
    %c7_314 = arith.constant 7 : index
    %652 = vector.load %arg4[%c12_313, %c7_314] : memref<16x9xf32, #tpu.memory_space<vmem>>, vector<4x1xf32>
    %c48_315 = arith.constant 48 : index
    %c208 = arith.constant 208 : index
    %653 = vector.load %arg8[%c48_315, %c208] : memref<56x512xf32, #tpu.memory_space<vmem>>, vector<4x256xf32>
    %c80_i32_316 = arith.constant 80 : i32
    %654 = vector.broadcast %c80_i32_316 : i32 to vector<1x256xi32>
    %655 = arith.addi %5, %654 : vector<1x256xi32>
    %c0_i32_317 = arith.constant 0 : i32
    %656 = vector.broadcast %c0_i32_317 : i32 to vector<1x256xi32>
    %657 = arith.cmpi sge, %655, %656 : vector<1x256xi32>
    %c80_i32_318 = arith.constant 80 : i32
    %658 = vector.broadcast %c80_i32_318 : i32 to vector<1x256xi32>
    %659 = arith.addi %5, %658 : vector<1x256xi32>
    %c256_i32_319 = arith.constant 256 : i32
    %660 = vector.broadcast %c256_i32_319 : i32 to vector<1x256xi32>
    %661 = arith.cmpi slt, %659, %660 : vector<1x256xi32>
    %662 = arith.andi %657, %661 : vector<1x256xi1>
    %cst_320 = arith.constant 0.000000e+00 : f32
    %663 = vector.shape_cast %662 : vector<1x256xi1> to vector<1x256xi1>
    %664 = vector.broadcast %663 : vector<1x256xi1> to vector<4x256xi1>
    %665 = vector.broadcast %cst_320 : f32 to vector<4x256xf32>
    %666 = arith.select %664, %653, %665 : vector<4x256xi1>, vector<4x256xf32>
    %667 = vector.broadcast %652 : vector<4x1xf32> to vector<4x256xf32>
    %668 = arith.mulf %667, %666 : vector<4x256xf32>
    %669 = arith.addf %651, %668 : vector<4x256xf32>
    %c12_321 = arith.constant 12 : index
    %c8_322 = arith.constant 8 : index
    %670 = vector.load %arg4[%c12_321, %c8_322] : memref<16x9xf32, #tpu.memory_space<vmem>>, vector<4x1xf32>
    %c48_323 = arith.constant 48 : index
    %c213 = arith.constant 213 : index
    %671 = vector.load %arg8[%c48_323, %c213] : memref<56x512xf32, #tpu.memory_space<vmem>>, vector<4x256xf32>
    %c5_i32_324 = arith.constant 5 : i32
    %672 = vector.broadcast %c5_i32_324 : i32 to vector<1x256xi32>
    %673 = arith.addi %2, %672 : vector<1x256xi32>
    %c0_i32_325 = arith.constant 0 : i32
    %674 = vector.broadcast %c0_i32_325 : i32 to vector<1x256xi32>
    %675 = arith.cmpi sge, %673, %674 : vector<1x256xi32>
    %c5_i32_326 = arith.constant 5 : i32
    %676 = vector.broadcast %c5_i32_326 : i32 to vector<1x256xi32>
    %677 = arith.addi %2, %676 : vector<1x256xi32>
    %c16_i32_327 = arith.constant 16 : i32
    %678 = vector.broadcast %c16_i32_327 : i32 to vector<1x256xi32>
    %679 = arith.cmpi slt, %677, %678 : vector<1x256xi32>
    %680 = arith.andi %675, %679 : vector<1x256xi1>
    %c80_i32_328 = arith.constant 80 : i32
    %681 = vector.broadcast %c80_i32_328 : i32 to vector<1x256xi32>
    %682 = arith.addi %5, %681 : vector<1x256xi32>
    %c0_i32_329 = arith.constant 0 : i32
    %683 = vector.broadcast %c0_i32_329 : i32 to vector<1x256xi32>
    %684 = arith.cmpi sge, %682, %683 : vector<1x256xi32>
    %c80_i32_330 = arith.constant 80 : i32
    %685 = vector.broadcast %c80_i32_330 : i32 to vector<1x256xi32>
    %686 = arith.addi %5, %685 : vector<1x256xi32>
    %c256_i32_331 = arith.constant 256 : i32
    %687 = vector.broadcast %c256_i32_331 : i32 to vector<1x256xi32>
    %688 = arith.cmpi slt, %686, %687 : vector<1x256xi32>
    %689 = arith.andi %684, %688 : vector<1x256xi1>
    %690 = arith.andi %680, %689 : vector<1x256xi1>
    %cst_332 = arith.constant 0.000000e+00 : f32
    %691 = vector.shape_cast %690 : vector<1x256xi1> to vector<1x256xi1>
    %692 = vector.broadcast %691 : vector<1x256xi1> to vector<4x256xi1>
    %693 = vector.broadcast %cst_332 : f32 to vector<4x256xf32>
    %694 = arith.select %692, %671, %693 : vector<4x256xi1>, vector<4x256xf32>
    %695 = vector.broadcast %670 : vector<4x1xf32> to vector<4x256xf32>
    %696 = arith.mulf %695, %694 : vector<4x256xf32>
    %697 = arith.addf %669, %696 : vector<4x256xf32>
    %c59 = arith.constant 59 : index
    %c0_333 = arith.constant 0 : index
    %698 = vector.load %arg6[%c59, %c0_333] : memref<79x1xf32, #tpu.memory_space<vmem>>, vector<4x1xf32>
    %699 = vector.broadcast %698 : vector<4x1xf32> to vector<4x256xf32>
    %700 = arith.addf %697, %699 : vector<4x256xf32>
    %c0_334 = arith.constant 0 : index
    %c0_335 = arith.constant 0 : index
    %701 = vector.load %arg5[%c0_334, %c0_335] : memref<16x16xf32, #tpu.memory_space<vmem>>, vector<16x4xf32>
    %cst_336 = arith.constant dense<0.000000e+00> : vector<16x256xf32>
    %702 = tpu.matmul %701, %206, %cst_336 {dimension_numbers = #tpu.dot_dimension_numbers<[1], [0], [0], [1], [0, 0, 1, 1], [], []>} : vector<16x4xf32>, vector<4x256xf32>, vector<16x256xf32> -> vector<16x256xf32>
    %c0_337 = arith.constant 0 : index
    %c4_338 = arith.constant 4 : index
    %703 = vector.load %arg5[%c0_337, %c4_338] : memref<16x16xf32, #tpu.memory_space<vmem>>, vector<16x8xf32>
    %cst_339 = arith.constant dense<0.000000e+00> : vector<16x256xf32>
    %704 = tpu.matmul %703, %453, %cst_339 {dimension_numbers = #tpu.dot_dimension_numbers<[1], [0], [0], [1], [0, 0, 1, 1], [], []>} : vector<16x8xf32>, vector<8x256xf32>, vector<16x256xf32> -> vector<16x256xf32>
    %705 = arith.addf %702, %704 : vector<16x256xf32>
    %c0_340 = arith.constant 0 : index
    %c12_341 = arith.constant 12 : index
    %706 = vector.load %arg5[%c0_340, %c12_341] : memref<16x16xf32, #tpu.memory_space<vmem>>, vector<16x4xf32>
    %cst_342 = arith.constant dense<0.000000e+00> : vector<16x256xf32>
    %707 = tpu.matmul %706, %700, %cst_342 {dimension_numbers = #tpu.dot_dimension_numbers<[1], [0], [0], [1], [0, 0, 1, 1], [], []>} : vector<16x4xf32>, vector<4x256xf32>, vector<16x256xf32> -> vector<16x256xf32>
    %708 = arith.addf %705, %707 : vector<16x256xf32>
    %c63 = arith.constant 63 : index
    %c0_343 = arith.constant 0 : index
    %709 = vector.load %arg6[%c63, %c0_343] : memref<79x1xf32, #tpu.memory_space<vmem>>, vector<16x1xf32>
    %710 = vector.broadcast %709 : vector<16x1xf32> to vector<16x256xf32>
    %711 = arith.addf %708, %710 : vector<16x256xf32>
    %cst_344 = arith.constant 1.000000e-01 : f32
    %712 = vector.broadcast %cst_344 : f32 to vector<16x256xf32>
    %713 = arith.mulf %711, %712 : vector<16x256xf32>
    %c0_345 = arith.constant 0 : index
    %c0_346 = arith.constant 0 : index
    %c0_347 = arith.constant 0 : index
    %714 = vector.load %arg1[%c0_345, %c0_346, %c0_347] : memref<1x16x256xf32, #tpu.memory_space<vmem>>, vector<1x16x256xf32>
    %715 = vector.shape_cast %714 : vector<1x16x256xf32> to vector<16x256xf32>
    %716 = arith.addf %713, %715 : vector<16x256xf32>
    %cst_348 = arith.constant 0.000000e+00 : f32
    %717 = vector.broadcast %cst_348 : f32 to vector<16x256xf32>
    %718 = arith.maximumf %716, %717 : vector<16x256xf32>
    %c0_349 = arith.constant 0 : index
    %c0_350 = arith.constant 0 : index
    %c0_351 = arith.constant 0 : index
    %719 = vector.load %arg7[%c0_349, %c0_350, %c0_351] : memref<1x16x256xf32, #tpu.memory_space<vmem>>, vector<1x16x256xf32>
    %720 = vector.shape_cast %719 : vector<1x16x256xf32> to vector<16x256xf32>
    %721 = vector.shape_cast %718 : vector<16x256xf32> to vector<1x16x256xf32>
    tpu.vector_store %arg7[%c0_349, %c0_350, %c0_351], %721 {strides = array<i32>} : memref<1x16x256xf32, #tpu.memory_space<vmem>>, vector<1x16x256xf32>,
    return
  }
  func.func @transform_0(%arg0: i32) -> (i32, i32, i32) {
    %c0_i32 = arith.constant 0 : i32
    %c0_i32_0 = arith.constant 0 : i32
    %c0_i32_1 = arith.constant 0 : i32
    return %arg0, %c0_i32, %c0_i32_0 : i32, i32, i32
  }
  func.func @transform_1(%arg0: i32) -> (i32, i32) {
    %c0_i32 = arith.constant 0 : i32
    %c0_i32_0 = arith.constant 0 : i32
    %c0_i32_1 = arith.constant 0 : i32
    return %c0_i32, %c0_i32_0 : i32, i32
  }
  func.func @transform_2(%arg0: i32) -> (i32, i32, i32) {
    %c0_i32 = arith.constant 0 : i32
    %c0_i32_0 = arith.constant 0 : i32
    %c0_i32_1 = arith.constant 0 : i32
    %c0_i32_2 = arith.constant 0 : i32
    return %c0_i32, %c0_i32_0, %c0_i32_1 : i32, i32, i32
  }
  func.func @transform_3(%arg0: i32) -> (i32, i32) {
    %c0_i32 = arith.constant 0 : i32
    %c0_i32_0 = arith.constant 0 : i32
    %c0_i32_1 = arith.constant 0 : i32
    return %c0_i32, %c0_i32_0 : i32, i32
  }
  func.func @transform_4(%arg0: i32) -> (i32, i32) {
    %c0_i32 = arith.constant 0 : i32
    %c0_i32_0 = arith.constant 0 : i32
    %c0_i32_1 = arith.constant 0 : i32
    return %c0_i32, %c0_i32_0 : i32, i32
  }
  func.func @transform_5(%arg0: i32) -> (i32, i32) {
    %c0_i32 = arith.constant 0 : i32
    %c0_i32_0 = arith.constant 0 : i32
    %c0_i32_1 = arith.constant 0 : i32
    return %c0_i32, %c0_i32_0 : i32, i32
  }
  func.func @transform_6(%arg0: i32) -> (i32, i32, i32) {
    %c0_i32 = arith.constant 0 : i32
    %c0_i32_0 = arith.constant 0 : i32
    %c0_i32_1 = arith.constant 0 : i32
    return %arg0, %c0_i32, %c0_i32_0 : i32, i32, i32
  }
}

</mosaic_0001>

<llo_original>
// kernel: rfb_forward.1
$region0: #{rfb_forward.1}
  #allocation0 [shape = 'u32[]', space=smem, size = 0x4, offset = 0x4, fixed_abs, tag = 'smem constant byte address 0x4 - core index']
  #allocation1 [shape = 'u32[144,128]{1,0:T(1,128)}', space=vmem, size = 0x12000, scoped, tag = 'internal scratch']
  #allocation2 [shape = 'f32[56,512]{1,0:T(8,128)}', space=vmem, size = 0x1c000, scoped, tag = 'scratch operand']
  %s0 = inlined_call_operand.vmem [shape: f32[2,16,256], index: 0, kind: input, shape index: {}]
  %s1 = inlined_call_operand.vmem [shape: f32[32,16], index: 1, kind: input, shape index: {}]
  %s2 = inlined_call_operand.vmem [shape: f32[3,15,4], index: 2, kind: input, shape index: {}]
  %s3 = inlined_call_operand.vmem [shape: f32[16,9], index: 3, kind: input, shape index: {}]
  %s4 = inlined_call_operand.vmem [shape: f32[16,16], index: 4, kind: input, shape index: {}]
  %s5 = inlined_call_operand.vmem [shape: f32[79,1], index: 5, kind: input, shape index: {}]
  %s6 = inlined_call_operand.vmem [shape: f32[2,16,256], index: 6, kind: output, shape index: {}]
  %s7 = sld [smem:[#allocation0]]
  $region57: #{rfb_forward.1} parent=0
    _
  %s9 = ssub.s32 1, %s7
  %s10 = scalar_select 0, %s9, %s7
  loop: start=0, step=1, limit=4
  $region2: #{rfb_forward.1} parent=0 // loop_pre_header
    _
  $region3: #{rfb_forward.1} parent=0 // loop_header
    %s12 = sphi 0, %s16
    %p13 = scmp.ge.s32.totalorder %s12, 4
    %s22 = sphi 0, %s24
    %s25 = sphi 0, %s22
    %s26 = sphi 0, %s25
    %s42 = sphi 0, %s26
    %s46 = sphi 0, %s46
    %s48 = sphi 0, %s46
    %s49 = sphi 0, %s48
    %s63 = sphi 0, %s49
    %s67 = sphi 0, %s67
    %s69 = sphi 0, %s67
    %s70 = sphi 0, %s69
    %s84 = sphi 0, %s70
    %s88 = sphi 0, %s88
    %s90 = sphi 0, %s88
    %s91 = sphi 0, %s90
    %s105 = sphi 0, %s91
    %s109 = sphi 0, %s109
    %s111 = sphi 0, %s109
    %s112 = sphi 0, %s111
    %s126 = sphi 0, %s112
    %s130 = sphi 0, %s130
    %s132 = sphi 0, %s130
    %s133 = sphi 0, %s132
    %s147 = sphi 0, %s133
    %s153 = sphi 0, %s155
    %s156 = sphi 0, %s153
    %s157 = sphi 0, %s156
    %s173 = sphi 0, %s157
  $region4: #{rfb_forward.1} parent=0 // loop_header_branch
    %15 = sbr.rel (%p13) target = $region8
  $region5: #{rfb_forward.1} parent=0 // loop_body
    %s17 = ssub.s32 %s12, 1
    %s18 = ssub.s32 %s12, 2
    %s19 = sadd.s32 %s12, 1
    %s20 = ssub.s32 %s12, %s19
    %p21 = scmp.eq.s32.totalorder %s20, 0
    %s23 = sadd.s32 %s22, 1
    %s24 = scalar_select %p21, %s22, %s23
    %p27 = pneg %p21
    %p28 = scmp.eq.s32.totalorder %s12, 1
    %p29 = por %p27, %p28
    %p30 = scmp.ne.s32.totalorder %s22, %s25
    %p31 = scmp.eq.s32.totalorder %s12, 0
    %p32 = por %p30, %p31
    %p33 = scmp.ne.s32.totalorder %s22, %s25
    %p34 = scmp.eq.s32.totalorder %s17, 1
    %p35 = por %p33, %p34
    %p36 = scmp.ne.s32.totalorder %s25, %s26
    %p37 = scmp.eq.s32.totalorder %s17, 0
    %p38 = por %p36, %p37
    %p39 = scmp.ne.s32.totalorder %s25, %s26
    %p40 = scmp.eq.s32.totalorder %s18, 1
    %p41 = por %p39, %p40
    %p43 = scmp.ne.s32.totalorder %s26, %s42
    %p44 = scmp.eq.s32.totalorder %s18, 0
    %p45 = por %p43, %p44
    %s47 = sadd.s32 %s46, 1
    %p50 = scmp.eq.s32.totalorder %s12, 1
    %p51 = scmp.ne.s32.totalorder %s46, %s48
    %p52 = scmp.eq.s32.totalorder %s12, 0
    %p53 = por %p51, %p52
    %p54 = scmp.ne.s32.totalorder %s46, %s48
    %p55 = scmp.eq.s32.totalorder %s17, 1
    %p56 = por %p54, %p55
    %p57 = scmp.ne.s32.totalorder %s48, %s49
    %p58 = scmp.eq.s32.totalorder %s17, 0
    %p59 = por %p57, %p58
    %p60 = scmp.ne.s32.totalorder %s48, %s49
    %p61 = scmp.eq.s32.totalorder %s18, 1
    %p62 = por %p60, %p61
    %p64 = scmp.ne.s32.totalorder %s49, %s63
    %p65 = scmp.eq.s32.totalorder %s18, 0
    %p66 = por %p64, %p65
    %s68 = sadd.s32 %s67, 1
    %p71 = scmp.eq.s32.totalorder %s12, 1
    %p72 = scmp.ne.s32.totalorder %s67, %s69
    %p73 = scmp.eq.s32.totalorder %s12, 0
    %p74 = por %p72, %p73
    %p75 = scmp.ne.s32.totalorder %s67, %s69
    %p76 = scmp.eq.s32.totalorder %s17, 1
    %p77 = por %p75, %p76
    %p78 = scmp.ne.s32.totalorder %s69, %s70
    %p79 = scmp.eq.s32.totalorder %s17, 0
    %p80 = por %p78, %p79
    %p81 = scmp.ne.s32.totalorder %s69, %s70
    %p82 = scmp.eq.s32.totalorder %s18, 1
    %p83 = por %p81, %p82
    %p85 = scmp.ne.s32.totalorder %s70, %s84
    %p86 = scmp.eq.s32.totalorder %s18, 0
    %p87 = por %p85, %p86
    %s89 = sadd.s32 %s88, 1
    %p92 = scmp.eq.s32.totalorder %s12, 1
    %p93 = scmp.ne.s32.totalorder %s88, %s90
    %p94 = scmp.eq.s32.totalorder %s12, 0
    %p95 = por %p93, %p94
    %p96 = scmp.ne.s32.totalorder %s88, %s90
    %p97 = scmp.eq.s32.totalorder %s17, 1
    %p98 = por %p96, %p97
    %p99 = scmp.ne.s32.totalorder %s90, %s91
    %p100 = scmp.eq.s32.totalorder %s17, 0
    %p101 = por %p99, %p100
    %p102 = scmp.ne.s32.totalorder %s90, %s91
    %p103 = scmp.eq.s32.totalorder %s18, 1
    %p104 = por %p102, %p103
    %p106 = scmp.ne.s32.totalorder %s91, %s105
    %p107 = scmp.eq.s32.totalorder %s18, 0
    %p108 = por %p106, %p107
    %s110 = sadd.s32 %s109, 1
    %p113 = scmp.eq.s32.totalorder %s12, 1
    %p114 = scmp.ne.s32.totalorder %s109, %s111
    %p115 = scmp.eq.s32.totalorder %s12, 0
    %p116 = por %p114, %p115
    %p117 = scmp.ne.s32.totalorder %s109, %s111
    %p118 = scmp.eq.s32.totalorder %s17, 1
    %p119 = por %p117, %p118
    %p120 = scmp.ne.s32.totalorder %s111, %s112
    %p121 = scmp.eq.s32.totalorder %s17, 0
    %p122 = por %p120, %p121
    %p123 = scmp.ne.s32.totalorder %s111, %s112
    %p124 = scmp.eq.s32.totalorder %s18, 1
    %p125 = por %p123, %p124
    %p127 = scmp.ne.s32.totalorder %s112, %s126
    %p128 = scmp.eq.s32.totalorder %s18, 0
    %p129 = por %p127, %p128
    %s131 = sadd.s32 %s130, 1
    %p134 = scmp.eq.s32.totalorder %s12, 1
    %p135 = scmp.ne.s32.totalorder %s130, %s132
    %p136 = scmp.eq.s32.totalorder %s12, 0
    %p137 = por %p135, %p136
    %p138 = scmp.ne.s32.totalorder %s130, %s132
    %p139 = scmp.eq.s32.totalorder %s17, 1
    %p140 = por %p138, %p139
    %p141 = scmp.ne.s32.totalorder %s132, %s133
    %p142 = scmp.eq.s32.totalorder %s17, 0
    %p143 = por %p141, %p142
    %p144 = scmp.ne.s32.totalorder %s132, %s133
    %p145 = scmp.eq.s32.totalorder %s18, 1
    %p146 = por %p144, %p145
    %p148 = scmp.ne.s32.totalorder %s133, %s147
    %p149 = scmp.eq.s32.totalorder %s18, 0
    %p150 = por %p148, %p149
    %s151 = ssub.s32 %s12, %s19
    %p152 = scmp.eq.s32.totalorder %s151, 0
    %s154 = sadd.s32 %s153, 1
    %s155 = scalar_select %p152, %s153, %s154
    %p158 = pneg %p152
    %p159 = scmp.eq.s32.totalorder %s12, 1
    %p160 = por %p158, %p159
    %p161 = scmp.ne.s32.totalorder %s153, %s156
    %p162 = scmp.eq.s32.totalorder %s12, 0
    %p163 = por %p161, %p162
    %p164 = scmp.ne.s32.totalorder %s153, %s156
    %p165 = scmp.eq.s32.totalorder %s17, 1
    %p166 = por %p164, %p165
    %p167 = scmp.ne.s32.totalorder %s156, %s157
    %p168 = scmp.eq.s32.totalorder %s17, 0
    %p169 = por %p167, %p168
    %p170 = scmp.ne.s32.totalorder %s156, %s157
    %p171 = scmp.eq.s32.totalorder %s18, 1
    %p172 = por %p170, %p171
    %p174 = scmp.ne.s32.totalorder %s157, %s173
    %p175 = scmp.eq.s32.totalorder %s18, 0
    %p176 = por %p174, %p175
    %p177 = scmp.le.s32.totalorder 1, %s12
    %p178 = scmp.lt.s32.totalorder %s12, 3
    %p179 = pnand %p177, %p178
    %p180 = pneg %p179
    // Predicated region
    $region9: #{rfb_forward.1} parent=5 // pred_check
      _
    $region10: #{rfb_forward.1} parent=5 // pred_check_branch
      %182 = sbr.rel (%p179) target = $region12
    $region11: #{rfb_forward.1} parent=5 // pred_region
      %s183 = ssub.s32 %s12, 1
      // Predicated region
      $region13: #{rfb_forward.1} parent=11 // pred_check
        %p184 = pneg %p59
      $region14: #{rfb_forward.1} parent=11 // pred_check_branch
        %186 = sbr.rel (%p184) target = $region16
      $region15: #{rfb_forward.1} parent=11 // pred_region
        _
      $region16: #{rfb_forward.1} parent=11 // pred_fallthru
        _
      // Predicated region
      $region17: #{rfb_forward.1} parent=11 // pred_check
        %p187 = pneg %p80
      $region18: #{rfb_forward.1} parent=11 // pred_check_branch
        %189 = sbr.rel (%p187) target = $region20
      $region19: #{rfb_forward.1} parent=11 // pred_region
        _
      $region20: #{rfb_forward.1} parent=11 // pred_fallthru
        _
      // Predicated region
      $region21: #{rfb_forward.1} parent=11 // pred_check
        %p190 = pneg %p101
      $region22: #{rfb_forward.1} parent=11 // pred_check_branch
        %192 = sbr.rel (%p190) target = $region24
      $region23: #{rfb_forward.1} parent=11 // pred_region
        _
      $region24: #{rfb_forward.1} parent=11 // pred_fallthru
        _
      // Predicated region
      $region25: #{rfb_forward.1} parent=11 // pred_check
        %p193 = pneg %p122
      $region26: #{rfb_forward.1} parent=11 // pred_check_branch
        %195 = sbr.rel (%p193) target = $region28
      $region27: #{rfb_forward.1} parent=11 // pred_region
        _
      $region28: #{rfb_forward.1} parent=11 // pred_fallthru
        _
      // Predicated region
      $region29: #{rfb_forward.1} parent=11 // pred_check
        %p196 = pneg %p143
      $region30: #{rfb_forward.1} parent=11 // pred_check_branch
        %198 = sbr.rel (%p196) target = $region32
      $region31: #{rfb_forward.1} parent=11 // pred_region
        _
      $region32: #{rfb_forward.1} parent=11 // pred_fallthru
        _
    $region12: #{rfb_forward.1} parent=5 // pred_fallthru
      _
    %p199 = scmp.lt.s32.totalorder %s12, 2
    // Predicated region
    $region33: #{rfb_forward.1} parent=5 // pred_check
      %p200 = pneg %p199
    $region34: #{rfb_forward.1} parent=5 // pred_check_branch
      %202 = sbr.rel (%p200) target = $region36
    $region35: #{rfb_forward.1} parent=5 // pred_region
      // Predicated region
      $region37: #{rfb_forward.1} parent=35 // pred_check
        %p203 = pneg %p32
      $region38: #{rfb_forward.1} parent=35 // pred_check_branch
        %205 = sbr.rel (%p203) target = $region40
      $region39: #{rfb_forward.1} parent=35 // pred_region
        %p206 = scmp.lt.s32.totalorder %s12, 1
        %s207 = scalar_select %p206, %s12, 1
        %s208 = smul.addr %s207, 4
        %s209 = smul.addr %s208, 8
        %s210 = scalar_lea.vmem %s0, %s209
      $region40: #{rfb_forward.1} parent=35 // pred_fallthru
        _
    $region36: #{rfb_forward.1} parent=5 // pred_fallthru
      _
    %p211 = scmp.le.s32.totalorder 1, %s12
    %p212 = scmp.lt.s32.totalorder %s12, 3
    %p213 = pnand %p211, %p212
    %p214 = pneg %p213
    // Predicated region
    $region41: #{rfb_forward.1} parent=5 // pred_check
      _
    $region42: #{rfb_forward.1} parent=5 // pred_check_branch
      %216 = sbr.rel (%p213) target = $region44
    $region43: #{rfb_forward.1} parent=5 // pred_region
      %s217 = ssub.s32 %s12, 1
      %p218 = scmp.lt.s32.totalorder %s17, 1
      %s219 = scalar_select %p218, %s17, 1
      %s220 = smul.addr %s219, 4
      %s221 = smul.addr %s220, 8
      %s222 = scalar_lea.vmem %s0, %s221
      %p223 = pneg %p38
      %p224 = pneg %p35
      %p225 = pneg %p59
      %p226 = pneg %p56
      %p227 = pneg %p80
      %p228 = pneg %p77
      %p229 = pneg %p101
      %p230 = pneg %p98
      %p231 = pneg %p122
      %p232 = pneg %p119
      %p233 = pneg %p143
      %p234 = pneg %p140
      %p235 = pneg %p169
      %p236 = pneg %p166
      %p237 = scmp.lt.s32.totalorder %s17, 1
      %s238 = scalar_select %p237, %s17, 1
      %s239 = smul.addr %s238, 4
      %s240 = smul.addr %s239, 8
      %s241 = scalar_lea.vmem %s6, %s240
      %p242 = scmp.lt.s32.totalorder %s17, 1
      %s243 = scalar_select %p242, %s17, 1
      %s244 = smul.addr %s243, 4
      %s245 = smul.addr %s244, 8
      %s246 = scalar_lea.vmem %s0, %s245
      %p247 = scmp.lt.s32.totalorder %s17, 1
      %s248 = scalar_select %p247, %s17, 1
      %s249 = smul.addr %s248, 4
      %s250 = smul.addr %s249, 8
      %s251 = scalar_lea.vmem %s6, %s250
      %v252 = vlaneseq
      %v253 = vand.u32 %v252, 127
      %v254 = vadd.s32 %v253, 128
      %v255 = vand.u32 %v253, 15
      %v256 = vand.u32 %v254, 15
      %v257 = vand.u32 %v253, 255
      %v258 = vand.u32 %v254, 255
      %v259 = vsub.s32 %v257, %v255
      %v260 = vsub.s32 %v258, %v256
      %v261 = vld [vmem:[%s5] sm:$0xff]
      %v262 = vld [vmem:[%s5 + $0x8] sm:$0xff]
      %v263 = vld [vmem:[%s5 + $0x10] sm:$0xff]
      %v264 = vld [vmem:[%s5 + $0x18] sm:$0xff]
      %v265 = vld [vmem:[%s1] sm:$0xff]
      %v266 = vld [vmem:[%s1 + $0x8] sm:$0xff]
      %v267 = vld [vmem:[%s1 + $0x10] sm:$0xff]
      %v268 = vld [vmem:[%s1 + $0x18] sm:$0xff]
      %v269 = vld [vmem:[%s246] sm:$0xff]
      %v270 = vld [vmem:[%s246 + $0x8] sm:$0xff]
      %v271 = vld [vmem:[%s246 + $0x10] sm:$0xff]
      %v272 = vld [vmem:[%s246 + $0x18] sm:$0xff]
      %274 = vset.pattern.permute.xlu0 0
      %275 = vperm.xlu0 %274, %v261
      %v276 = vpop.permute.xlu0 %275
      %279 = vset.pattern.permute.xlu0 0
      %280 = vperm.xlu0 %279, %v262
      %v281 = vpop.permute.xlu0 %280
      %284 = vset.pattern.permute.xlu0 0
      %285 = vperm.xlu0 %284, %v263
      %v286 = vpop.permute.xlu0 %285
      %289 = vset.pattern.permute.xlu0 0
      %290 = vperm.xlu0 %289, %v264
      %v291 = vpop.permute.xlu0 %290
      %vm293 = vcmask 130048
      %v295 = vsel %vm293, %v265, 0
      %v298 = vsel %vm293, %v266, 0
      %v301 = vsel %vm293, %v267, 0
      %v304 = vsel %vm293, %v268, 0
      %306 = vmatprep.subr.mxu0 %v270
      %307 = vmatpush1.msra.mxu0 %v269
      %308 = vmatprep.subr.mxu0 %v272
      %309 = vmatpush1.msra.mxu0 %v271
      %310 = vmatprep.subr.mxu0 0.0
      %311 = vmatpush1.msra.mxu0 0.0
      %312 = vmatprep.subr.mxu0 0.0
      %313 = vmatpush1.msra.mxu0 0.0
      %314 = vmatprep.subr.mxu0 0.0
      %315 = vmatpush1.msra.mxu0 0.0
      %316 = vmatprep.subr.mxu0 0.0
      %317 = vmatpush1.msra.mxu0 0.0
      %318 = vmatprep.subr.mxu0 0.0
      %319 = vmatpush1.msra.mxu0 0.0
      %320 = vmatprep.subr.mxu0 0.0
      %321 = vmatpush1.msra.mxu0 0.0
      %322 = vmatprep.subr.mxu0 0.0
      %323 = vmatpush1.msra.mxu0 0.0
      %324 = vmatprep.subr.mxu0 0.0
      %325 = vmatpush1.msra.mxu0 0.0
      %326 = vmatprep.subr.mxu0 0.0
      %327 = vmatpush1.msra.mxu0 0.0
      %328 = vmatprep.subr.mxu0 0.0
      %329 = vmatpush1.msra.mxu0 0.0
      %330 = vmatprep.subr.mxu0 0.0
      %331 = vmatpush1.msra.mxu0 0.0
      %332 = vmatprep.subr.mxu0 0.0
      %333 = vmatpush1.msra.mxu0 0.0
      %334 = vmatprep.subr.mxu0 0.0
      %335 = vmatpush1.msra.mxu0 0.0
      %336 = vmatprep.subr.mxu0 0.0
      %337 = vmatpush1.msra.mxu0 0.0
      %338 = vmatprep.subr.mxu0 0.0
      %339 = vmatpush1.msra.mxu0 0.0
      %340 = vmatprep.subr.mxu0 0.0
      %341 = vmatpush1.msra.mxu0 0.0
      %342 = vmatprep.subr.mxu0 0.0
      %343 = vmatpush1.msra.mxu0 0.0
      %344 = vmatprep.subr.mxu0 0.0
      %345 = vmatpush1.msra.mxu0 0.0
      %346 = vmatprep.subr.mxu0 0.0
      %347 = vmatpush1.msra.mxu0 0.0
      %348 = vmatprep.subr.mxu0 0.0
      %349 = vmatpush1.msra.mxu0 0.0
      %350 = vmatprep.subr.mxu0 0.0
      %351 = vmatpush1.msra.mxu0 0.0
      %352 = vmatprep.subr.mxu0 0.0
      %353 = vmatpush1.msra.mxu0 0.0
      %354 = vmatprep.subr.mxu0 0.0
      %355 = vmatpush1.msra.mxu0 0.0
      %356 = vmatprep.subr.mxu0 0.0
      %357 = vmatpush1.msra.mxu0 0.0
      %358 = vmatprep.subr.mxu0 0.0
      %359 = vmatpush1.msra.mxu0 0.0
      %360 = vmatprep.subr.mxu0 0.0
      %361 = vmatpush1.msra.mxu0 0.0
      %362 = vmatprep.subr.mxu0 0.0
      %363 = vmatpush1.msra.mxu0 0.0
      %364 = vmatprep.subr.mxu0 0.0
      %365 = vmatpush1.msra.mxu0 0.0
      %366 = vmatprep.subr.mxu0 0.0
      %367 = vmatpush1.msra.mxu0 0.0
      %368 = vmatprep.subr.mxu0 0.0
      %369 = vmatpush1.msra.mxu0 0.0
      %370 = vmatprep.mubr.f32.mxu0 0.0
      %371 = vmatmul.mubr.f32.gmra.mrb[0].mxu0 %v295
      %v372 = vpop.f32.mrb[0].mxu0
      %v373 = vadd.f32 %v276, %v372
      %v374 = vpop.f32.mrb[0].mxu0
      %v375 = vadd.f32 %v276, %v374
      %376 = vmatprep.mubr.f32.mxu0 0.0
      %377 = vmatmul.mubr.f32.gmra.mrb[0].mxu0 %v298
      %v378 = vpop.f32.mrb[0].mxu0
      %v379 = vadd.f32 %v281, %v378
      %v380 = vpop.f32.mrb[0].mxu0
      %v381 = vadd.f32 %v281, %v380
      %382 = vmatprep.mubr.f32.mxu0 0.0
      %383 = vmatmul.mubr.f32.gmra.mrb[0].mxu0 %v301
      %v384 = vpop.f32.mrb[0].mxu0
      %v385 = vadd.f32 %v286, %v384
      %v386 = vpop.f32.mrb[0].mxu0
      %v387 = vadd.f32 %v286, %v386
      %388 = vmatprep.mubr.f32.mxu0 0.0
      %389 = vmatmul.mubr.f32.gmra.mrb[0].mxu0 %v304
      %v390 = vpop.f32.mrb[0].mxu0
      %v391 = vadd.f32 %v291, %v390
      %v392 = vpop.f32.mrb[0].mxu0
      %v393 = vadd.f32 %v291, %v392
      %394 = vdwg.mxu0
      %v395 = vmax.f32 %v373, 0.0
      %v396 = vmax.f32 %v375, 0.0
      %v397 = vmax.f32 %v379, 0.0
      %v398 = vmax.f32 %v381, 0.0
      %v399 = vmax.f32 %v385, 0.0
      %v400 = vmax.f32 %v387, 0.0
      %v401 = vmax.f32 %v391, 0.0
      %v402 = vmax.f32 %v393, 0.0
      %403 = vst [vmem:[#allocation2 + $0x8] sm:$0xff] %v395
      %404 = vst [vmem:[#allocation2 + $0x10] sm:$0xff] %v396
      %405 = vst [vmem:[#allocation2 + $0x28] sm:$0xff] %v397
      %406 = vst [vmem:[#allocation2 + $0x30] sm:$0xff] %v398
      %407 = vst [vmem:[#allocation2 + $0x48] sm:$0xff] %v399
      %408 = vst [vmem:[#allocation2 + $0x50] sm:$0xff] %v400
      %409 = vst [vmem:[#allocation2 + $0x68] sm:$0xff] %v401
      %410 = vst [vmem:[#allocation2 + $0x70] sm:$0xff] %v402
      %v411 = vld [vmem:[%s3] sm:$0xf]
      %v412 = vld [vmem:[#allocation2] sm:$0xf]
      %v413 = vld [vmem:[#allocation2 + $0x8] sm:$0xf]
      %v414 = vld [vmem:[#allocation2 + $0x10] sm:$0xf]
      %v415 = vadd.s32 %v255, 4294967295
      %v416 = vadd.s32 %v256, 4294967295
      %vm417 = vcmp.ge.s32.totalorder %v415, 0
      %vm418 = vcmp.ge.s32.totalorder %v416, 0
      %vm419 = vcmp.lt.s32.totalorder %v415, 16
      %vm420 = vcmp.lt.s32.totalorder %v416, 16
      %vm421 = vmand %vm417, %vm419
      %vm422 = vmand %vm418, %vm420
      %v423 = vadd.s32 %v259, 4294967280
      %v424 = vadd.s32 %v260, 4294967280
      %vm425 = vcmp.ge.s32.totalorder %v423, 0
      %vm426 = vcmp.ge.s32.totalorder %v424, 0
      %vm427 = vcmp.lt.s32.totalorder %v423, 256
      %vm428 = vcmp.lt.s32.totalorder %v424, 256
      %vm429 = vmand %vm425, %vm427
      %vm430 = vmand %vm426, %vm428
      %vm431 = vmand %vm421, %vm429
      %vm432 = vmand %vm422, %vm430
      %v433 = vsel %vm431, 1, 0
      %v434 = vsel %vm432, 1, 0
      %vm435 = vcmp.eq.s32.totalorder %v433, 1
      %vm436 = vcmp.eq.s32.totalorder %v434, 1
      %440 = vrot.lane.b32.xlu0 %v412, 17
      %v441 = vpop.permute.xlu0 %440
      %442 = vrot.lane.b32.xlu0 %v413, 17
      %v443 = vpop.permute.xlu0 %442
      %444 = vrot.lane.b32.xlu0 %v414, 17
      %v445 = vpop.permute.xlu0 %444
      %vm446 = vcmask 138240
      %v447 = vsel %vm446, %v441, %v443
      %v448 = vsel %vm446, %v443, %v445
      %v451 = vsel %vm435, %v447, 0.0
      %v452 = vsel %vm436, %v448, 0.0
      %454 = vset.pattern.permute.xlu0 0
      %455 = vperm.xlu0 %454, %v411
      %v456 = vpop.permute.xlu0 %455
      %v458 = vmul.f32 %v456, %v451
      %v459 = vmul.f32 %v456, %v452
      %v460 = vsel %vm429, 1, 0
      %v461 = vsel %vm430, 1, 0
      %vm462 = vcmp.eq.s32.totalorder %v460, 1
      %vm463 = vcmp.eq.s32.totalorder %v461, 1
      %464 = vrot.lane.b32.xlu0 %v412, 16
      %v465 = vpop.permute.xlu0 %464
      %466 = vrot.lane.b32.xlu0 %v413, 16
      %v467 = vpop.permute.xlu0 %466
      %468 = vrot.lane.b32.xlu0 %v414, 16
      %v469 = vpop.permute.xlu0 %468
      %v470 = vsel %vm293, %v465, %v467
      %v471 = vsel %vm293, %v467, %v469
      %v474 = vsel %vm462, %v470, 0.0
      %v475 = vsel %vm463, %v471, 0.0
      %476 = vset.pattern.permute.xlu0 1
      %477 = vperm.xlu0 %476, %v411
      %v478 = vpop.permute.xlu0 %477
      %v480 = vmul.f32 %v478, %v474
      %v481 = vmul.f32 %v478, %v475
      %v482 = vadd.f32 %v458, %v480
      %v483 = vadd.f32 %v459, %v481
      %v484 = vadd.s32 %v255, 1
      %v485 = vadd.s32 %v256, 1
      %vm486 = vcmp.ge.s32.totalorder %v484, 0
      %vm487 = vcmp.ge.s32.totalorder %v485, 0
      %vm488 = vcmp.lt.s32.totalorder %v484, 16
      %vm489 = vcmp.lt.s32.totalorder %v485, 16
      %vm490 = vmand %vm486, %vm488
      %vm491 = vmand %vm487, %vm489
      %vm492 = vmand %vm490, %vm429
      %vm493 = vmand %vm491, %vm430
      %v494 = vsel %vm492, 1, 0
      %v495 = vsel %vm493, 1, 0
      %vm496 = vcmp.eq.s32.totalorder %v494, 1
      %vm497 = vcmp.eq.s32.totalorder %v495, 1
      %498 = vrot.lane.b32.xlu0 %v412, 15
      %v499 = vpop.permute.xlu0 %498
      %500 = vrot.lane.b32.xlu0 %v413, 15
      %v501 = vpop.permute.xlu0 %500
      %502 = vrot.lane.b32.xlu0 %v414, 15
      %v503 = vpop.permute.xlu0 %502
      %vm504 = vcmask 121856
      %v505 = vsel %vm504, %v499, %v501
      %v506 = vsel %vm504, %v501, %v503
      %v509 = vsel %vm496, %v505, 0.0
      %v510 = vsel %vm497, %v506, 0.0
      %511 = vset.pattern.permute.xlu0 2
      %512 = vperm.xlu0 %511, %v411
      %v513 = vpop.permute.xlu0 %512
      %v515 = vmul.f32 %v513, %v509
      %v516 = vmul.f32 %v513, %v510
      %v517 = vadd.f32 %v482, %v515
      %v518 = vadd.f32 %v483, %v516
      %v519 = vsel %vm421, 1, 0
      %v520 = vsel %vm422, 1, 0
      %vm521 = vcmp.eq.s32.totalorder %v519, 1
      %vm522 = vcmp.eq.s32.totalorder %v520, 1
      %523 = vrot.lane.b32.xlu0 %v412, 1
      %v524 = vpop.permute.xlu0 %523
      %525 = vrot.lane.b32.xlu0 %v413, 1
      %v526 = vpop.permute.xlu0 %525
      %527 = vrot.lane.b32.xlu0 %v414, 1
      %v528 = vpop.permute.xlu0 %527
      %vm529 = vcmask 7168
      %v530 = vsel %vm529, %v524, %v526
      %v531 = vsel %vm529, %v526, %v528
      %v534 = vsel %vm521, %v530, 0.0
      %v535 = vsel %vm522, %v531, 0.0
      %536 = vset.pattern.permute.xlu0 3
      %537 = vperm.xlu0 %536, %v411
      %v538 = vpop.permute.xlu0 %537
      %v540 = vmul.f32 %v538, %v534
      %v541 = vmul.f32 %v538, %v535
      %v542 = vadd.f32 %v517, %v540
      %v543 = vadd.f32 %v518, %v541
      %544 = vset.pattern.permute.xlu0 4
      %545 = vperm.xlu0 %544, %v411
      %v546 = vpop.permute.xlu0 %545
      %v548 = vmul.f32 %v546, %v413
      %v549 = vmul.f32 %v546, %v414
      %v550 = vadd.f32 %v542, %v548
      %v551 = vadd.f32 %v543, %v549
      %v552 = vld [vmem:[#allocation2 + $0x8] sm:$0xf]
      %v553 = vld [vmem:[#allocation2 + $0x10] sm:$0xf]
      %v554 = vld [vmem:[#allocation2 + $0x18] sm:$0xf]
      %v555 = vsel %vm490, 1, 0
      %v556 = vsel %vm491, 1, 0
      %vm557 = vcmp.eq.s32.totalorder %v555, 1
      %vm558 = vcmp.eq.s32.totalorder %v556, 1
      %562 = vrot.lane.b32.xlu0 %v552, 127
      %v563 = vpop.permute.xlu0 %562
      %564 = vrot.lane.b32.xlu0 %v553, 127
      %v565 = vpop.permute.xlu0 %564
      %566 = vrot.lane.b32.xlu0 %v554, 127
      %v567 = vpop.permute.xlu0 %566
      %vm568 = vcmask 1039360
      %v569 = vsel %vm568, %v563, %v565
      %v570 = vsel %vm568, %v565, %v567
      %v573 = vsel %vm557, %v569, 0.0
      %v574 = vsel %vm558, %v570, 0.0
      %575 = vset.pattern.permute.xlu0 5
      %576 = vperm.xlu0 %575, %v411
      %v577 = vpop.permute.xlu0 %576
      %v579 = vmul.f32 %v577, %v573
      %v580 = vmul.f32 %v577, %v574
      %v581 = vadd.f32 %v550, %v579
      %v582 = vadd.f32 %v551, %v580
      %v583 = vadd.s32 %v259, 16
      %v584 = vadd.s32 %v260, 16
      %vm585 = vcmp.ge.s32.totalorder %v583, 0
      %vm586 = vcmp.ge.s32.totalorder %v584, 0
      %vm587 = vcmp.lt.s32.totalorder %v583, 256
      %vm588 = vcmp.lt.s32.totalorder %v584, 256
      %vm589 = vmand %vm585, %vm587
      %vm590 = vmand %vm586, %vm588
      %vm591 = vmand %vm421, %vm589
      %vm592 = vmand %vm422, %vm590
      %v593 = vsel %vm591, 1, 0
      %v594 = vsel %vm592, 1, 0
      %vm595 = vcmp.eq.s32.totalorder %v593, 1
      %vm596 = vcmp.eq.s32.totalorder %v594, 1
      %597 = vrot.lane.b32.xlu0 %v552, 113
      %v598 = vpop.permute.xlu0 %597
      %599 = vrot.lane.b32.xlu0 %v553, 113
      %v600 = vpop.permute.xlu0 %599
      %601 = vrot.lane.b32.xlu0 %v554, 113
      %v602 = vpop.permute.xlu0 %601
      %vm603 = vcmask 924672
      %v604 = vsel %vm603, %v598, %v600
      %v605 = vsel %vm603, %v600, %v602
      %v608 = vsel %vm595, %v604, 0.0
      %v609 = vsel %vm596, %v605, 0.0
      %610 = vset.pattern.permute.xlu0 6
      %611 = vperm.xlu0 %610, %v411
      %v612 = vpop.permute.xlu0 %611
      %v614 = vmul.f32 %v612, %v608
      %v615 = vmul.f32 %v612, %v609
      %v616 = vadd.f32 %v581, %v614
      %v617 = vadd.f32 %v582, %v615
      %v618 = vsel %vm589, 1, 0
      %v619 = vsel %vm590, 1, 0
      %vm620 = vcmp.eq.s32.totalorder %v618, 1
      %vm621 = vcmp.eq.s32.totalorder %v619, 1
      %622 = vrot.lane.b32.xlu0 %v552, 112
      %v623 = vpop.permute.xlu0 %622
      %624 = vrot.lane.b32.xlu0 %v553, 112
      %v625 = vpop.permute.xlu0 %624
      %626 = vrot.lane.b32.xlu0 %v554, 112
      %v627 = vpop.permute.xlu0 %626
      %vm628 = vcmask 916480
      %v629 = vsel %vm628, %v623, %v625
      %v630 = vsel %vm628, %v625, %v627
      %v633 = vsel %vm620, %v629, 0.0
      %v634 = vsel %vm621, %v630, 0.0
      %635 = vset.pattern.permute.xlu0 7
      %636 = vperm.xlu0 %635, %v411
      %v637 = vpop.permute.xlu0 %636
      %v639 = vmul.f32 %v637, %v633
      %v640 = vmul.f32 %v637, %v634
      %v641 = vadd.f32 %v616, %v639
      %v642 = vadd.f32 %v617, %v640
      %vm643 = vmand %vm490, %vm589
      %vm644 = vmand %vm491, %vm590
      %v645 = vsel %vm643, 1, 0
      %v646 = vsel %vm644, 1, 0
      %vm647 = vcmp.eq.s32.totalorder %v645, 1
      %vm648 = vcmp.eq.s32.totalorder %v646, 1
      %649 = vrot.lane.b32.xlu0 %v552, 111
      %v650 = vpop.permute.xlu0 %649
      %651 = vrot.lane.b32.xlu0 %v553, 111
      %v652 = vpop.permute.xlu0 %651
      %653 = vrot.lane.b32.xlu0 %v554, 111
      %v654 = vpop.permute.xlu0 %653
      %vm655 = vcmask 908288
      %v656 = vsel %vm655, %v650, %v652
      %v657 = vsel %vm655, %v652, %v654
      %v660 = vsel %vm647, %v656, 0.0
      %v661 = vsel %vm648, %v657, 0.0
      %662 = vset.pattern.permute.xlu0 8
      %663 = vperm.xlu0 %662, %v411
      %v664 = vpop.permute.xlu0 %663
      %v666 = vmul.f32 %v664, %v660
      %v667 = vmul.f32 %v664, %v661
      %v668 = vadd.f32 %v641, %v666
      %v669 = vadd.f32 %v642, %v667
      %v670 = vld [vmem:[%s5 + $0x2f] sm:$0xf]
      %672 = vset.pattern.permute.xlu0 0
      %673 = vperm.xlu0 %672, %v670
      %v674 = vpop.permute.xlu0 %673
      %v676 = vadd.f32 %v668, %v674
      %v677 = vadd.f32 %v669, %v674
      %v678 = vld [vmem:[%s2] sm:$0xf]
      %v679 = vld [vmem:[#allocation2 + $0x20] sm:$0xf]
      %v680 = vld [vmem:[#allocation2 + $0x28] sm:$0xf]
      %v681 = vld [vmem:[#allocation2 + $0x30] sm:$0xf]
      %685 = vrot.lane.b32.xlu0 %v679, 16
      %v686 = vpop.permute.xlu0 %685
      %687 = vrot.lane.b32.xlu0 %v680, 16
      %v688 = vpop.permute.xlu0 %687
      %689 = vrot.lane.b32.xlu0 %v681, 16
      %v690 = vpop.permute.xlu0 %689
      %v691 = vsel %vm293, %v686, %v688
      %v692 = vsel %vm293, %v688, %v690
      %v695 = vsel %vm462, %v691, 0.0
      %v696 = vsel %vm463, %v692, 0.0
      %s697 = scalar_lea.vmem %s2, 16
      %v698 = vld [vmem:[%s697] sm:$0xf]
      %vm699 = vcmask 31744
      %v701 = vsel %vm699, %v698, 0
      %vm703 = vcmask 1043456
      %v704 = vsel %vm703, %v680, 0
      %v706 = vsel %vm703, %v681, 0
      %708 = vmatprep.subr.mxu0 %v706
      %709 = vmatpush1.msra.mxu0 %v704
      %710 = vmatprep.subr.mxu0 0.0
      %711 = vmatpush1.msra.mxu0 0.0
      %712 = vmatprep.subr.mxu0 0.0
      %713 = vmatpush1.msra.mxu0 0.0
      %714 = vmatprep.subr.mxu0 0.0
      %715 = vmatpush1.msra.mxu0 0.0
      %716 = vmatprep.subr.mxu0 0.0
      %717 = vmatpush1.msra.mxu0 0.0
      %718 = vmatprep.subr.mxu0 0.0
      %719 = vmatpush1.msra.mxu0 0.0
      %720 = vmatprep.subr.mxu0 0.0
      %721 = vmatpush1.msra.mxu0 0.0
      %722 = vmatprep.subr.mxu0 0.0
      %723 = vmatpush1.msra.mxu0 0.0
      %724 = vmatprep.subr.mxu0 0.0
      %725 = vmatpush1.msra.mxu0 0.0
      %726 = vmatprep.subr.mxu0 0.0
      %727 = vmatpush1.msra.mxu0 0.0
      %728 = vmatprep.subr.mxu0 0.0
      %729 = vmatpush1.msra.mxu0 0.0
      %730 = vmatprep.subr.mxu0 0.0
      %731 = vmatpush1.msra.mxu0 0.0
      %732 = vmatprep.subr.mxu0 0.0
      %733 = vmatpush1.msra.mxu0 0.0
      %734 = vmatprep.subr.mxu0 0.0
      %735 = vmatpush1.msra.mxu0 0.0
      %736 = vmatprep.subr.mxu0 0.0
      %737 = vmatpush1.msra.mxu0 0.0
      %738 = vmatprep.subr.mxu0 0.0
      %739 = vmatpush1.msra.mxu0 0.0
      %740 = vmatprep.subr.mxu0 0.0
      %741 = vmatpush1.msra.mxu0 0.0
      %742 = vmatprep.subr.mxu0 0.0
      %743 = vmatpush1.msra.mxu0 0.0
      %744 = vmatprep.subr.mxu0 0.0
      %745 = vmatpush1.msra.mxu0 0.0
      %746 = vmatprep.subr.mxu0 0.0
      %747 = vmatpush1.msra.mxu0 0.0
      %748 = vmatprep.subr.mxu0 0.0
      %749 = vmatpush1.msra.mxu0 0.0
      %750 = vmatprep.subr.mxu0 0.0
      %751 = vmatpush1.msra.mxu0 0.0
      %752 = vmatprep.subr.mxu0 0.0
      %753 = vmatpush1.msra.mxu0 0.0
      %754 = vmatprep.subr.mxu0 0.0
      %755 = vmatpush1.msra.mxu0 0.0
      %756 = vmatprep.subr.mxu0 0.0
      %757 = vmatpush1.msra.mxu0 0.0
      %758 = vmatprep.subr.mxu0 0.0
      %759 = vmatpush1.msra.mxu0 0.0
      %760 = vmatprep.subr.mxu0 0.0
      %761 = vmatpush1.msra.mxu0 0.0
      %762 = vmatprep.subr.mxu0 0.0
      %763 = vmatpush1.msra.mxu0 0.0
      %764 = vmatprep.subr.mxu0 0.0
      %765 = vmatpush1.msra.mxu0 0.0
      %766 = vmatprep.subr.mxu0 0.0
      %767 = vmatpush1.msra.mxu0 0.0
      %768 = vmatprep.subr.mxu0 0.0
      %769 = vmatpush1.msra.mxu0 0.0
      %770 = vmatprep.subr.mxu0 0.0
      %771 = vmatpush1.msra.mxu0 0.0
      %772 = vmatprep.mubr.f32.mxu0 0.0
      %773 = vmatmul.mubr.f32.gmra.mrb[0].mxu0 %v701
      %v774 = vpop.f32.mrb[0].mxu0
      %v775 = vadd.f32 0.0, %v774
      %v776 = vpop.f32.mrb[0].mxu0
      %v777 = vadd.f32 0.0, %v776
      %778 = vdwg.mxu0
      %v780 = vsel %vm699, %v678, 0
      %v783 = vsel %vm703, %v695, 0
      %v786 = vsel %vm703, %v696, 0
      %788 = vmatprep.subr.mxu0 %v786
      %789 = vmatpush1.msra.mxu0 %v783
      %790 = vmatprep.subr.mxu0 0.0
      %791 = vmatpush1.msra.mxu0 0.0
      %792 = vmatprep.subr.mxu0 0.0
      %793 = vmatpush1.msra.mxu0 0.0
      %794 = vmatprep.subr.mxu0 0.0
      %795 = vmatpush1.msra.mxu0 0.0
      %796 = vmatprep.subr.mxu0 0.0
      %797 = vmatpush1.msra.mxu0 0.0
      %798 = vmatprep.subr.mxu0 0.0
      %799 = vmatpush1.msra.mxu0 0.0
      %800 = vmatprep.subr.mxu0 0.0
      %801 = vmatpush1.msra.mxu0 0.0
      %802 = vmatprep.subr.mxu0 0.0
      %803 = vmatpush1.msra.mxu0 0.0
      %804 = vmatprep.subr.mxu0 0.0
      %805 = vmatpush1.msra.mxu0 0.0
      %806 = vmatprep.subr.mxu0 0.0
      %807 = vmatpush1.msra.mxu0 0.0
      %808 = vmatprep.subr.mxu0 0.0
      %809 = vmatpush1.msra.mxu0 0.0
      %810 = vmatprep.subr.mxu0 0.0
      %811 = vmatpush1.msra.mxu0 0.0
      %812 = vmatprep.subr.mxu0 0.0
      %813 = vmatpush1.msra.mxu0 0.0
      %814 = vmatprep.subr.mxu0 0.0
      %815 = vmatpush1.msra.mxu0 0.0
      %816 = vmatprep.subr.mxu0 0.0
      %817 = vmatpush1.msra.mxu0 0.0
      %818 = vmatprep.subr.mxu0 0.0
      %819 = vmatpush1.msra.mxu0 0.0
      %820 = vmatprep.subr.mxu0 0.0
      %821 = vmatpush1.msra.mxu0 0.0
      %822 = vmatprep.subr.mxu0 0.0
      %823 = vmatpush1.msra.mxu0 0.0
      %824 = vmatprep.subr.mxu0 0.0
      %825 = vmatpush1.msra.mxu0 0.0
      %826 = vmatprep.subr.mxu0 0.0
      %827 = vmatpush1.msra.mxu0 0.0
      %828 = vmatprep.subr.mxu0 0.0
      %829 = vmatpush1.msra.mxu0 0.0
      %830 = vmatprep.subr.mxu0 0.0
      %831 = vmatpush1.msra.mxu0 0.0
      %832 = vmatprep.subr.mxu0 0.0
      %833 = vmatpush1.msra.mxu0 0.0
      %834 = vmatprep.subr.mxu0 0.0
      %835 = vmatpush1.msra.mxu0 0.0
      %836 = vmatprep.subr.mxu0 0.0
      %837 = vmatpush1.msra.mxu0 0.0
      %838 = vmatprep.subr.mxu0 0.0
      %839 = vmatpush1.msra.mxu0 0.0
      %840 = vmatprep.subr.mxu0 0.0
      %841 = vmatpush1.msra.mxu0 0.0
      %842 = vmatprep.subr.mxu0 0.0
      %843 = vmatpush1.msra.mxu0 0.0
      %844 = vmatprep.subr.mxu0 0.0
      %845 = vmatpush1.msra.mxu0 0.0
      %846 = vmatprep.subr.mxu0 0.0
      %847 = vmatpush1.msra.mxu0 0.0
      %848 = vmatprep.subr.mxu0 0.0
      %849 = vmatpush1.msra.mxu0 0.0
      %850 = vmatprep.subr.mxu0 0.0
      %851 = vmatpush1.msra.mxu0 0.0
      %852 = vmatprep.mubr.f32.mxu0 0.0
      %853 = vmatmul.mubr.f32.gmra.mrb[0].mxu0 %v780
      %v854 = vpop.f32.mrb[0].mxu0
      %v855 = vadd.f32 %v775, %v854
      %v856 = vpop.f32.mrb[0].mxu0
      %v857 = vadd.f32 %v777, %v856
      %858 = vdwg.mxu0
      %s859 = scalar_lea.vmem %s2, 32
      %v860 = vld [vmem:[%s859] sm:$0xf]
      %v861 = vld [vmem:[#allocation2 + $0x28] sm:$0xf]
      %v862 = vld [vmem:[#allocation2 + $0x30] sm:$0xf]
      %v863 = vld [vmem:[#allocation2 + $0x38] sm:$0xf]
      %867 = vrot.lane.b32.xlu0 %v861, 112
      %v868 = vpop.permute.xlu0 %867
      %869 = vrot.lane.b32.xlu0 %v862, 112
      %v870 = vpop.permute.xlu0 %869
      %871 = vrot.lane.b32.xlu0 %v863, 112
      %v872 = vpop.permute.xlu0 %871
      %v873 = vsel %vm628, %v868, %v870
      %v874 = vsel %vm628, %v870, %v872
      %v877 = vsel %vm620, %v873, 0.0
      %v878 = vsel %vm621, %v874, 0.0
      %v880 = vsel %vm699, %v860, 0
      %v883 = vsel %vm703, %v877, 0
      %v886 = vsel %vm703, %v878, 0
      %888 = vmatprep.subr.mxu0 %v886
      %889 = vmatpush1.msra.mxu0 %v883
      %890 = vmatprep.subr.mxu0 0.0
      %891 = vmatpush1.msra.mxu0 0.0
      %892 = vmatprep.subr.mxu0 0.0
      %893 = vmatpush1.msra.mxu0 0.0
      %894 = vmatprep.subr.mxu0 0.0
      %895 = vmatpush1.msra.mxu0 0.0
      %896 = vmatprep.subr.mxu0 0.0
      %897 = vmatpush1.msra.mxu0 0.0
      %898 = vmatprep.subr.mxu0 0.0
      %899 = vmatpush1.msra.mxu0 0.0
      %900 = vmatprep.subr.mxu0 0.0
      %901 = vmatpush1.msra.mxu0 0.0
      %902 = vmatprep.subr.mxu0 0.0
      %903 = vmatpush1.msra.mxu0 0.0
      %904 = vmatprep.subr.mxu0 0.0
      %905 = vmatpush1.msra.mxu0 0.0
      %906 = vmatprep.subr.mxu0 0.0
      %907 = vmatpush1.msra.mxu0 0.0
      %908 = vmatprep.subr.mxu0 0.0
      %909 = vmatpush1.msra.mxu0 0.0
      %910 = vmatprep.subr.mxu0 0.0
      %911 = vmatpush1.msra.mxu0 0.0
      %912 = vmatprep.subr.mxu0 0.0
      %913 = vmatpush1.msra.mxu0 0.0
      %914 = vmatprep.subr.mxu0 0.0
      %915 = vmatpush1.msra.mxu0 0.0
      %916 = vmatprep.subr.mxu0 0.0
      %917 = vmatpush1.msra.mxu0 0.0
      %918 = vmatprep.subr.mxu0 0.0
      %919 = vmatpush1.msra.mxu0 0.0
      %920 = vmatprep.subr.mxu0 0.0
      %921 = vmatpush1.msra.mxu0 0.0
      %922 = vmatprep.subr.mxu0 0.0
      %923 = vmatpush1.msra.mxu0 0.0
      %924 = vmatprep.subr.mxu0 0.0
      %925 = vmatpush1.msra.mxu0 0.0
      %926 = vmatprep.subr.mxu0 0.0
      %927 = vmatpush1.msra.mxu0 0.0
      %928 = vmatprep.subr.mxu0 0.0
      %929 = vmatpush1.msra.mxu0 0.0
      %930 = vmatprep.subr.mxu0 0.0
      %931 = vmatpush1.msra.mxu0 0.0
      %932 = vmatprep.subr.mxu0 0.0
      %933 = vmatpush1.msra.mxu0 0.0
      %934 = vmatprep.subr.mxu0 0.0
      %935 = vmatpush1.msra.mxu0 0.0
      %936 = vmatprep.subr.mxu0 0.0
      %937 = vmatpush1.msra.mxu0 0.0
      %938 = vmatprep.subr.mxu0 0.0
      %939 = vmatpush1.msra.mxu0 0.0
      %940 = vmatprep.subr.mxu0 0.0
      %941 = vmatpush1.msra.mxu0 0.0
      %942 = vmatprep.subr.mxu0 0.0
      %943 = vmatpush1.msra.mxu0 0.0
      %944 = vmatprep.subr.mxu0 0.0
      %945 = vmatpush1.msra.mxu0 0.0
      %946 = vmatprep.subr.mxu0 0.0
      %947 = vmatpush1.msra.mxu0 0.0
      %948 = vmatprep.subr.mxu0 0.0
      %949 = vmatpush1.msra.mxu0 0.0
      %950 = vmatprep.subr.mxu0 0.0
      %951 = vmatpush1.msra.mxu0 0.0
      %952 = vmatprep.mubr.f32.mxu0 0.0
      %953 = vmatmul.mubr.f32.gmra.mrb[0].mxu0 %v880
      %v954 = vpop.f32.mrb[0].mxu0
      %v955 = vadd.f32 0.0, %v954
      %v956 = vpop.f32.mrb[0].mxu0
      %v957 = vadd.f32 0.0, %v956
      %958 = vdwg.mxu0
      %v959 = vadd.f32 %v855, %v955
      %v960 = vadd.f32 %v857, %v957
      %v961 = vld [vmem:[%s5 + $0x20] sm:$0xf]
      %963 = vset.pattern.permute.xlu0 0
      %964 = vperm.xlu0 %963, %v961
      %v965 = vpop.permute.xlu0 %964
      %v967 = vadd.f32 %v959, %v965
      %v968 = vadd.f32 %v960, %v965
      %v969 = vmax.f32 %v967, 0.0
      %v970 = vmax.f32 %v968, 0.0
      %971 = vst [vmem:[#allocation2 + $0x88] sm:$0xf] %v969
      %972 = vst [vmem:[#allocation2 + $0x90] sm:$0xf] %v970
      %v973 = vld [vmem:[%s2 + $0x4] sm:$0xf]
      %v974 = vld [vmem:[#allocation2 + $0x40] sm:$0xf]
      %v975 = vld [vmem:[#allocation2 + $0x48] sm:$0xf]
      %v976 = vld [vmem:[#allocation2 + $0x50] sm:$0xf]
      %980 = vrot.lane.b32.xlu0 %v974, 1
      %v981 = vpop.permute.xlu0 %980
      %982 = vrot.lane.b32.xlu0 %v975, 1
      %v983 = vpop.permute.xlu0 %982
      %984 = vrot.lane.b32.xlu0 %v976, 1
      %v985 = vpop.permute.xlu0 %984
      %v986 = vsel %vm529, %v981, %v983
      %v987 = vsel %vm529, %v983, %v985
      %v990 = vsel %vm521, %v986, 0.0
      %v991 = vsel %vm522, %v987, 0.0
      %v992 = vld [vmem:[%s697 + $0x4] sm:$0xf]
      %v994 = vsel %vm699, %v992, 0
      %v996 = vsel %vm703, %v975, 0
      %v998 = vsel %vm703, %v976, 0
      %1000 = vmatprep.subr.mxu0 %v998
      %1001 = vmatpush1.msra.mxu0 %v996
      %1002 = vmatprep.subr.mxu0 0.0
      %1003 = vmatpush1.msra.mxu0 0.0
      %1004 = vmatprep.subr.mxu0 0.0
      %1005 = vmatpush1.msra.mxu0 0.0
      %1006 = vmatprep.subr.mxu0 0.0
      %1007 = vmatpush1.msra.mxu0 0.0
      %1008 = vmatprep.subr.mxu0 0.0
      %1009 = vmatpush1.msra.mxu0 0.0
      %1010 = vmatprep.subr.mxu0 0.0
      %1011 = vmatpush1.msra.mxu0 0.0
      %1012 = vmatprep.subr.mxu0 0.0
      %1013 = vmatpush1.msra.mxu0 0.0
      %1014 = vmatprep.subr.mxu0 0.0
      %1015 = vmatpush1.msra.mxu0 0.0
      %1016 = vmatprep.subr.mxu0 0.0
      %1017 = vmatpush1.msra.mxu0 0.0
      %1018 = vmatprep.subr.mxu0 0.0
      %1019 = vmatpush1.msra.mxu0 0.0
      %1020 = vmatprep.subr.mxu0 0.0
      %1021 = vmatpush1.msra.mxu0 0.0
      %1022 = vmatprep.subr.mxu0 0.0
      %1023 = vmatpush1.msra.mxu0 0.0
      %1024 = vmatprep.subr.mxu0 0.0
      %1025 = vmatpush1.msra.mxu0 0.0
      %1026 = vmatprep.subr.mxu0 0.0
      %1027 = vmatpush1.msra.mxu0 0.0
      %1028 = vmatprep.subr.mxu0 0.0
      %1029 = vmatpush1.msra.mxu0 0.0
      %1030 = vmatprep.subr.mxu0 0.0
      %1031 = vmatpush1.msra.mxu0 0.0
      %1032 = vmatprep.subr.mxu0 0.0
      %1033 = vmatpush1.msra.mxu0 0.0
      %1034 = vmatprep.subr.mxu0 0.0
      %1035 = vmatpush1.msra.mxu0 0.0
      %1036 = vmatprep.subr.mxu0 0.0
      %1037 = vmatpush1.msra.mxu0 0.0
      %1038 = vmatprep.subr.mxu0 0.0
      %1039 = vmatpush1.msra.mxu0 0.0
      %1040 = vmatprep.subr.mxu0 0.0
      %1041 = vmatpush1.msra.mxu0 0.0
      %1042 = vmatprep.subr.mxu0 0.0
      %1043 = vmatpush1.msra.mxu0 0.0
      %1044 = vmatprep.subr.mxu0 0.0
      %1045 = vmatpush1.msra.mxu0 0.0
      %1046 = vmatprep.subr.mxu0 0.0
      %1047 = vmatpush1.msra.mxu0 0.0
      %1048 = vmatprep.subr.mxu0 0.0
      %1049 = vmatpush1.msra.mxu0 0.0
      %1050 = vmatprep.subr.mxu0 0.0
      %1051 = vmatpush1.msra.mxu0 0.0
      %1052 = vmatprep.subr.mxu0 0.0
      %1053 = vmatpush1.msra.mxu0 0.0
      %1054 = vmatprep.subr.mxu0 0.0
      %1055 = vmatpush1.msra.mxu0 0.0
      %1056 = vmatprep.subr.mxu0 0.0
      %1057 = vmatpush1.msra.mxu0 0.0
      %1058 = vmatprep.subr.mxu0 0.0
      %1059 = vmatpush1.msra.mxu0 0.0
      %1060 = vmatprep.subr.mxu0 0.0
      %1061 = vmatpush1.msra.mxu0 0.0
      %1062 = vmatprep.subr.mxu0 0.0
      %1063 = vmatpush1.msra.mxu0 0.0
      %1064 = vmatprep.mubr.f32.mxu0 0.0
      %1065 = vmatmul.mubr.f32.gmra.mrb[0].mxu0 %v994
      %v1066 = vpop.f32.mrb[0].mxu0
      %v1067 = vadd.f32 0.0, %v1066
      %v1068 = vpop.f32.mrb[0].mxu0
      %v1069 = vadd.f32 0.0, %v1068
      %1070 = vdwg.mxu0
      %v1072 = vsel %vm699, %v973, 0
      %v1075 = vsel %vm703, %v990, 0
      %v1078 = vsel %vm703, %v991, 0
      %1080 = vmatprep.subr.mxu0 %v1078
      %1081 = vmatpush1.msra.mxu0 %v1075
      %1082 = vmatprep.subr.mxu0 0.0
      %1083 = vmatpush1.msra.mxu0 0.0
      %1084 = vmatprep.subr.mxu0 0.0
      %1085 = vmatpush1.msra.mxu0 0.0
      %1086 = vmatprep.subr.mxu0 0.0
      %1087 = vmatpush1.msra.mxu0 0.0
      %1088 = vmatprep.subr.mxu0 0.0
      %1089 = vmatpush1.msra.mxu0 0.0
      %1090 = vmatprep.subr.mxu0 0.0
      %1091 = vmatpush1.msra.mxu0 0.0
      %1092 = vmatprep.subr.mxu0 0.0
      %1093 = vmatpush1.msra.mxu0 0.0
      %1094 = vmatprep.subr.mxu0 0.0
      %1095 = vmatpush1.msra.mxu0 0.0
      %1096 = vmatprep.subr.mxu0 0.0
      %1097 = vmatpush1.msra.mxu0 0.0
      %1098 = vmatprep.subr.mxu0 0.0
      %1099 = vmatpush1.msra.mxu0 0.0
      %1100 = vmatprep.subr.mxu0 0.0
      %1101 = vmatpush1.msra.mxu0 0.0
      %1102 = vmatprep.subr.mxu0 0.0
      %1103 = vmatpush1.msra.mxu0 0.0
      %1104 = vmatprep.subr.mxu0 0.0
      %1105 = vmatpush1.msra.mxu0 0.0
      %1106 = vmatprep.subr.mxu0 0.0
      %1107 = vmatpush1.msra.mxu0 0.0
      %1108 = vmatprep.subr.mxu0 0.0
      %1109 = vmatpush1.msra.mxu0 0.0
      %1110 = vmatprep.subr.mxu0 0.0
      %1111 = vmatpush1.msra.mxu0 0.0
      %1112 = vmatprep.subr.mxu0 0.0
      %1113 = vmatpush1.msra.mxu0 0.0
      %1114 = vmatprep.subr.mxu0 0.0
      %1115 = vmatpush1.msra.mxu0 0.0
      %1116 = vmatprep.subr.mxu0 0.0
      %1117 = vmatpush1.msra.mxu0 0.0
      %1118 = vmatprep.subr.mxu0 0.0
      %1119 = vmatpush1.msra.mxu0 0.0
      %1120 = vmatprep.subr.mxu0 0.0
      %1121 = vmatpush1.msra.mxu0 0.0
      %1122 = vmatprep.subr.mxu0 0.0
      %1123 = vmatpush1.msra.mxu0 0.0
      %1124 = vmatprep.subr.mxu0 0.0
      %1125 = vmatpush1.msra.mxu0 0.0
      %1126 = vmatprep.subr.mxu0 0.0
      %1127 = vmatpush1.msra.mxu0 0.0
      %1128 = vmatprep.subr.mxu0 0.0
      %1129 = vmatpush1.msra.mxu0 0.0
      %1130 = vmatprep.subr.mxu0 0.0
      %1131 = vmatpush1.msra.mxu0 0.0
      %1132 = vmatprep.subr.mxu0 0.0
      %1133 = vmatpush1.msra.mxu0 0.0
      %1134 = vmatprep.subr.mxu0 0.0
      %1135 = vmatpush1.msra.mxu0 0.0
      %1136 = vmatprep.subr.mxu0 0.0
      %1137 = vmatpush1.msra.mxu0 0.0
      %1138 = vmatprep.subr.mxu0 0.0
      %1139 = vmatpush1.msra.mxu0 0.0
      %1140 = vmatprep.subr.mxu0 0.0
      %1141 = vmatpush1.msra.mxu0 0.0
      %1142 = vmatprep.subr.mxu0 0.0
      %1143 = vmatpush1.msra.mxu0 0.0
      %1144 = vmatprep.mubr.f32.mxu0 0.0
      %1145 = vmatmul.mubr.f32.gmra.mrb[0].mxu0 %v1072
      %v1146 = vpop.f32.mrb[0].mxu0
      %v1147 = vadd.f32 %v1067, %v1146
      %v1148 = vpop.f32.mrb[0].mxu0
      %v1149 = vadd.f32 %v1069, %v1148
      %1150 = vdwg.mxu0
      %v1151 = vld [vmem:[%s859 + $0x4] sm:$0xf]
      %v1152 = vld [vmem:[#allocation2 + $0x48] sm:$0xf]
      %v1153 = vld [vmem:[#allocation2 + $0x50] sm:$0xf]
      %v1154 = vld [vmem:[#allocation2 + $0x58] sm:$0xf]
      %1158 = vrot.lane.b32.xlu0 %v1152, 127
      %v1159 = vpop.permute.xlu0 %1158
      %1160 = vrot.lane.b32.xlu0 %v1153, 127
      %v1161 = vpop.permute.xlu0 %1160
      %1162 = vrot.lane.b32.xlu0 %v1154, 127
      %v1163 = vpop.permute.xlu0 %1162
      %v1164 = vsel %vm568, %v1159, %v1161
      %v1165 = vsel %vm568, %v1161, %v1163
      %v1168 = vsel %vm557, %v1164, 0.0
      %v1169 = vsel %vm558, %v1165, 0.0
      %v1171 = vsel %vm699, %v1151, 0
      %v1174 = vsel %vm703, %v1168, 0
      %v1177 = vsel %vm703, %v1169, 0
      %1179 = vmatprep.subr.mxu0 %v1177
      %1180 = vmatpush1.msra.mxu0 %v1174
      %1181 = vmatprep.subr.mxu0 0.0
      %1182 = vmatpush1.msra.mxu0 0.0
      %1183 = vmatprep.subr.mxu0 0.0
      %1184 = vmatpush1.msra.mxu0 0.0
      %1185 = vmatprep.subr.mxu0 0.0
      %1186 = vmatpush1.msra.mxu0 0.0
      %1187 = vmatprep.subr.mxu0 0.0
      %1188 = vmatpush1.msra.mxu0 0.0
      %1189 = vmatprep.subr.mxu0 0.0
      %1190 = vmatpush1.msra.mxu0 0.0
      %1191 = vmatprep.subr.mxu0 0.0
      %1192 = vmatpush1.msra.mxu0 0.0
      %1193 = vmatprep.subr.mxu0 0.0
      %1194 = vmatpush1.msra.mxu0 0.0
      %1195 = vmatprep.subr.mxu0 0.0
      %1196 = vmatpush1.msra.mxu0 0.0
      %1197 = vmatprep.subr.mxu0 0.0
      %1198 = vmatpush1.msra.mxu0 0.0
      %1199 = vmatprep.subr.mxu0 0.0
      %1200 = vmatpush1.msra.mxu0 0.0
      %1201 = vmatprep.subr.mxu0 0.0
      %1202 = vmatpush1.msra.mxu0 0.0
      %1203 = vmatprep.subr.mxu0 0.0
      %1204 = vmatpush1.msra.mxu0 0.0
      %1205 = vmatprep.subr.mxu0 0.0
      %1206 = vmatpush1.msra.mxu0 0.0
      %1207 = vmatprep.subr.mxu0 0.0
      %1208 = vmatpush1.msra.mxu0 0.0
      %1209 = vmatprep.subr.mxu0 0.0
      %1210 = vmatpush1.msra.mxu0 0.0
      %1211 = vmatprep.subr.mxu0 0.0
      %1212 = vmatpush1.msra.mxu0 0.0
      %1213 = vmatprep.subr.mxu0 0.0
      %1214 = vmatpush1.msra.mxu0 0.0
      %1215 = vmatprep.subr.mxu0 0.0
      %1216 = vmatpush1.msra.mxu0 0.0
      %1217 = vmatprep.subr.mxu0 0.0
      %1218 = vmatpush1.msra.mxu0 0.0
      %1219 = vmatprep.subr.mxu0 0.0
      %1220 = vmatpush1.msra.mxu0 0.0
      %1221 = vmatprep.subr.mxu0 0.0
      %1222 = vmatpush1.msra.mxu0 0.0
      %1223 = vmatprep.subr.mxu0 0.0
      %1224 = vmatpush1.msra.mxu0 0.0
      %1225 = vmatprep.subr.mxu0 0.0
      %1226 = vmatpush1.msra.mxu0 0.0
      %1227 = vmatprep.subr.mxu0 0.0
      %1228 = vmatpush1.msra.mxu0 0.0
      %1229 = vmatprep.subr.mxu0 0.0
      %1230 = vmatpush1.msra.mxu0 0.0
      %1231 = vmatprep.subr.mxu0 0.0
      %1232 = vmatpush1.msra.mxu0 0.0
      %1233 = vmatprep.subr.mxu0 0.0
      %1234 = vmatpush1.msra.mxu0 0.0
      %1235 = vmatprep.subr.mxu0 0.0
      %1236 = vmatpush1.msra.mxu0 0.0
      %1237 = vmatprep.subr.mxu0 0.0
      %1238 = vmatpush1.msra.mxu0 0.0
      %1239 = vmatprep.subr.mxu0 0.0
      %1240 = vmatpush1.msra.mxu0 0.0
      %1241 = vmatprep.subr.mxu0 0.0
      %1242 = vmatpush1.msra.mxu0 0.0
      %1243 = vmatprep.mubr.f32.mxu0 0.0
      %1244 = vmatmul.mubr.f32.gmra.mrb[0].mxu0 %v1171
      %v1245 = vpop.f32.mrb[0].mxu0
      %v1246 = vadd.f32 0.0, %v1245
      %v1247 = vpop.f32.mrb[0].mxu0
      %v1248 = vadd.f32 0.0, %v1247
      %1249 = vdwg.mxu0
      %v1250 = vadd.f32 %v1147, %v1246
      %v1251 = vadd.f32 %v1149, %v1248
      %v1252 = vld [vmem:[%s5 + $0x24] sm:$0xf]
      %1254 = vset.pattern.permute.xlu0 0
      %1255 = vperm.xlu0 %1254, %v1252
      %v1256 = vpop.permute.xlu0 %1255
      %v1258 = vadd.f32 %v1250, %v1256
      %v1259 = vadd.f32 %v1251, %v1256
      %v1260 = vmax.f32 %v1258, 0.0
      %v1261 = vmax.f32 %v1259, 0.0
      %v1264 = vrot.slane %v1260, 4
      %v1265 = vrot.slane %v1261, 4
      %1268 = vst [vmem:[#allocation2 + $0x88] sm:$0xf0] %v1264
      %1269 = vst [vmem:[#allocation2 + $0x90] sm:$0xf0] %v1265
      %v1270 = vld [vmem:[%s3 + $0x4] sm:$0xff]
      %v1271 = vld [vmem:[#allocation2 + $0x80] sm:$0xff]
      %v1272 = vld [vmem:[#allocation2 + $0x88] sm:$0xff]
      %v1273 = vld [vmem:[#allocation2 + $0x90] sm:$0xff]
      %v1274 = vadd.s32 %v255, 4294967293
      %v1275 = vadd.s32 %v256, 4294967293
      %vm1276 = vcmp.ge.s32.totalorder %v1274, 0
      %vm1277 = vcmp.ge.s32.totalorder %v1275, 0
      %vm1278 = vcmp.lt.s32.totalorder %v1274, 16
      %vm1279 = vcmp.lt.s32.totalorder %v1275, 16
      %vm1280 = vmand %vm1276, %vm1278
      %vm1281 = vmand %vm1277, %vm1279
      %v1282 = vadd.s32 %v259, 4294967248
      %v1283 = vadd.s32 %v260, 4294967248
      %vm1284 = vcmp.ge.s32.totalorder %v1282, 0
      %vm1285 = vcmp.ge.s32.totalorder %v1283, 0
      %vm1286 = vcmp.lt.s32.totalorder %v1282, 256
      %vm1287 = vcmp.lt.s32.totalorder %v1283, 256
      %vm1288 = vmand %vm1284, %vm1286
      %vm1289 = vmand %vm1285, %vm1287
      %vm1290 = vmand %vm1280, %vm1288
      %vm1291 = vmand %vm1281, %vm1289
      %v1292 = vsel %vm1290, 1, 0
      %v1293 = vsel %vm1291, 1, 0
      %vm1294 = vcmp.eq.s32.totalorder %v1292, 1
      %vm1295 = vcmp.eq.s32.totalorder %v1293, 1
      %1299 = vrot.lane.b32.xlu0 %v1271, 51
      %v1300 = vpop.permute.xlu0 %1299
      %1301 = vrot.lane.b32.xlu0 %v1272, 51
      %v1302 = vpop.permute.xlu0 %1301
      %1303 = vrot.lane.b32.xlu0 %v1273, 51
      %v1304 = vpop.permute.xlu0 %1303
      %vm1305 = vcmask 416768
      %v1306 = vsel %vm1305, %v1300, %v1302
      %v1307 = vsel %vm1305, %v1302, %v1304
      %v1310 = vsel %vm1294, %v1306, 0.0
      %v1311 = vsel %vm1295, %v1307, 0.0
      %1313 = vset.pattern.permute.xlu0 0
      %1314 = vperm.xlu0 %1313, %v1270
      %v1315 = vpop.permute.xlu0 %1314
      %v1317 = vmul.f32 %v1315, %v1310
      %v1318 = vmul.f32 %v1315, %v1311
      %v1319 = vsel %vm1288, 1, 0
      %v1320 = vsel %vm1289, 1, 0
      %vm1321 = vcmp.eq.s32.totalorder %v1319, 1
      %vm1322 = vcmp.eq.s32.totalorder %v1320, 1
      %1323 = vrot.lane.b32.xlu0 %v1271, 48
      %v1324 = vpop.permute.xlu0 %1323
      %1325 = vrot.lane.b32.xlu0 %v1272, 48
      %v1326 = vpop.permute.xlu0 %1325
      %1327 = vrot.lane.b32.xlu0 %v1273, 48
      %v1328 = vpop.permute.xlu0 %1327
      %vm1329 = vcmask 392192
      %v1330 = vsel %vm1329, %v1324, %v1326
      %v1331 = vsel %vm1329, %v1326, %v1328
      %v1334 = vsel %vm1321, %v1330, 0.0
      %v1335 = vsel %vm1322, %v1331, 0.0
      %1336 = vset.pattern.permute.xlu0 1
      %1337 = vperm.xlu0 %1336, %v1270
      %v1338 = vpop.permute.xlu0 %1337
      %v1340 = vmul.f32 %v1338, %v1334
      %v1341 = vmul.f32 %v1338, %v1335
      %v1342 = vadd.f32 %v1317, %v1340
      %v1343 = vadd.f32 %v1318, %v1341
      %v1344 = vadd.s32 %v255, 3
      %v1345 = vadd.s32 %v256, 3
      %vm1346 = vcmp.ge.s32.totalorder %v1344, 0
      %vm1347 = vcmp.ge.s32.totalorder %v1345, 0
      %vm1348 = vcmp.lt.s32.totalorder %v1344, 16
      %vm1349 = vcmp.lt.s32.totalorder %v1345, 16
      %vm1350 = vmand %vm1346, %vm1348
      %vm1351 = vmand %vm1347, %vm1349
      %vm1352 = vmand %vm1350, %vm1288
      %vm1353 = vmand %vm1351, %vm1289
      %v1354 = vsel %vm1352, 1, 0
      %v1355 = vsel %vm1353, 1, 0
      %vm1356 = vcmp.eq.s32.totalorder %v1354, 1
      %vm1357 = vcmp.eq.s32.totalorder %v1355, 1
      %1358 = vrot.lane.b32.xlu0 %v1271, 45
      %v1359 = vpop.permute.xlu0 %1358
      %1360 = vrot.lane.b32.xlu0 %v1272, 45
      %v1361 = vpop.permute.xlu0 %1360
      %1362 = vrot.lane.b32.xlu0 %v1273, 45
      %v1363 = vpop.permute.xlu0 %1362
      %vm1364 = vcmask 367616
      %v1365 = vsel %vm1364, %v1359, %v1361
      %v1366 = vsel %vm1364, %v1361, %v1363
      %v1369 = vsel %vm1356, %v1365, 0.0
      %v1370 = vsel %vm1357, %v1366, 0.0
      %1371 = vset.pattern.permute.xlu0 2
      %1372 = vperm.xlu0 %1371, %v1270
      %v1373 = vpop.permute.xlu0 %1372
      %v1375 = vmul.f32 %v1373, %v1369
      %v1376 = vmul.f32 %v1373, %v1370
      %v1377 = vadd.f32 %v1342, %v1375
      %v1378 = vadd.f32 %v1343, %v1376
      %v1379 = vsel %vm1280, 1, 0
      %v1380 = vsel %vm1281, 1, 0
      %vm1381 = vcmp.eq.s32.totalorder %v1379, 1
      %vm1382 = vcmp.eq.s32.totalorder %v1380, 1
      %1383 = vrot.lane.b32.xlu0 %v1271, 3
      %v1384 = vpop.permute.xlu0 %1383
      %1385 = vrot.lane.b32.xlu0 %v1272, 3
      %v1386 = vpop.permute.xlu0 %1385
      %1387 = vrot.lane.b32.xlu0 %v1273, 3
      %v1388 = vpop.permute.xlu0 %1387
      %vm1389 = vcmask 23552
      %v1390 = vsel %vm1389, %v1384, %v1386
      %v1391 = vsel %vm1389, %v1386, %v1388
      %v1394 = vsel %vm1381, %v1390, 0.0
      %v1395 = vsel %vm1382, %v1391, 0.0
      %1396 = vset.pattern.permute.xlu0 3
      %1397 = vperm.xlu0 %1396, %v1270
      %v1398 = vpop.permute.xlu0 %1397
      %v1400 = vmul.f32 %v1398, %v1394
      %v1401 = vmul.f32 %v1398, %v1395
      %v1402 = vadd.f32 %v1377, %v1400
      %v1403 = vadd.f32 %v1378, %v1401
      %1404 = vset.pattern.permute.xlu0 4
      %1405 = vperm.xlu0 %1404, %v1270
      %v1406 = vpop.permute.xlu0 %1405
      %v1408 = vmul.f32 %v1406, %v1272
      %v1409 = vmul.f32 %v1406, %v1273
      %v1410 = vadd.f32 %v1402, %v1408
      %v1411 = vadd.f32 %v1403, %v1409
      %v1412 = vld [vmem:[#allocation2 + $0x88] sm:$0xff]
      %v1413 = vld [vmem:[#allocation2 + $0x90] sm:$0xff]
      %v1414 = vld [vmem:[#allocation2 + $0x98] sm:$0xff]
      %v1415 = vsel %vm1350, 1, 0
      %v1416 = vsel %vm1351, 1, 0
      %vm1417 = vcmp.eq.s32.totalorder %v1415, 1
      %vm1418 = vcmp.eq.s32.totalorder %v1416, 1
      %1422 = vrot.lane.b32.xlu0 %v1412, 125
      %v1423 = vpop.permute.xlu0 %1422
      %1424 = vrot.lane.b32.xlu0 %v1413, 125
      %v1425 = vpop.permute.xlu0 %1424
      %1426 = vrot.lane.b32.xlu0 %v1414, 125
      %v1427 = vpop.permute.xlu0 %1426
      %vm1428 = vcmask 1022976
      %v1429 = vsel %vm1428, %v1423, %v1425
      %v1430 = vsel %vm1428, %v1425, %v1427
      %v1433 = vsel %vm1417, %v1429, 0.0
      %v1434 = vsel %vm1418, %v1430, 0.0
      %1435 = vset.pattern.permute.xlu0 5
      %1436 = vperm.xlu0 %1435, %v1270
      %v1437 = vpop.permute.xlu0 %1436
      %v1439 = vmul.f32 %v1437, %v1433
      %v1440 = vmul.f32 %v1437, %v1434
      %v1441 = vadd.f32 %v1410, %v1439
      %v1442 = vadd.f32 %v1411, %v1440
      %v1443 = vadd.s32 %v259, 48
      %v1444 = vadd.s32 %v260, 48
      %vm1445 = vcmp.ge.s32.totalorder %v1443, 0
      %vm1446 = vcmp.ge.s32.totalorder %v1444, 0
      %vm1447 = vcmp.lt.s32.totalorder %v1443, 256
      %vm1448 = vcmp.lt.s32.totalorder %v1444, 256
      %vm1449 = vmand %vm1445, %vm1447
      %vm1450 = vmand %vm1446, %vm1448
      %vm1451 = vmand %vm1280, %vm1449
      %vm1452 = vmand %vm1281, %vm1450
      %v1453 = vsel %vm1451, 1, 0
      %v1454 = vsel %vm1452, 1, 0
      %vm1455 = vcmp.eq.s32.totalorder %v1453, 1
      %vm1456 = vcmp.eq.s32.totalorder %v1454, 1
      %1457 = vrot.lane.b32.xlu0 %v1412, 83
      %v1458 = vpop.permute.xlu0 %1457
      %1459 = vrot.lane.b32.xlu0 %v1413, 83
      %v1460 = vpop.permute.xlu0 %1459
      %1461 = vrot.lane.b32.xlu0 %v1414, 83
      %v1462 = vpop.permute.xlu0 %1461
      %vm1463 = vcmask 678912
      %v1464 = vsel %vm1463, %v1458, %v1460
      %v1465 = vsel %vm1463, %v1460, %v1462
      %v1468 = vsel %vm1455, %v1464, 0.0
      %v1469 = vsel %vm1456, %v1465, 0.0
      %1470 = vset.pattern.permute.xlu0 6
      %1471 = vperm.xlu0 %1470, %v1270
      %v1472 = vpop.permute.xlu0 %1471
      %v1474 = vmul.f32 %v1472, %v1468
      %v1475 = vmul.f32 %v1472, %v1469
      %v1476 = vadd.f32 %v1441, %v1474
      %v1477 = vadd.f32 %v1442, %v1475
      %v1478 = vsel %vm1449, 1, 0
      %v1479 = vsel %vm1450, 1, 0
      %vm1480 = vcmp.eq.s32.totalorder %v1478, 1
      %vm1481 = vcmp.eq.s32.totalorder %v1479, 1
      %1482 = vrot.lane.b32.xlu0 %v1412, 80
      %v1483 = vpop.permute.xlu0 %1482
      %1484 = vrot.lane.b32.xlu0 %v1413, 80
      %v1485 = vpop.permute.xlu0 %1484
      %1486 = vrot.lane.b32.xlu0 %v1414, 80
      %v1487 = vpop.permute.xlu0 %1486
      %vm1488 = vcmask 654336
      %v1489 = vsel %vm1488, %v1483, %v1485
      %v1490 = vsel %vm1488, %v1485, %v1487
      %v1493 = vsel %vm1480, %v1489, 0.0
      %v1494 = vsel %vm1481, %v1490, 0.0
      %1495 = vset.pattern.permute.xlu0 7
      %1496 = vperm.xlu0 %1495, %v1270
      %v1497 = vpop.permute.xlu0 %1496
      %v1499 = vmul.f32 %v1497, %v1493
      %v1500 = vmul.f32 %v1497, %v1494
      %v1501 = vadd.f32 %v1476, %v1499
      %v1502 = vadd.f32 %v1477, %v1500
      %vm1503 = vmand %vm1350, %vm1449
      %vm1504 = vmand %vm1351, %vm1450
      %v1505 = vsel %vm1503, 1, 0
      %v1506 = vsel %vm1504, 1, 0
      %vm1507 = vcmp.eq.s32.totalorder %v1505, 1
      %vm1508 = vcmp.eq.s32.totalorder %v1506, 1
      %1509 = vrot.lane.b32.xlu0 %v1412, 77
      %v1510 = vpop.permute.xlu0 %1509
      %1511 = vrot.lane.b32.xlu0 %v1413, 77
      %v1512 = vpop.permute.xlu0 %1511
      %1513 = vrot.lane.b32.xlu0 %v1414, 77
      %v1514 = vpop.permute.xlu0 %1513
      %vm1515 = vcmask 629760
      %v1516 = vsel %vm1515, %v1510, %v1512
      %v1517 = vsel %vm1515, %v1512, %v1514
      %v1520 = vsel %vm1507, %v1516, 0.0
      %v1521 = vsel %vm1508, %v1517, 0.0
      %1522 = vset.pattern.permute.xlu0 8
      %1523 = vperm.xlu0 %1522, %v1270
      %v1524 = vpop.permute.xlu0 %1523
      %v1526 = vmul.f32 %v1524, %v1520
      %v1527 = vmul.f32 %v1524, %v1521
      %v1528 = vadd.f32 %v1501, %v1526
      %v1529 = vadd.f32 %v1502, %v1527
      %v1530 = vld [vmem:[%s5 + $0x33] sm:$0xff]
      %1532 = vset.pattern.permute.xlu0 0
      %1533 = vperm.xlu0 %1532, %v1530
      %v1534 = vpop.permute.xlu0 %1533
      %v1536 = vadd.f32 %v1528, %v1534
      %v1537 = vadd.f32 %v1529, %v1534
      %v1538 = vld [vmem:[%s2 + $0x8] sm:$0x7]
      %v1539 = vld [vmem:[#allocation2 + $0x60] sm:$0x3]
      %v1540 = vld [vmem:[#allocation2 + $0x68] sm:$0x3]
      %v1541 = vld [vmem:[#allocation2 + $0x70] sm:$0x3]
      %1545 = vrot.lane.b32.xlu0 %v1539, 1
      %v1546 = vpop.permute.xlu0 %1545
      %1547 = vrot.lane.b32.xlu0 %v1540, 1
      %v1548 = vpop.permute.xlu0 %1547
      %1549 = vrot.lane.b32.xlu0 %v1541, 1
      %v1550 = vpop.permute.xlu0 %1549
      %v1551 = vsel %vm529, %v1546, %v1548
      %v1552 = vsel %vm529, %v1548, %v1550
      %v1555 = vsel %vm521, %v1551, 0.0
      %v1556 = vsel %vm522, %v1552, 0.0
      %v1557 = vld [vmem:[%s697 + $0x8] sm:$0x7]
      %vm1558 = vcmask 15360
      %v1560 = vsel %vm1558, %v1557, 0
      %vm1562 = vcmask 1041408
      %v1563 = vsel %vm1562, %v1540, 0
      %v1565 = vsel %vm1562, %v1541, 0
      %1567 = vmatprep.subr.mxu0 %v1565
      %1568 = vmatpush1.msra.mxu0 %v1563
      %1569 = vmatprep.subr.mxu0 0.0
      %1570 = vmatpush1.msra.mxu0 0.0
      %1571 = vmatprep.subr.mxu0 0.0
      %1572 = vmatpush1.msra.mxu0 0.0
      %1573 = vmatprep.subr.mxu0 0.0
      %1574 = vmatpush1.msra.mxu0 0.0
      %1575 = vmatprep.subr.mxu0 0.0
      %1576 = vmatpush1.msra.mxu0 0.0
      %1577 = vmatprep.subr.mxu0 0.0
      %1578 = vmatpush1.msra.mxu0 0.0
      %1579 = vmatprep.subr.mxu0 0.0
      %1580 = vmatpush1.msra.mxu0 0.0
      %1581 = vmatprep.subr.mxu0 0.0
      %1582 = vmatpush1.msra.mxu0 0.0
      %1583 = vmatprep.subr.mxu0 0.0
      %1584 = vmatpush1.msra.mxu0 0.0
      %1585 = vmatprep.subr.mxu0 0.0
      %1586 = vmatpush1.msra.mxu0 0.0
      %1587 = vmatprep.subr.mxu0 0.0
      %1588 = vmatpush1.msra.mxu0 0.0
      %1589 = vmatprep.subr.mxu0 0.0
      %1590 = vmatpush1.msra.mxu0 0.0
      %1591 = vmatprep.subr.mxu0 0.0
      %1592 = vmatpush1.msra.mxu0 0.0
      %1593 = vmatprep.subr.mxu0 0.0
      %1594 = vmatpush1.msra.mxu0 0.0
      %1595 = vmatprep.subr.mxu0 0.0
      %1596 = vmatpush1.msra.mxu0 0.0
      %1597 = vmatprep.subr.mxu0 0.0
      %1598 = vmatpush1.msra.mxu0 0.0
      %1599 = vmatprep.subr.mxu0 0.0
      %1600 = vmatpush1.msra.mxu0 0.0
      %1601 = vmatprep.subr.mxu0 0.0
      %1602 = vmatpush1.msra.mxu0 0.0
      %1603 = vmatprep.subr.mxu0 0.0
      %1604 = vmatpush1.msra.mxu0 0.0
      %1605 = vmatprep.subr.mxu0 0.0
      %1606 = vmatpush1.msra.mxu0 0.0
      %1607 = vmatprep.subr.mxu0 0.0
      %1608 = vmatpush1.msra.mxu0 0.0
      %1609 = vmatprep.subr.mxu0 0.0
      %1610 = vmatpush1.msra.mxu0 0.0
      %1611 = vmatprep.subr.mxu0 0.0
      %1612 = vmatpush1.msra.mxu0 0.0
      %1613 = vmatprep.subr.mxu0 0.0
      %1614 = vmatpush1.msra.mxu0 0.0
      %1615 = vmatprep.subr.mxu0 0.0
      %1616 = vmatpush1.msra.mxu0 0.0
      %1617 = vmatprep.subr.mxu0 0.0
      %1618 = vmatpush1.msra.mxu0 0.0
      %1619 = vmatprep.subr.mxu0 0.0
      %1620 = vmatpush1.msra.mxu0 0.0
      %1621 = vmatprep.subr.mxu0 0.0
      %1622 = vmatpush1.msra.mxu0 0.0
      %1623 = vmatprep.subr.mxu0 0.0
      %1624 = vmatpush1.msra.mxu0 0.0
      %1625 = vmatprep.subr.mxu0 0.0
      %1626 = vmatpush1.msra.mxu0 0.0
      %1627 = vmatprep.subr.mxu0 0.0
      %1628 = vmatpush1.msra.mxu0 0.0
      %1629 = vmatprep.subr.mxu0 0.0
      %1630 = vmatpush1.msra.mxu0 0.0
      %1631 = vmatprep.mubr.f32.mxu0 0.0
      %1632 = vmatmul.mubr.f32.gmra.mrb[0].mxu0 %v1560
      %v1633 = vpop.f32.mrb[0].mxu0
      %v1634 = vadd.f32 0.0, %v1633
      %v1635 = vpop.f32.mrb[0].mxu0
      %v1636 = vadd.f32 0.0, %v1635
      %1637 = vdwg.mxu0
      %v1639 = vsel %vm1558, %v1538, 0
      %v1642 = vsel %vm1562, %v1555, 0
      %v1645 = vsel %vm1562, %v1556, 0
      %1647 = vmatprep.subr.mxu0 %v1645
      %1648 = vmatpush1.msra.mxu0 %v1642
      %1649 = vmatprep.subr.mxu0 0.0
      %1650 = vmatpush1.msra.mxu0 0.0
      %1651 = vmatprep.subr.mxu0 0.0
      %1652 = vmatpush1.msra.mxu0 0.0
      %1653 = vmatprep.subr.mxu0 0.0
      %1654 = vmatpush1.msra.mxu0 0.0
      %1655 = vmatprep.subr.mxu0 0.0
      %1656 = vmatpush1.msra.mxu0 0.0
      %1657 = vmatprep.subr.mxu0 0.0
      %1658 = vmatpush1.msra.mxu0 0.0
      %1659 = vmatprep.subr.mxu0 0.0
      %1660 = vmatpush1.msra.mxu0 0.0
      %1661 = vmatprep.subr.mxu0 0.0
      %1662 = vmatpush1.msra.mxu0 0.0
      %1663 = vmatprep.subr.mxu0 0.0
      %1664 = vmatpush1.msra.mxu0 0.0
      %1665 = vmatprep.subr.mxu0 0.0
      %1666 = vmatpush1.msra.mxu0 0.0
      %1667 = vmatprep.subr.mxu0 0.0
      %1668 = vmatpush1.msra.mxu0 0.0
      %1669 = vmatprep.subr.mxu0 0.0
      %1670 = vmatpush1.msra.mxu0 0.0
      %1671 = vmatprep.subr.mxu0 0.0
      %1672 = vmatpush1.msra.mxu0 0.0
      %1673 = vmatprep.subr.mxu0 0.0
      %1674 = vmatpush1.msra.mxu0 0.0
      %1675 = vmatprep.subr.mxu0 0.0
      %1676 = vmatpush1.msra.mxu0 0.0
      %1677 = vmatprep.subr.mxu0 0.0
      %1678 = vmatpush1.msra.mxu0 0.0
      %1679 = vmatprep.subr.mxu0 0.0
      %1680 = vmatpush1.msra.mxu0 0.0
      %1681 = vmatprep.subr.mxu0 0.0
      %1682 = vmatpush1.msra.mxu0 0.0
      %1683 = vmatprep.subr.mxu0 0.0
      %1684 = vmatpush1.msra.mxu0 0.0
      %1685 = vmatprep.subr.mxu0 0.0
      %1686 = vmatpush1.msra.mxu0 0.0
      %1687 = vmatprep.subr.mxu0 0.0
      %1688 = vmatpush1.msra.mxu0 0.0
      %1689 = vmatprep.subr.mxu0 0.0
      %1690 = vmatpush1.msra.mxu0 0.0
      %1691 = vmatprep.subr.mxu0 0.0
      %1692 = vmatpush1.msra.mxu0 0.0
      %1693 = vmatprep.subr.mxu0 0.0
      %1694 = vmatpush1.msra.mxu0 0.0
      %1695 = vmatprep.subr.mxu0 0.0
      %1696 = vmatpush1.msra.mxu0 0.0
      %1697 = vmatprep.subr.mxu0 0.0
      %1698 = vmatpush1.msra.mxu0 0.0
      %1699 = vmatprep.subr.mxu0 0.0
      %1700 = vmatpush1.msra.mxu0 0.0
      %1701 = vmatprep.subr.mxu0 0.0
      %1702 = vmatpush1.msra.mxu0 0.0
      %1703 = vmatprep.subr.mxu0 0.0
      %1704 = vmatpush1.msra.mxu0 0.0
      %1705 = vmatprep.subr.mxu0 0.0
      %1706 = vmatpush1.msra.mxu0 0.0
      %1707 = vmatprep.subr.mxu0 0.0
      %1708 = vmatpush1.msra.mxu0 0.0
      %1709 = vmatprep.subr.mxu0 0.0
      %1710 = vmatpush1.msra.mxu0 0.0
      %1711 = vmatprep.mubr.f32.mxu0 0.0
      %1712 = vmatmul.mubr.f32.gmra.mrb[0].mxu0 %v1639
      %v1713 = vpop.f32.mrb[0].mxu0
      %v1714 = vadd.f32 %v1634, %v1713
      %v1715 = vpop.f32.mrb[0].mxu0
      %v1716 = vadd.f32 %v1636, %v1715
      %1717 = vdwg.mxu0
      %v1718 = vld [vmem:[%s859 + $0x8] sm:$0x7]
      %v1719 = vld [vmem:[#allocation2 + $0x68] sm:$0x3]
      %v1720 = vld [vmem:[#allocation2 + $0x70] sm:$0x3]
      %v1721 = vld [vmem:[#allocation2 + $0x78] sm:$0x3]
      %1725 = vrot.lane.b32.xlu0 %v1719, 127
      %v1726 = vpop.permute.xlu0 %1725
      %1727 = vrot.lane.b32.xlu0 %v1720, 127
      %v1728 = vpop.permute.xlu0 %1727
      %1729 = vrot.lane.b32.xlu0 %v1721, 127
      %v1730 = vpop.permute.xlu0 %1729
      %v1731 = vsel %vm568, %v1726, %v1728
      %v1732 = vsel %vm568, %v1728, %v1730
      %v1735 = vsel %vm557, %v1731, 0.0
      %v1736 = vsel %vm558, %v1732, 0.0
      %v1738 = vsel %vm1558, %v1718, 0
      %v1741 = vsel %vm1562, %v1735, 0
      %v1744 = vsel %vm1562, %v1736, 0
      %1746 = vmatprep.subr.mxu0 %v1744
      %1747 = vmatpush1.msra.mxu0 %v1741
      %1748 = vmatprep.subr.mxu0 0.0
      %1749 = vmatpush1.msra.mxu0 0.0
      %1750 = vmatprep.subr.mxu0 0.0
      %1751 = vmatpush1.msra.mxu0 0.0
      %1752 = vmatprep.subr.mxu0 0.0
      %1753 = vmatpush1.msra.mxu0 0.0
      %1754 = vmatprep.subr.mxu0 0.0
      %1755 = vmatpush1.msra.mxu0 0.0
      %1756 = vmatprep.subr.mxu0 0.0
      %1757 = vmatpush1.msra.mxu0 0.0
      %1758 = vmatprep.subr.mxu0 0.0
      %1759 = vmatpush1.msra.mxu0 0.0
      %1760 = vmatprep.subr.mxu0 0.0
      %1761 = vmatpush1.msra.mxu0 0.0
      %1762 = vmatprep.subr.mxu0 0.0
      %1763 = vmatpush1.msra.mxu0 0.0
      %1764 = vmatprep.subr.mxu0 0.0
      %1765 = vmatpush1.msra.mxu0 0.0
      %1766 = vmatprep.subr.mxu0 0.0
      %1767 = vmatpush1.msra.mxu0 0.0
      %1768 = vmatprep.subr.mxu0 0.0
      %1769 = vmatpush1.msra.mxu0 0.0
      %1770 = vmatprep.subr.mxu0 0.0
      %1771 = vmatpush1.msra.mxu0 0.0
      %1772 = vmatprep.subr.mxu0 0.0
      %1773 = vmatpush1.msra.mxu0 0.0
      %1774 = vmatprep.subr.mxu0 0.0
      %1775 = vmatpush1.msra.mxu0 0.0
      %1776 = vmatprep.subr.mxu0 0.0
      %1777 = vmatpush1.msra.mxu0 0.0
      %1778 = vmatprep.subr.mxu0 0.0
      %1779 = vmatpush1.msra.mxu0 0.0
      %1780 = vmatprep.subr.mxu0 0.0
      %1781 = vmatpush1.msra.mxu0 0.0
      %1782 = vmatprep.subr.mxu0 0.0
      %1783 = vmatpush1.msra.mxu0 0.0
      %1784 = vmatprep.subr.mxu0 0.0
      %1785 = vmatpush1.msra.mxu0 0.0
      %1786 = vmatprep.subr.mxu0 0.0
      %1787 = vmatpush1.msra.mxu0 0.0
      %1788 = vmatprep.subr.mxu0 0.0
      %1789 = vmatpush1.msra.mxu0 0.0
      %1790 = vmatprep.subr.mxu0 0.0
      %1791 = vmatpush1.msra.mxu0 0.0
      %1792 = vmatprep.subr.mxu0 0.0
      %1793 = vmatpush1.msra.mxu0 0.0
      %1794 = vmatprep.subr.mxu0 0.0
      %1795 = vmatpush1.msra.mxu0 0.0
      %1796 = vmatprep.subr.mxu0 0.0
      %1797 = vmatpush1.msra.mxu0 0.0
      %1798 = vmatprep.subr.mxu0 0.0
      %1799 = vmatpush1.msra.mxu0 0.0
      %1800 = vmatprep.subr.mxu0 0.0
      %1801 = vmatpush1.msra.mxu0 0.0
      %1802 = vmatprep.subr.mxu0 0.0
      %1803 = vmatpush1.msra.mxu0 0.0
      %1804 = vmatprep.subr.mxu0 0.0
      %1805 = vmatpush1.msra.mxu0 0.0
      %1806 = vmatprep.subr.mxu0 0.0
      %1807 = vmatpush1.msra.mxu0 0.0
      %1808 = vmatprep.subr.mxu0 0.0
      %1809 = vmatpush1.msra.mxu0 0.0
      %1810 = vmatprep.mubr.f32.mxu0 0.0
      %1811 = vmatmul.mubr.f32.gmra.mrb[0].mxu0 %v1738
      %v1812 = vpop.f32.mrb[0].mxu0
      %v1813 = vadd.f32 0.0, %v1812
      %v1814 = vpop.f32.mrb[0].mxu0
      %v1815 = vadd.f32 0.0, %v1814
      %1816 = vdwg.mxu0
      %v1817 = vadd.f32 %v1714, %v1813
      %v1818 = vadd.f32 %v1716, %v1815
      %v1819 = vld [vmem:[%s5 + $0x28] sm:$0x7]
      %1821 = vset.pattern.permute.xlu0 0
      %1822 = vperm.xlu0 %1821, %v1819
      %v1823 = vpop.permute.xlu0 %1822
      %v1825 = vadd.f32 %v1817, %v1823
      %v1826 = vadd.f32 %v1818, %v1823
      %v1827 = vmax.f32 %v1825, 0.0
      %v1828 = vmax.f32 %v1826, 0.0
      %1829 = vst [vmem:[#allocation2 + $0xa8] sm:$0x7] %v1827
      %1830 = vst [vmem:[#allocation2 + $0xb0] sm:$0x7] %v1828
      %v1831 = vld [vmem:[%s2 + $0xb] sm:$0xf]
      %v1832 = vld [vmem:[#allocation2 + $0xa0] sm:$0x7]
      %v1833 = vld [vmem:[#allocation2 + $0xa8] sm:$0x7]
      %v1834 = vld [vmem:[#allocation2 + $0xb0] sm:$0x7]
      %1838 = vrot.lane.b32.xlu0 %v1832, 16
      %v1839 = vpop.permute.xlu0 %1838
      %1840 = vrot.lane.b32.xlu0 %v1833, 16
      %v1841 = vpop.permute.xlu0 %1840
      %1842 = vrot.lane.b32.xlu0 %v1834, 16
      %v1843 = vpop.permute.xlu0 %1842
      %v1844 = vsel %vm293, %v1839, %v1841
      %v1845 = vsel %vm293, %v1841, %v1843
      %v1848 = vsel %vm462, %v1844, 0.0
      %v1849 = vsel %vm463, %v1845, 0.0
      %v1850 = vld [vmem:[%s697 + $0xb] sm:$0xf]
      %v1852 = vsel %vm1389, %v1850, 0
      %vm1854 = vcmask 1042432
      %v1855 = vsel %vm1854, %v1833, 0
      %v1857 = vsel %vm1854, %v1834, 0
      %1859 = vmatprep.subr.mxu0 %v1857
      %1860 = vmatpush1.msra.mxu0 %v1855
      %1861 = vmatprep.subr.mxu0 0.0
      %1862 = vmatpush1.msra.mxu0 0.0
      %1863 = vmatprep.subr.mxu0 0.0
      %1864 = vmatpush1.msra.mxu0 0.0
      %1865 = vmatprep.subr.mxu0 0.0
      %1866 = vmatpush1.msra.mxu0 0.0
      %1867 = vmatprep.subr.mxu0 0.0
      %1868 = vmatpush1.msra.mxu0 0.0
      %1869 = vmatprep.subr.mxu0 0.0
      %1870 = vmatpush1.msra.mxu0 0.0
      %1871 = vmatprep.subr.mxu0 0.0
      %1872 = vmatpush1.msra.mxu0 0.0
      %1873 = vmatprep.subr.mxu0 0.0
      %1874 = vmatpush1.msra.mxu0 0.0
      %1875 = vmatprep.subr.mxu0 0.0
      %1876 = vmatpush1.msra.mxu0 0.0
      %1877 = vmatprep.subr.mxu0 0.0
      %1878 = vmatpush1.msra.mxu0 0.0
      %1879 = vmatprep.subr.mxu0 0.0
      %1880 = vmatpush1.msra.mxu0 0.0
      %1881 = vmatprep.subr.mxu0 0.0
      %1882 = vmatpush1.msra.mxu0 0.0
      %1883 = vmatprep.subr.mxu0 0.0
      %1884 = vmatpush1.msra.mxu0 0.0
      %1885 = vmatprep.subr.mxu0 0.0
      %1886 = vmatpush1.msra.mxu0 0.0
      %1887 = vmatprep.subr.mxu0 0.0
      %1888 = vmatpush1.msra.mxu0 0.0
      %1889 = vmatprep.subr.mxu0 0.0
      %1890 = vmatpush1.msra.mxu0 0.0
      %1891 = vmatprep.subr.mxu0 0.0
      %1892 = vmatpush1.msra.mxu0 0.0
      %1893 = vmatprep.subr.mxu0 0.0
      %1894 = vmatpush1.msra.mxu0 0.0
      %1895 = vmatprep.subr.mxu0 0.0
      %1896 = vmatpush1.msra.mxu0 0.0
      %1897 = vmatprep.subr.mxu0 0.0
      %1898 = vmatpush1.msra.mxu0 0.0
      %1899 = vmatprep.subr.mxu0 0.0
      %1900 = vmatpush1.msra.mxu0 0.0
      %1901 = vmatprep.subr.mxu0 0.0
      %1902 = vmatpush1.msra.mxu0 0.0
      %1903 = vmatprep.subr.mxu0 0.0
      %1904 = vmatpush1.msra.mxu0 0.0
      %1905 = vmatprep.subr.mxu0 0.0
      %1906 = vmatpush1.msra.mxu0 0.0
      %1907 = vmatprep.subr.mxu0 0.0
      %1908 = vmatpush1.msra.mxu0 0.0
      %1909 = vmatprep.subr.mxu0 0.0
      %1910 = vmatpush1.msra.mxu0 0.0
      %1911 = vmatprep.subr.mxu0 0.0
      %1912 = vmatpush1.msra.mxu0 0.0
      %1913 = vmatprep.subr.mxu0 0.0
      %1914 = vmatpush1.msra.mxu0 0.0
      %1915 = vmatprep.subr.mxu0 0.0
      %1916 = vmatpush1.msra.mxu0 0.0
      %1917 = vmatprep.subr.mxu0 0.0
      %1918 = vmatpush1.msra.mxu0 0.0
      %1919 = vmatprep.subr.mxu0 0.0
      %1920 = vmatpush1.msra.mxu0 0.0
      %1921 = vmatprep.subr.mxu0 0.0
      %1922 = vmatpush1.msra.mxu0 0.0
      %1923 = vmatprep.mubr.f32.mxu0 0.0
      %1924 = vmatmul.mubr.f32.gmra.mrb[0].mxu0 %v1852
      %v1925 = vpop.f32.mrb[0].mxu0
      %v1926 = vadd.f32 0.0, %v1925
      %v1927 = vpop.f32.mrb[0].mxu0
      %v1928 = vadd.f32 0.0, %v1927
      %1929 = vdwg.mxu0
      %v1931 = vsel %vm1389, %v1831, 0
      %v1934 = vsel %vm1854, %v1848, 0
      %v1937 = vsel %vm1854, %v1849, 0
      %1939 = vmatprep.subr.mxu0 %v1937
      %1940 = vmatpush1.msra.mxu0 %v1934
      %1941 = vmatprep.subr.mxu0 0.0
      %1942 = vmatpush1.msra.mxu0 0.0
      %1943 = vmatprep.subr.mxu0 0.0
      %1944 = vmatpush1.msra.mxu0 0.0
      %1945 = vmatprep.subr.mxu0 0.0
      %1946 = vmatpush1.msra.mxu0 0.0
      %1947 = vmatprep.subr.mxu0 0.0
      %1948 = vmatpush1.msra.mxu0 0.0
      %1949 = vmatprep.subr.mxu0 0.0
      %1950 = vmatpush1.msra.mxu0 0.0
      %1951 = vmatprep.subr.mxu0 0.0
      %1952 = vmatpush1.msra.mxu0 0.0
      %1953 = vmatprep.subr.mxu0 0.0
      %1954 = vmatpush1.msra.mxu0 0.0
      %1955 = vmatprep.subr.mxu0 0.0
      %1956 = vmatpush1.msra.mxu0 0.0
      %1957 = vmatprep.subr.mxu0 0.0
      %1958 = vmatpush1.msra.mxu0 0.0
      %1959 = vmatprep.subr.mxu0 0.0
      %1960 = vmatpush1.msra.mxu0 0.0
      %1961 = vmatprep.subr.mxu0 0.0
      %1962 = vmatpush1.msra.mxu0 0.0
      %1963 = vmatprep.subr.mxu0 0.0
      %1964 = vmatpush1.msra.mxu0 0.0
      %1965 = vmatprep.subr.mxu0 0.0
      %1966 = vmatpush1.msra.mxu0 0.0
      %1967 = vmatprep.subr.mxu0 0.0
      %1968 = vmatpush1.msra.mxu0 0.0
      %1969 = vmatprep.subr.mxu0 0.0
      %1970 = vmatpush1.msra.mxu0 0.0
      %1971 = vmatprep.subr.mxu0 0.0
      %1972 = vmatpush1.msra.mxu0 0.0
      %1973 = vmatprep.subr.mxu0 0.0
      %1974 = vmatpush1.msra.mxu0 0.0
      %1975 = vmatprep.subr.mxu0 0.0
      %1976 = vmatpush1.msra.mxu0 0.0
      %1977 = vmatprep.subr.mxu0 0.0
      %1978 = vmatpush1.msra.mxu0 0.0
      %1979 = vmatprep.subr.mxu0 0.0
      %1980 = vmatpush1.msra.mxu0 0.0
      %1981 = vmatprep.subr.mxu0 0.0
      %1982 = vmatpush1.msra.mxu0 0.0
      %1983 = vmatprep.subr.mxu0 0.0
      %1984 = vmatpush1.msra.mxu0 0.0
      %1985 = vmatprep.subr.mxu0 0.0
      %1986 = vmatpush1.msra.mxu0 0.0
      %1987 = vmatprep.subr.mxu0 0.0
      %1988 = vmatpush1.msra.mxu0 0.0
      %1989 = vmatprep.subr.mxu0 0.0
      %1990 = vmatpush1.msra.mxu0 0.0
      %1991 = vmatprep.subr.mxu0 0.0
      %1992 = vmatpush1.msra.mxu0 0.0
      %1993 = vmatprep.subr.mxu0 0.0
      %1994 = vmatpush1.msra.mxu0 0.0
      %1995 = vmatprep.subr.mxu0 0.0
      %1996 = vmatpush1.msra.mxu0 0.0
      %1997 = vmatprep.subr.mxu0 0.0
      %1998 = vmatpush1.msra.mxu0 0.0
      %1999 = vmatprep.subr.mxu0 0.0
      %2000 = vmatpush1.msra.mxu0 0.0
      %2001 = vmatprep.subr.mxu0 0.0
      %2002 = vmatpush1.msra.mxu0 0.0
      %2003 = vmatprep.mubr.f32.mxu0 0.0
      %2004 = vmatmul.mubr.f32.gmra.mrb[0].mxu0 %v1931
      %v2005 = vpop.f32.mrb[0].mxu0
      %v2006 = vadd.f32 %v1926, %v2005
      %v2007 = vpop.f32.mrb[0].mxu0
      %v2008 = vadd.f32 %v1928, %v2007
      %2009 = vdwg.mxu0
      %v2010 = vld [vmem:[%s859 + $0xb] sm:$0xf]
      %v2011 = vld [vmem:[#allocation2 + $0xa8] sm:$0x7]
      %v2012 = vld [vmem:[#allocation2 + $0xb0] sm:$0x7]
      %v2013 = vld [vmem:[#allocation2 + $0xb8] sm:$0x7]
      %2017 = vrot.lane.b32.xlu0 %v2011, 112
      %v2018 = vpop.permute.xlu0 %2017
      %2019 = vrot.lane.b32.xlu0 %v2012, 112
      %v2020 = vpop.permute.xlu0 %2019
      %2021 = vrot.lane.b32.xlu0 %v2013, 112
      %v2022 = vpop.permute.xlu0 %2021
      %v2023 = vsel %vm628, %v2018, %v2020
      %v2024 = vsel %vm628, %v2020, %v2022
      %v2027 = vsel %vm620, %v2023, 0.0
      %v2028 = vsel %vm621, %v2024, 0.0
      %v2030 = vsel %vm1389, %v2010, 0
      %v2033 = vsel %vm1854, %v2027, 0
      %v2036 = vsel %vm1854, %v2028, 0
      %2038 = vmatprep.subr.mxu0 %v2036
      %2039 = vmatpush1.msra.mxu0 %v2033
      %2040 = vmatprep.subr.mxu0 0.0
      %2041 = vmatpush1.msra.mxu0 0.0
      %2042 = vmatprep.subr.mxu0 0.0
      %2043 = vmatpush1.msra.mxu0 0.0
      %2044 = vmatprep.subr.mxu0 0.0
      %2045 = vmatpush1.msra.mxu0 0.0
      %2046 = vmatprep.subr.mxu0 0.0
      %2047 = vmatpush1.msra.mxu0 0.0
      %2048 = vmatprep.subr.mxu0 0.0
      %2049 = vmatpush1.msra.mxu0 0.0
      %2050 = vmatprep.subr.mxu0 0.0
      %2051 = vmatpush1.msra.mxu0 0.0
      %2052 = vmatprep.subr.mxu0 0.0
      %2053 = vmatpush1.msra.mxu0 0.0
      %2054 = vmatprep.subr.mxu0 0.0
      %2055 = vmatpush1.msra.mxu0 0.0
      %2056 = vmatprep.subr.mxu0 0.0
      %2057 = vmatpush1.msra.mxu0 0.0
      %2058 = vmatprep.subr.mxu0 0.0
      %2059 = vmatpush1.msra.mxu0 0.0
      %2060 = vmatprep.subr.mxu0 0.0
      %2061 = vmatpush1.msra.mxu0 0.0
      %2062 = vmatprep.subr.mxu0 0.0
      %2063 = vmatpush1.msra.mxu0 0.0
      %2064 = vmatprep.subr.mxu0 0.0
      %2065 = vmatpush1.msra.mxu0 0.0
      %2066 = vmatprep.subr.mxu0 0.0
      %2067 = vmatpush1.msra.mxu0 0.0
      %2068 = vmatprep.subr.mxu0 0.0
      %2069 = vmatpush1.msra.mxu0 0.0
      %2070 = vmatprep.subr.mxu0 0.0
      %2071 = vmatpush1.msra.mxu0 0.0
      %2072 = vmatprep.subr.mxu0 0.0
      %2073 = vmatpush1.msra.mxu0 0.0
      %2074 = vmatprep.subr.mxu0 0.0
      %2075 = vmatpush1.msra.mxu0 0.0
      %2076 = vmatprep.subr.mxu0 0.0
      %2077 = vmatpush1.msra.mxu0 0.0
      %2078 = vmatprep.subr.mxu0 0.0
      %2079 = vmatpush1.msra.mxu0 0.0
      %2080 = vmatprep.subr.mxu0 0.0
      %2081 = vmatpush1.msra.mxu0 0.0
      %2082 = vmatprep.subr.mxu0 0.0
      %2083 = vmatpush1.msra.mxu0 0.0
      %2084 = vmatprep.subr.mxu0 0.0
      %2085 = vmatpush1.msra.mxu0 0.0
      %2086 = vmatprep.subr.mxu0 0.0
      %2087 = vmatpush1.msra.mxu0 0.0
      %2088 = vmatprep.subr.mxu0 0.0
      %2089 = vmatpush1.msra.mxu0 0.0
      %2090 = vmatprep.subr.mxu0 0.0
      %2091 = vmatpush1.msra.mxu0 0.0
      %2092 = vmatprep.subr.mxu0 0.0
      %2093 = vmatpush1.msra.mxu0 0.0
      %2094 = vmatprep.subr.mxu0 0.0
      %2095 = vmatpush1.msra.mxu0 0.0
      %2096 = vmatprep.subr.mxu0 0.0
      %2097 = vmatpush1.msra.mxu0 0.0
      %2098 = vmatprep.subr.mxu0 0.0
      %2099 = vmatpush1.msra.mxu0 0.0
      %2100 = vmatprep.subr.mxu0 0.0
      %2101 = vmatpush1.msra.mxu0 0.0
      %2102 = vmatprep.mubr.f32.mxu0 0.0
      %2103 = vmatmul.mubr.f32.gmra.mrb[0].mxu0 %v2030
      %v2104 = vpop.f32.mrb[0].mxu0
      %v2105 = vadd.f32 0.0, %v2104
      %v2106 = vpop.f32.mrb[0].mxu0
      %v2107 = vadd.f32 0.0, %v2106
      %2108 = vdwg.mxu0
      %v2109 = vadd.f32 %v2006, %v2105
      %v2110 = vadd.f32 %v2008, %v2107
      %v2111 = vld [vmem:[%s5 + $0x2b] sm:$0xf]
      %2113 = vset.pattern.permute.xlu0 0
      %2114 = vperm.xlu0 %2113, %v2111
      %v2115 = vpop.permute.xlu0 %2114
      %v2117 = vadd.f32 %v2109, %v2115
      %v2118 = vadd.f32 %v2110, %v2115
      %v2119 = vmax.f32 %v2117, 0.0
      %v2120 = vmax.f32 %v2118, 0.0
      %2121 = vst [vmem:[#allocation2 + $0xc8] sm:$0xf] %v2119
      %2122 = vst [vmem:[#allocation2 + $0xd0] sm:$0xf] %v2120
      %v2123 = vld [vmem:[%s3 + $0xc] sm:$0xf]
      %v2124 = vld [vmem:[#allocation2 + $0xc0] sm:$0xf]
      %v2125 = vld [vmem:[#allocation2 + $0xc8] sm:$0xf]
      %v2126 = vld [vmem:[#allocation2 + $0xd0] sm:$0xf]
      %v2127 = vadd.s32 %v255, 4294967291
      %v2128 = vadd.s32 %v256, 4294967291
      %vm2129 = vcmp.ge.s32.totalorder %v2127, 0
      %vm2130 = vcmp.ge.s32.totalorder %v2128, 0
      %vm2131 = vcmp.lt.s32.totalorder %v2127, 16
      %vm2132 = vcmp.lt.s32.totalorder %v2128, 16
      %vm2133 = vmand %vm2129, %vm2131
      %vm2134 = vmand %vm2130, %vm2132
      %v2135 = vadd.s32 %v259, 4294967216
      %v2136 = vadd.s32 %v260, 4294967216
      %vm2137 = vcmp.ge.s32.totalorder %v2135, 0
      %vm2138 = vcmp.ge.s32.totalorder %v2136, 0
      %vm2139 = vcmp.lt.s32.totalorder %v2135, 256
      %vm2140 = vcmp.lt.s32.totalorder %v2136, 256
      %vm2141 = vmand %vm2137, %vm2139
      %vm2142 = vmand %vm2138, %vm2140
      %vm2143 = vmand %vm2133, %vm2141
      %vm2144 = vmand %vm2134, %vm2142
      %v2145 = vsel %vm2143, 1, 0
      %v2146 = vsel %vm2144, 1, 0
      %vm2147 = vcmp.eq.s32.totalorder %v2145, 1
      %vm2148 = vcmp.eq.s32.totalorder %v2146, 1
      %2152 = vrot.lane.b32.xlu0 %v2124, 85
      %v2153 = vpop.permute.xlu0 %2152
      %2154 = vrot.lane.b32.xlu0 %v2125, 85
      %v2155 = vpop.permute.xlu0 %2154
      %2156 = vrot.lane.b32.xlu0 %v2126, 85
      %v2157 = vpop.permute.xlu0 %2156
      %vm2158 = vcmask 695296
      %v2159 = vsel %vm2158, %v2153, %v2155
      %v2160 = vsel %vm2158, %v2155, %v2157
      %v2163 = vsel %vm2147, %v2159, 0.0
      %v2164 = vsel %vm2148, %v2160, 0.0
      %2166 = vset.pattern.permute.xlu0 0
      %2167 = vperm.xlu0 %2166, %v2123
      %v2168 = vpop.permute.xlu0 %2167
      %v2170 = vmul.f32 %v2168, %v2163
      %v2171 = vmul.f32 %v2168, %v2164
      %v2172 = vsel %vm2141, 1, 0
      %v2173 = vsel %vm2142, 1, 0
      %vm2174 = vcmp.eq.s32.totalorder %v2172, 1
      %vm2175 = vcmp.eq.s32.totalorder %v2173, 1
      %2176 = vrot.lane.b32.xlu0 %v2124, 80
      %v2177 = vpop.permute.xlu0 %2176
      %2178 = vrot.lane.b32.xlu0 %v2125, 80
      %v2179 = vpop.permute.xlu0 %2178
      %2180 = vrot.lane.b32.xlu0 %v2126, 80
      %v2181 = vpop.permute.xlu0 %2180
      %v2182 = vsel %vm1488, %v2177, %v2179
      %v2183 = vsel %vm1488, %v2179, %v2181
      %v2186 = vsel %vm2174, %v2182, 0.0
      %v2187 = vsel %vm2175, %v2183, 0.0
      %2188 = vset.pattern.permute.xlu0 1
      %2189 = vperm.xlu0 %2188, %v2123
      %v2190 = vpop.permute.xlu0 %2189
      %v2192 = vmul.f32 %v2190, %v2186
      %v2193 = vmul.f32 %v2190, %v2187
      %v2194 = vadd.f32 %v2170, %v2192
      %v2195 = vadd.f32 %v2171, %v2193
      %v2196 = vadd.s32 %v255, 5
      %v2197 = vadd.s32 %v256, 5
      %vm2198 = vcmp.ge.s32.totalorder %v2196, 0
      %vm2199 = vcmp.ge.s32.totalorder %v2197, 0
      %vm2200 = vcmp.lt.s32.totalorder %v2196, 16
      %vm2201 = vcmp.lt.s32.totalorder %v2197, 16
      %vm2202 = vmand %vm2198, %vm2200
      %vm2203 = vmand %vm2199, %vm2201
      %vm2204 = vmand %vm2202, %vm2141
      %vm2205 = vmand %vm2203, %vm2142
      %v2206 = vsel %vm2204, 1, 0
      %v2207 = vsel %vm2205, 1, 0
      %vm2208 = vcmp.eq.s32.totalorder %v2206, 1
      %vm2209 = vcmp.eq.s32.totalorder %v2207, 1
      %2210 = vrot.lane.b32.xlu0 %v2124, 75
      %v2211 = vpop.permute.xlu0 %2210
      %2212 = vrot.lane.b32.xlu0 %v2125, 75
      %v2213 = vpop.permute.xlu0 %2212
      %2214 = vrot.lane.b32.xlu0 %v2126, 75
      %v2215 = vpop.permute.xlu0 %2214
      %vm2216 = vcmask 613376
      %v2217 = vsel %vm2216, %v2211, %v2213
      %v2218 = vsel %vm2216, %v2213, %v2215
      %v2221 = vsel %vm2208, %v2217, 0.0
      %v2222 = vsel %vm2209, %v2218, 0.0
      %2223 = vset.pattern.permute.xlu0 2
      %2224 = vperm.xlu0 %2223, %v2123
      %v2225 = vpop.permute.xlu0 %2224
      %v2227 = vmul.f32 %v2225, %v2221
      %v2228 = vmul.f32 %v2225, %v2222
      %v2229 = vadd.f32 %v2194, %v2227
      %v2230 = vadd.f32 %v2195, %v2228
      %v2231 = vsel %vm2133, 1, 0
      %v2232 = vsel %vm2134, 1, 0
      %vm2233 = vcmp.eq.s32.totalorder %v2231, 1
      %vm2234 = vcmp.eq.s32.totalorder %v2232, 1
      %2235 = vrot.lane.b32.xlu0 %v2124, 5
      %v2236 = vpop.permute.xlu0 %2235
      %2237 = vrot.lane.b32.xlu0 %v2125, 5
      %v2238 = vpop.permute.xlu0 %2237
      %2239 = vrot.lane.b32.xlu0 %v2126, 5
      %v2240 = vpop.permute.xlu0 %2239
      %vm2241 = vcmask 39936
      %v2242 = vsel %vm2241, %v2236, %v2238
      %v2243 = vsel %vm2241, %v2238, %v2240
      %v2246 = vsel %vm2233, %v2242, 0.0
      %v2247 = vsel %vm2234, %v2243, 0.0
      %2248 = vset.pattern.permute.xlu0 3
      %2249 = vperm.xlu0 %2248, %v2123
      %v2250 = vpop.permute.xlu0 %2249
      %v2252 = vmul.f32 %v2250, %v2246
      %v2253 = vmul.f32 %v2250, %v2247
      %v2254 = vadd.f32 %v2229, %v2252
      %v2255 = vadd.f32 %v2230, %v2253
      %2256 = vset.pattern.permute.xlu0 4
      %2257 = vperm.xlu0 %2256, %v2123
      %v2258 = vpop.permute.xlu0 %2257
      %v2260 = vmul.f32 %v2258, %v2125
      %v2261 = vmul.f32 %v2258, %v2126
      %v2262 = vadd.f32 %v2254, %v2260
      %v2263 = vadd.f32 %v2255, %v2261
      %v2264 = vld [vmem:[#allocation2 + $0xc8] sm:$0xf]
      %v2265 = vld [vmem:[#allocation2 + $0xd0] sm:$0xf]
      %v2266 = vld [vmem:[#allocation2 + $0xd8] sm:$0xf]
      %v2267 = vsel %vm2202, 1, 0
      %v2268 = vsel %vm2203, 1, 0
      %vm2269 = vcmp.eq.s32.totalorder %v2267, 1
      %vm2270 = vcmp.eq.s32.totalorder %v2268, 1
      %2274 = vrot.lane.b32.xlu0 %v2264, 123
      %v2275 = vpop.permute.xlu0 %2274
      %2276 = vrot.lane.b32.xlu0 %v2265, 123
      %v2277 = vpop.permute.xlu0 %2276
      %2278 = vrot.lane.b32.xlu0 %v2266, 123
      %v2279 = vpop.permute.xlu0 %2278
      %vm2280 = vcmask 1006592
      %v2281 = vsel %vm2280, %v2275, %v2277
      %v2282 = vsel %vm2280, %v2277, %v2279
      %v2285 = vsel %vm2269, %v2281, 0.0
      %v2286 = vsel %vm2270, %v2282, 0.0
      %2287 = vset.pattern.permute.xlu0 5
      %2288 = vperm.xlu0 %2287, %v2123
      %v2289 = vpop.permute.xlu0 %2288
      %v2291 = vmul.f32 %v2289, %v2285
      %v2292 = vmul.f32 %v2289, %v2286
      %v2293 = vadd.f32 %v2262, %v2291
      %v2294 = vadd.f32 %v2263, %v2292
      %v2295 = vadd.s32 %v259, 80
      %v2296 = vadd.s32 %v260, 80
      %vm2297 = vcmp.ge.s32.totalorder %v2295, 0
      %vm2298 = vcmp.ge.s32.totalorder %v2296, 0
      %vm2299 = vcmp.lt.s32.totalorder %v2295, 256
      %vm2300 = vcmp.lt.s32.totalorder %v2296, 256
      %vm2301 = vmand %vm2297, %vm2299
      %vm2302 = vmand %vm2298, %vm2300
      %vm2303 = vmand %vm2133, %vm2301
      %vm2304 = vmand %vm2134, %vm2302
      %v2305 = vsel %vm2303, 1, 0
      %v2306 = vsel %vm2304, 1, 0
      %vm2307 = vcmp.eq.s32.totalorder %v2305, 1
      %vm2308 = vcmp.eq.s32.totalorder %v2306, 1
      %2309 = vrot.lane.b32.xlu0 %v2264, 53
      %v2310 = vpop.permute.xlu0 %2309
      %2311 = vrot.lane.b32.xlu0 %v2265, 53
      %v2312 = vpop.permute.xlu0 %2311
      %2313 = vrot.lane.b32.xlu0 %v2266, 53
      %v2314 = vpop.permute.xlu0 %2313
      %vm2315 = vcmask 433152
      %v2316 = vsel %vm2315, %v2310, %v2312
      %v2317 = vsel %vm2315, %v2312, %v2314
      %v2320 = vsel %vm2307, %v2316, 0.0
      %v2321 = vsel %vm2308, %v2317, 0.0
      %2322 = vset.pattern.permute.xlu0 6
      %2323 = vperm.xlu0 %2322, %v2123
      %v2324 = vpop.permute.xlu0 %2323
      %v2326 = vmul.f32 %v2324, %v2320
      %v2327 = vmul.f32 %v2324, %v2321
      %v2328 = vadd.f32 %v2293, %v2326
      %v2329 = vadd.f32 %v2294, %v2327
      %v2330 = vsel %vm2301, 1, 0
      %v2331 = vsel %vm2302, 1, 0
      %vm2332 = vcmp.eq.s32.totalorder %v2330, 1
      %vm2333 = vcmp.eq.s32.totalorder %v2331, 1
      %2334 = vrot.lane.b32.xlu0 %v2264, 48
      %v2335 = vpop.permute.xlu0 %2334
      %2336 = vrot.lane.b32.xlu0 %v2265, 48
      %v2337 = vpop.permute.xlu0 %2336
      %2338 = vrot.lane.b32.xlu0 %v2266, 48
      %v2339 = vpop.permute.xlu0 %2338
      %v2340 = vsel %vm1329, %v2335, %v2337
      %v2341 = vsel %vm1329, %v2337, %v2339
      %v2344 = vsel %vm2332, %v2340, 0.0
      %v2345 = vsel %vm2333, %v2341, 0.0
      %2346 = vset.pattern.permute.xlu0 7
      %2347 = vperm.xlu0 %2346, %v2123
      %v2348 = vpop.permute.xlu0 %2347
      %v2350 = vmul.f32 %v2348, %v2344
      %v2351 = vmul.f32 %v2348, %v2345
      %v2352 = vadd.f32 %v2328, %v2350
      %v2353 = vadd.f32 %v2329, %v2351
      %vm2354 = vmand %vm2202, %vm2301
      %vm2355 = vmand %vm2203, %vm2302
      %v2356 = vsel %vm2354, 1, 0
      %v2357 = vsel %vm2355, 1, 0
      %vm2358 = vcmp.eq.s32.totalorder %v2356, 1
      %vm2359 = vcmp.eq.s32.totalorder %v2357, 1
      %2360 = vrot.lane.b32.xlu0 %v2264, 43
      %v2361 = vpop.permute.xlu0 %2360
      %2362 = vrot.lane.b32.xlu0 %v2265, 43
      %v2363 = vpop.permute.xlu0 %2362
      %2364 = vrot.lane.b32.xlu0 %v2266, 43
      %v2365 = vpop.permute.xlu0 %2364
      %vm2366 = vcmask 351232
      %v2367 = vsel %vm2366, %v2361, %v2363
      %v2368 = vsel %vm2366, %v2363, %v2365
      %v2371 = vsel %vm2358, %v2367, 0.0
      %v2372 = vsel %vm2359, %v2368, 0.0
      %2373 = vset.pattern.permute.xlu0 8
      %2374 = vperm.xlu0 %2373, %v2123
      %v2375 = vpop.permute.xlu0 %2374
      %v2377 = vmul.f32 %v2375, %v2371
      %v2378 = vmul.f32 %v2375, %v2372
      %v2379 = vadd.f32 %v2352, %v2377
      %v2380 = vadd.f32 %v2353, %v2378
      %v2381 = vld [vmem:[%s5 + $0x3b] sm:$0xf]
      %2383 = vset.pattern.permute.xlu0 0
      %2384 = vperm.xlu0 %2383, %v2381
      %v2385 = vpop.permute.xlu0 %2384
      %v2387 = vadd.f32 %v2379, %v2385
      %v2388 = vadd.f32 %v2380, %v2385
      %v2389 = vld [vmem:[%s4] sm:$0xff]
      %v2390 = vld [vmem:[%s4 + $0x8] sm:$0xff]
      %2393 = vrot.lane.b32.xlu0 %v2389, 124
      %v2394 = vpop.permute.xlu0 %2393
      %2395 = vrot.lane.b32.xlu0 %v2390, 124
      %v2396 = vpop.permute.xlu0 %2395
      %vm2397 = vcmask 64512
      %v2398 = vsel %vm2397, %v2394, 0
      %v2400 = vsel %vm2397, %v2396, 0
      %2402 = vmatprep.subr.mxu0 %v1537
      %2403 = vmatpush1.msra.mxu0 %v1536
      %2404 = vmatprep.subr.mxu0 0.0
      %2405 = vmatpush1.msra.mxu0 0.0
      %2406 = vmatprep.subr.mxu0 0.0
      %2407 = vmatpush1.msra.mxu0 0.0
      %2408 = vmatprep.subr.mxu0 0.0
      %2409 = vmatpush1.msra.mxu0 0.0
      %2410 = vmatprep.subr.mxu0 0.0
      %2411 = vmatpush1.msra.mxu0 0.0
      %2412 = vmatprep.subr.mxu0 0.0
      %2413 = vmatpush1.msra.mxu0 0.0
      %2414 = vmatprep.subr.mxu0 0.0
      %2415 = vmatpush1.msra.mxu0 0.0
      %2416 = vmatprep.subr.mxu0 0.0
      %2417 = vmatpush1.msra.mxu0 0.0
      %2418 = vmatprep.subr.mxu0 0.0
      %2419 = vmatpush1.msra.mxu0 0.0
      %2420 = vmatprep.subr.mxu0 0.0
      %2421 = vmatpush1.msra.mxu0 0.0
      %2422 = vmatprep.subr.mxu0 0.0
      %2423 = vmatpush1.msra.mxu0 0.0
      %2424 = vmatprep.subr.mxu0 0.0
      %2425 = vmatpush1.msra.mxu0 0.0
      %2426 = vmatprep.subr.mxu0 0.0
      %2427 = vmatpush1.msra.mxu0 0.0
      %2428 = vmatprep.subr.mxu0 0.0
      %2429 = vmatpush1.msra.mxu0 0.0
      %2430 = vmatprep.subr.mxu0 0.0
      %2431 = vmatpush1.msra.mxu0 0.0
      %2432 = vmatprep.subr.mxu0 0.0
      %2433 = vmatpush1.msra.mxu0 0.0
      %2434 = vmatprep.subr.mxu0 0.0
      %2435 = vmatpush1.msra.mxu0 0.0
      %2436 = vmatprep.subr.mxu0 0.0
      %2437 = vmatpush1.msra.mxu0 0.0
      %2438 = vmatprep.subr.mxu0 0.0
      %2439 = vmatpush1.msra.mxu0 0.0
      %2440 = vmatprep.subr.mxu0 0.0
      %2441 = vmatpush1.msra.mxu0 0.0
      %2442 = vmatprep.subr.mxu0 0.0
      %2443 = vmatpush1.msra.mxu0 0.0
      %2444 = vmatprep.subr.mxu0 0.0
      %2445 = vmatpush1.msra.mxu0 0.0
      %2446 = vmatprep.subr.mxu0 0.0
      %2447 = vmatpush1.msra.mxu0 0.0
      %2448 = vmatprep.subr.mxu0 0.0
      %2449 = vmatpush1.msra.mxu0 0.0
      %2450 = vmatprep.subr.mxu0 0.0
      %2451 = vmatpush1.msra.mxu0 0.0
      %2452 = vmatprep.subr.mxu0 0.0
      %2453 = vmatpush1.msra.mxu0 0.0
      %2454 = vmatprep.subr.mxu0 0.0
      %2455 = vmatpush1.msra.mxu0 0.0
      %2456 = vmatprep.subr.mxu0 0.0
      %2457 = vmatpush1.msra.mxu0 0.0
      %2458 = vmatprep.subr.mxu0 0.0
      %2459 = vmatpush1.msra.mxu0 0.0
      %2460 = vmatprep.subr.mxu0 0.0
      %2461 = vmatpush1.msra.mxu0 0.0
      %2462 = vmatprep.subr.mxu0 0.0
      %2463 = vmatpush1.msra.mxu0 0.0
      %2464 = vmatprep.subr.mxu0 0.0
      %2465 = vmatpush1.msra.mxu0 0.0
      %2466 = vmatprep.mubr.f32.mxu0 0.0
      %2467 = vmatmul.mubr.f32.gmra.mrb[0].mxu0 %v2398
      %v2468 = vpop.f32.mrb[0].mxu0
      %v2469 = vadd.f32 0.0, %v2468
      %v2470 = vpop.f32.mrb[0].mxu0
      %v2471 = vadd.f32 0.0, %v2470
      %2472 = vmatprep.mubr.f32.mxu0 0.0
      %2473 = vmatmul.mubr.f32.gmra.mrb[0].mxu0 %v2400
      %v2474 = vpop.f32.mrb[0].mxu0
      %v2475 = vadd.f32 0.0, %v2474
      %v2476 = vpop.f32.mrb[0].mxu0
      %v2477 = vadd.f32 0.0, %v2476
      %2478 = vdwg.mxu0
      %v2479 = vsel %vm699, %v2389, 0
      %v2481 = vsel %vm699, %v2390, 0
      %v2484 = vsel %vm703, %v676, 0
      %v2487 = vsel %vm703, %v677, 0
      %2489 = vmatprep.subr.mxu0 %v2487
      %2490 = vmatpush1.msra.mxu0 %v2484
      %2491 = vmatprep.subr.mxu0 0.0
      %2492 = vmatpush1.msra.mxu0 0.0
      %2493 = vmatprep.subr.mxu0 0.0
      %2494 = vmatpush1.msra.mxu0 0.0
      %2495 = vmatprep.subr.mxu0 0.0
      %2496 = vmatpush1.msra.mxu0 0.0
      %2497 = vmatprep.subr.mxu0 0.0
      %2498 = vmatpush1.msra.mxu0 0.0
      %2499 = vmatprep.subr.mxu0 0.0
      %2500 = vmatpush1.msra.mxu0 0.0
      %2501 = vmatprep.subr.mxu0 0.0
      %2502 = vmatpush1.msra.mxu0 0.0
      %2503 = vmatprep.subr.mxu0 0.0
      %2504 = vmatpush1.msra.mxu0 0.0
      %2505 = vmatprep.subr.mxu0 0.0
      %2506 = vmatpush1.msra.mxu0 0.0
      %2507 = vmatprep.subr.mxu0 0.0
      %2508 = vmatpush1.msra.mxu0 0.0
      %2509 = vmatprep.subr.mxu0 0.0
      %2510 = vmatpush1.msra.mxu0 0.0
      %2511 = vmatprep.subr.mxu0 0.0
      %2512 = vmatpush1.msra.mxu0 0.0
      %2513 = vmatprep.subr.mxu0 0.0
      %2514 = vmatpush1.msra.mxu0 0.0
      %2515 = vmatprep.subr.mxu0 0.0
      %2516 = vmatpush1.msra.mxu0 0.0
      %2517 = vmatprep.subr.mxu0 0.0
      %2518 = vmatpush1.msra.mxu0 0.0
      %2519 = vmatprep.subr.mxu0 0.0
      %2520 = vmatpush1.msra.mxu0 0.0
      %2521 = vmatprep.subr.mxu0 0.0
      %2522 = vmatpush1.msra.mxu0 0.0
      %2523 = vmatprep.subr.mxu0 0.0
      %2524 = vmatpush1.msra.mxu0 0.0
      %2525 = vmatprep.subr.mxu0 0.0
      %2526 = vmatpush1.msra.mxu0 0.0
      %2527 = vmatprep.subr.mxu0 0.0
      %2528 = vmatpush1.msra.mxu0 0.0
      %2529 = vmatprep.subr.mxu0 0.0
      %2530 = vmatpush1.msra.mxu0 0.0
      %2531 = vmatprep.subr.mxu0 0.0
      %2532 = vmatpush1.msra.mxu0 0.0
      %2533 = vmatprep.subr.mxu0 0.0
      %2534 = vmatpush1.msra.mxu0 0.0
      %2535 = vmatprep.subr.mxu0 0.0
      %2536 = vmatpush1.msra.mxu0 0.0
      %2537 = vmatprep.subr.mxu0 0.0
      %2538 = vmatpush1.msra.mxu0 0.0
      %2539 = vmatprep.subr.mxu0 0.0
      %2540 = vmatpush1.msra.mxu0 0.0
      %2541 = vmatprep.subr.mxu0 0.0
      %2542 = vmatpush1.msra.mxu0 0.0
      %2543 = vmatprep.subr.mxu0 0.0
      %2544 = vmatpush1.msra.mxu0 0.0
      %2545 = vmatprep.subr.mxu0 0.0
      %2546 = vmatpush1.msra.mxu0 0.0
      %2547 = vmatprep.subr.mxu0 0.0
      %2548 = vmatpush1.msra.mxu0 0.0
      %2549 = vmatprep.subr.mxu0 0.0
      %2550 = vmatpush1.msra.mxu0 0.0
      %2551 = vmatprep.subr.mxu0 0.0
      %2552 = vmatpush1.msra.mxu0 0.0
      %2553 = vmatprep.mubr.f32.mxu0 0.0
      %2554 = vmatmul.mubr.f32.gmra.mrb[0].mxu0 %v2479
      %v2555 = vpop.f32.mrb[0].mxu0
      %v2556 = vadd.f32 %v2469, %v2555
      %v2557 = vpop.f32.mrb[0].mxu0
      %v2558 = vadd.f32 %v2471, %v2557
      %2559 = vmatprep.mubr.f32.mxu0 0.0
      %2560 = vmatmul.mubr.f32.gmra.mrb[0].mxu0 %v2481
      %v2561 = vpop.f32.mrb[0].mxu0
      %v2562 = vadd.f32 %v2475, %v2561
      %v2563 = vpop.f32.mrb[0].mxu0
      %v2564 = vadd.f32 %v2477, %v2563
      %2565 = vdwg.mxu0
      %2566 = vrot.lane.b32.xlu0 %v2389, 116
      %v2567 = vpop.permute.xlu0 %2566
      %2568 = vrot.lane.b32.xlu0 %v2390, 116
      %v2569 = vpop.permute.xlu0 %2568
      %v2570 = vsel %vm699, %v2567, 0
      %v2572 = vsel %vm699, %v2569, 0
      %v2575 = vsel %vm703, %v2387, 0
      %v2578 = vsel %vm703, %v2388, 0
      %2580 = vmatprep.subr.mxu0 %v2578
      %2581 = vmatpush1.msra.mxu0 %v2575
      %2582 = vmatprep.subr.mxu0 0.0
      %2583 = vmatpush1.msra.mxu0 0.0
      %2584 = vmatprep.subr.mxu0 0.0
      %2585 = vmatpush1.msra.mxu0 0.0
      %2586 = vmatprep.subr.mxu0 0.0
      %2587 = vmatpush1.msra.mxu0 0.0
      %2588 = vmatprep.subr.mxu0 0.0
      %2589 = vmatpush1.msra.mxu0 0.0
      %2590 = vmatprep.subr.mxu0 0.0
      %2591 = vmatpush1.msra.mxu0 0.0
      %2592 = vmatprep.subr.mxu0 0.0
      %2593 = vmatpush1.msra.mxu0 0.0
      %2594 = vmatprep.subr.mxu0 0.0
      %2595 = vmatpush1.msra.mxu0 0.0
      %2596 = vmatprep.subr.mxu0 0.0
      %2597 = vmatpush1.msra.mxu0 0.0
      %2598 = vmatprep.subr.mxu0 0.0
      %2599 = vmatpush1.msra.mxu0 0.0
      %2600 = vmatprep.subr.mxu0 0.0
      %2601 = vmatpush1.msra.mxu0 0.0
      %2602 = vmatprep.subr.mxu0 0.0
      %2603 = vmatpush1.msra.mxu0 0.0
      %2604 = vmatprep.subr.mxu0 0.0
      %2605 = vmatpush1.msra.mxu0 0.0
      %2606 = vmatprep.subr.mxu0 0.0
      %2607 = vmatpush1.msra.mxu0 0.0
      %2608 = vmatprep.subr.mxu0 0.0
      %2609 = vmatpush1.msra.mxu0 0.0
      %2610 = vmatprep.subr.mxu0 0.0
      %2611 = vmatpush1.msra.mxu0 0.0
      %2612 = vmatprep.subr.mxu0 0.0
      %2613 = vmatpush1.msra.mxu0 0.0
      %2614 = vmatprep.subr.mxu0 0.0
      %2615 = vmatpush1.msra.mxu0 0.0
      %2616 = vmatprep.subr.mxu0 0.0
      %2617 = vmatpush1.msra.mxu0 0.0
      %2618 = vmatprep.subr.mxu0 0.0
      %2619 = vmatpush1.msra.mxu0 0.0
      %2620 = vmatprep.subr.mxu0 0.0
      %2621 = vmatpush1.msra.mxu0 0.0
      %2622 = vmatprep.subr.mxu0 0.0
      %2623 = vmatpush1.msra.mxu0 0.0
      %2624 = vmatprep.subr.mxu0 0.0
      %2625 = vmatpush1.msra.mxu0 0.0
      %2626 = vmatprep.subr.mxu0 0.0
      %2627 = vmatpush1.msra.mxu0 0.0
      %2628 = vmatprep.subr.mxu0 0.0
      %2629 = vmatpush1.msra.mxu0 0.0
      %2630 = vmatprep.subr.mxu0 0.0
      %2631 = vmatpush1.msra.mxu0 0.0
      %2632 = vmatprep.subr.mxu0 0.0
      %2633 = vmatpush1.msra.mxu0 0.0
      %2634 = vmatprep.subr.mxu0 0.0
      %2635 = vmatpush1.msra.mxu0 0.0
      %2636 = vmatprep.subr.mxu0 0.0
      %2637 = vmatpush1.msra.mxu0 0.0
      %2638 = vmatprep.subr.mxu0 0.0
      %2639 = vmatpush1.msra.mxu0 0.0
      %2640 = vmatprep.subr.mxu0 0.0
      %2641 = vmatpush1.msra.mxu0 0.0
      %2642 = vmatprep.subr.mxu0 0.0
      %2643 = vmatpush1.msra.mxu0 0.0
      %2644 = vmatprep.mubr.f32.mxu0 0.0
      %2645 = vmatmul.mubr.f32.gmra.mrb[0].mxu0 %v2570
      %v2646 = vpop.f32.mrb[0].mxu0
      %v2647 = vadd.f32 0.0, %v2646
      %v2648 = vpop.f32.mrb[0].mxu0
      %v2649 = vadd.f32 0.0, %v2648
      %2650 = vmatprep.mubr.f32.mxu0 0.0
      %2651 = vmatmul.mubr.f32.gmra.mrb[0].mxu0 %v2572
      %v2652 = vpop.f32.mrb[0].mxu0
      %v2653 = vadd.f32 0.0, %v2652
      %v2654 = vpop.f32.mrb[0].mxu0
      %v2655 = vadd.f32 0.0, %v2654
      %2656 = vdwg.mxu0
      %v2657 = vadd.f32 %v2556, %v2647
      %v2658 = vadd.f32 %v2558, %v2649
      %v2659 = vadd.f32 %v2562, %v2653
      %v2660 = vadd.f32 %v2564, %v2655
      %v2661 = vld [vmem:[%s5 + $0x3f] sm:$0xff]
      %v2662 = vld [vmem:[%s5 + $0x47] sm:$0xff]
      %2664 = vset.pattern.permute.xlu0 0
      %2665 = vperm.xlu0 %2664, %v2661
      %v2666 = vpop.permute.xlu0 %2665
      %2669 = vset.pattern.permute.xlu0 0
      %2670 = vperm.xlu0 %2669, %v2662
      %v2671 = vpop.permute.xlu0 %2670
      %v2673 = vadd.f32 %v2657, %v2666
      %v2674 = vadd.f32 %v2658, %v2666
      %v2675 = vadd.f32 %v2659, %v2671
      %v2676 = vadd.f32 %v2660, %v2671
      %v2677 = vmul.f32 %v2673, 0.1
      %v2678 = vmul.f32 %v2674, 0.1
      %v2679 = vmul.f32 %v2675, 0.1
      %v2680 = vmul.f32 %v2676, 0.1
      %v2681 = vld [vmem:[%s246] sm:$0xff]
      %v2682 = vld [vmem:[%s246 + $0x8] sm:$0xff]
      %v2683 = vld [vmem:[%s246 + $0x10] sm:$0xff]
      %v2684 = vld [vmem:[%s246 + $0x18] sm:$0xff]
      %v2685 = vadd.f32 %v2677, %v2681
      %v2686 = vadd.f32 %v2678, %v2682
      %v2687 = vadd.f32 %v2679, %v2683
      %v2688 = vadd.f32 %v2680, %v2684
      %v2689 = vmax.f32 %v2685, 0.0
      %v2690 = vmax.f32 %v2686, 0.0
      %v2691 = vmax.f32 %v2687, 0.0
      %v2692 = vmax.f32 %v2688, 0.0
      %2693 = vst [vmem:[%s251] sm:$0xff] %v2689
      %2694 = vst [vmem:[%s251 + $0x8] sm:$0xff] %v2690
      %2695 = vst [vmem:[%s251 + $0x10] sm:$0xff] %v2691
      %2696 = vst [vmem:[%s251 + $0x18] sm:$0xff] %v2692
      %p2697 = scmp.lt.s32.totalorder %s17, 1
      %s2698 = scalar_select %p2697, %s17, 1
      %s2699 = smul.addr %s2698, 4
      %s2700 = smul.addr %s2699, 8
      %s2701 = scalar_lea.vmem %s6, %s2700
      // Predicated region
      $region45: #{rfb_forward.1} parent=43 // pred_check
        %p2702 = pneg %p166
      $region46: #{rfb_forward.1} parent=43 // pred_check_branch
        %2704 = sbr.rel (%p2702) target = $region48
      $region47: #{rfb_forward.1} parent=43 // pred_region
        _
      $region48: #{rfb_forward.1} parent=43 // pred_fallthru
        _
    $region44: #{rfb_forward.1} parent=5 // pred_fallthru
      _
    %p2705 = scmp.le.s32.totalorder 2, %s12
    // Predicated region
    $region49: #{rfb_forward.1} parent=5 // pred_check
      %p2706 = pneg %p2705
    $region50: #{rfb_forward.1} parent=5 // pred_check_branch
      %2708 = sbr.rel (%p2706) target = $region52
    $region51: #{rfb_forward.1} parent=5 // pred_region
      %s2709 = ssub.s32 %s12, 2
      // Predicated region
      $region53: #{rfb_forward.1} parent=51 // pred_check
        %p2710 = pneg %p172
      $region54: #{rfb_forward.1} parent=51 // pred_check_branch
        %2712 = sbr.rel (%p2710) target = $region56
      $region55: #{rfb_forward.1} parent=51 // pred_region
        %p2713 = scmp.lt.s32.totalorder %s18, 1
        %s2714 = scalar_select %p2713, %s18, 1
        %s2715 = smul.addr %s2714, 4
        %s2716 = smul.addr %s2715, 8
        %s2717 = scalar_lea.vmem %s6, %s2716
      $region56: #{rfb_forward.1} parent=51 // pred_fallthru
        _
    $region52: #{rfb_forward.1} parent=5 // pred_fallthru
      _
  $region6: #{rfb_forward.1} parent=0 // loop_footer
    %s16 = sadd.s32 1, %s12
  $region7: #{rfb_forward.1} parent=0 // loop_footer_branch
    %11 = sbr.rel target = $region3
  $region8: #{rfb_forward.1} parent=0 // loop_exit
    _

</llo_original>
